<compile_context>
chip_gen: v7x
topology: tpu7x:2x2x1
jax: 0.10.0
libtpu: 0.0.40
codegen_flags: <defaults>
</compile_context>

<pallas_src>
import jax
import jax.numpy as jnp
import numpy as np
from jax.experimental import pallas as pl
from jax.experimental.pallas import tpu as pltpu


# --------------------------------------------------------------------------- #
# Kernel A: conv1+relu+pool -> conv2+relu+pool -> LSTM layer-0 projection
# --------------------------------------------------------------------------- #
def _conv_stage_kernel(rhs1_ref, w1s_ref, b1s_ref, v2s_ref, b2s_ref, wih0t_ref,
                       xproj_ref):
    # conv1: one MXU pass producing conv output at positions 4k,4k+1,4k+2,4k+3
    # stacked along M (four row-blocks of C1 rows each).
    y1 = jnp.dot(w1s_ref[...], rhs1_ref[0],
                 preferred_element_type=jnp.float32) + b1s_ref[...]
    y1 = jnp.maximum(y1, 0.0)                          # ReLU
    c1 = w1s_ref.shape[0] // 4                         # conv1 out-channels (8)
    # MaxPool(2) of the length-1400 conv1 output, kept de-interleaved:
    #   p1e[k] = p1[2k]   = max(y1[4k],   y1[4k+1])
    #   p1o[k] = p1[2k+1] = max(y1[4k+2], y1[4k+3])
    p1e = jnp.maximum(y1[0:c1], y1[c1:2 * c1])
    p1o = jnp.maximum(y1[2 * c1:3 * c1], y1[3 * c1:4 * c1])
    lq = p1e.shape[1]
    # shifted neighbours for the conv2 stencil (zero = conv2 padding)
    zcol = jnp.zeros((c1, 1), jnp.float32)
    p1o_m1 = jnp.concatenate([zcol, p1o[:, :lq - 1]], axis=1)   # p1[2k-1]
    p1e_p1 = jnp.concatenate([p1e[:, 1:], zcol], axis=1)        # p1[2k+2]
    # conv2: again one MXU pass, taps along K and even/odd outputs along M.
    rhs2 = jnp.concatenate([p1o_m1, p1e, p1o, p1e_p1], axis=0)  # (4*C1, Lq)
    y2 = jnp.dot(v2s_ref[...], rhs2,
                 preferred_element_type=jnp.float32) + b2s_ref[...]
    y2 = jnp.maximum(y2, 0.0)
    c2 = v2s_ref.shape[0] // 2                         # conv2 out-channels (16)
    p2 = jnp.maximum(y2[0:c2], y2[c2:2 * c2])          # (C2, Lq) pooled conv2
    # LSTM layer-0 input projection (hoisted out of the serial recurrence).
    xproj_ref[0] = jnp.dot(p2, wih0t_ref[...],
                           preferred_element_type=jnp.float32)  # (C2, 4H)


# --------------------------------------------------------------------------- #
# Kernel B: 3-layer LSTM (PyTorch semantics, gate order ifgo) + MLP head
# State layout is (batch=16, 4H=64): gate blocks are lane slices.
# --------------------------------------------------------------------------- #
def _lstm3_mlp_kernel(xproj_ref, wih12t_ref, whht_ref, b_ref,
                      w1t_ref, b1_ref, w2t_ref, b2_ref,
                      out_ref, hn_ref, cn_ref):
    T, B, G = xproj_ref.shape
    H = G // 4
    row_ids = jax.lax.broadcasted_iota(jnp.int32, (T, H), 0)

    def lstm_cell(gates, c_prev):
        # gate columns (PyTorch order): [ i | f | g | o ]
        sig = jax.nn.sigmoid(gates)                    # one wide EUP pass
        i_g = sig[:, 0:H]
        f_g = sig[:, H:2 * H]
        o_g = sig[:, 3 * H:4 * H]
        g_g = jnp.tanh(gates[:, 2 * H:3 * H])
        c_new = f_g * c_prev + i_g * g_g
        h_new = o_g * jnp.tanh(c_new)
        return h_new, c_new

    def step(t, carry):
        h0, c0, h1, c1, h2, c2, feat = carry
        g0 = (xproj_ref[t]
              + jnp.dot(h0, whht_ref[0], preferred_element_type=jnp.float32)
              + b_ref[0])
        h0, c0 = lstm_cell(g0, c0)
        g1 = (jnp.dot(h0, wih12t_ref[0], preferred_element_type=jnp.float32)
              + jnp.dot(h1, whht_ref[1], preferred_element_type=jnp.float32)
              + b_ref[1])
        h1, c1 = lstm_cell(g1, c1)
        g2 = (jnp.dot(h1, wih12t_ref[1], preferred_element_type=jnp.float32)
              + jnp.dot(h2, whht_ref[2], preferred_element_type=jnp.float32)
              + b_ref[2])
        h2, c2 = lstm_cell(g2, c2)
        # y[t, -1, :] == h2[B-1, :]; insert row t via a VPU select (no dynamic
        # VMEM stores inside the loop).
        feat = jnp.where(row_ids == t,
                         jnp.broadcast_to(h2[B - 1:B, :], (T, H)), feat)
        return (h0, c0, h1, c1, h2, c2, feat)

    z = jnp.zeros((B, H), jnp.float32)
    feat0 = jnp.zeros((T, H), jnp.float32)
    h0, c0, h1, c1, h2, c2, feat = jax.lax.fori_loop(
        0, T, step, (z, z, z, z, z, z, feat0))

    hn_ref[0] = h0
    hn_ref[1] = h1
    hn_ref[2] = h2
    cn_ref[0] = c0
    cn_ref[1] = c1
    cn_ref[2] = c2

    # MLP head: one batched matmul over all timesteps.
    hdn = jnp.maximum(
        jnp.dot(feat, w1t_ref[...], preferred_element_type=jnp.float32)
        + b1_ref[...], 0.0)
    out_ref[...] = (jnp.dot(hdn, w2t_ref[...], preferred_element_type=jnp.float32)
                    + b2_ref[...])


# --------------------------------------------------------------------------- #
# RNN1 forward (matches PyTorch RNN1.forward with hidden=None)
# --------------------------------------------------------------------------- #
def _rnn1_forward_impl(params, inp):
    # inp: (N, 96, L) with L // 4 == 350 (required by nn.LSTM(350, ...)).
    N, C_in, L = inp.shape
    Lq = L // 4                                        # LSTM input size (350)
    C1 = params['conv1_w'].shape[0]                    # 8
    C2 = params['conv2_w'].shape[0]                    # 16 (== LSTM "batch")
    H = params['lstm_whh'][0].shape[1]                 # 16
    G = 4 * H

    # ---- glue (fused under jit): stride-4 de-interleave + boundary shifts ----
    x4 = inp.reshape(N, C_in, Lq, 4)
    x4a, x4b, x4c, x4d = x4[..., 0], x4[..., 1], x4[..., 2], x4[..., 3]
    zc = jnp.zeros((N, C_in, 1), jnp.float32)
    x4d_m1 = jnp.concatenate([zc, x4d[:, :, :-1]], axis=2)     # x[4k-1]
    x4a_p1 = jnp.concatenate([x4a[:, :, 1:], zc], axis=2)      # x[4k+4]
    rhs1 = jnp.concatenate([x4d_m1, x4a, x4b, x4c, x4d, x4a_p1], axis=1)

    # conv1 taps concatenated along K, 4 output phases stacked along M
    w = params['conv1_w']
    w0, w1, w2 = w[:, :, 0], w[:, :, 1], w[:, :, 2]
    Z1 = jnp.zeros_like(w0)
    W1s = jnp.concatenate([
        jnp.concatenate([w0, w1, w2, Z1, Z1, Z1], axis=1),
        jnp.concatenate([Z1, w0, w1, w2, Z1, Z1], axis=1),
        jnp.concatenate([Z1, Z1, w0, w1, w2, Z1], axis=1),
        jnp.concatenate([Z1, Z1, Z1, w0, w1, w2], axis=1),
    ], axis=0)                                                 # (4*C1, 6*C_in)
    b1s = jnp.tile(params['conv1_b'], 4).reshape(4 * C1, 1)

    v = params['conv2_w']
    v0, v1, v2 = v[:, :, 0], v[:, :, 1], v[:, :, 2]
    Z2 = jnp.zeros_like(v0)
    V2s = jnp.concatenate([
        jnp.concatenate([v0, v1, v2, Z2], axis=1),
        jnp.concatenate([Z2, v0, v1, v2], axis=1),
    ], axis=0)                                                 # (2*C2, 4*C1)
    b2s = jnp.tile(params['conv2_b'], 2).reshape(2 * C2, 1)

    wih0T = params['lstm_wih'][0].T                            # (Lq, 4H)

    # ---- kernel A: per-sample conv stage (+ layer-0 projection) -------------
    xproj = pl.pallas_call(
        _conv_stage_kernel,
        out_shape=jax.ShapeDtypeStruct((N, C2, G), jnp.float32),
        grid=(N,),
        in_specs=[
            pl.BlockSpec((1, 6 * C_in, Lq), lambda n: (n, 0, 0)),
            pl.BlockSpec((4 * C1, 6 * C_in), lambda n: (0, 0)),
            pl.BlockSpec((4 * C1, 1), lambda n: (0, 0)),
            pl.BlockSpec((2 * C2, 4 * C1), lambda n: (0, 0)),
            pl.BlockSpec((2 * C2, 1), lambda n: (0, 0)),
            pl.BlockSpec((Lq, G), lambda n: (0, 0)),
        ],
        out_specs=pl.BlockSpec((1, C2, G), lambda n: (n, 0, 0)),
        compiler_params=pltpu.CompilerParams(
            dimension_semantics=("parallel",)),                # v7x megacore
    )(rhs1, W1s, b1s, V2s, b2s, wih0T)

    # ---- kernel B: 3-layer LSTM recurrence + MLP head ------------------------
    wih12T = jnp.stack([params['lstm_wih'][1].T, params['lstm_wih'][2].T])
    whhT = jnp.stack([params['lstm_whh'][l].T for l in range(3)])
    bsum = jnp.stack([(params['lstm_bih'][l] + params['lstm_bhh'][l]).reshape(1, G)
                      for l in range(3)])

    out, h_n, c_n = pl.pallas_call(
        _lstm3_mlp_kernel,
        out_shape=(jax.ShapeDtypeStruct((N, 1), jnp.float32),
                   jax.ShapeDtypeStruct((3, C2, H), jnp.float32),
                   jax.ShapeDtypeStruct((3, C2, H), jnp.float32)),
    )(xproj, wih12T, whhT, bsum,
      params['lin1_w'].T, params['lin1_b'].reshape(1, -1),
      params['lin2_w'].T, params['lin2_b'].reshape(1, -1))
    return out, (h_n, c_n)


rnn1_forward = jax.jit(_rnn1_forward_impl)


# --------------------------------------------------------------------------- #
# Deterministic parameter init (PyTorch-like uniform fan-in bounds)
# --------------------------------------------------------------------------- #
def init_params(key, input_channel=96, hidden_channel=16, linear_transform=32,
                output_channel=8, classes=1, lstm_input=350):
    keys = jax.random.split(key, 20)

    def u(k, shape, fan_in):
        bound = 1.0 / np.sqrt(fan_in)
        return jax.random.uniform(k, shape, jnp.float32, -bound, bound)

    H = hidden_channel
    p = {
        'conv1_w': u(keys[0], (output_channel, input_channel, 3), input_channel * 3),
        'conv1_b': u(keys[1], (output_channel,), input_channel * 3),
        'conv2_w': u(keys[2], (output_channel * 2, output_channel, 3), output_channel * 3),
        'conv2_b': u(keys[3], (output_channel * 2,), output_channel * 3),
        'lstm_wih': [u(keys[4], (4 * H, lstm_input), H),
                     u(keys[5], (4 * H, H), H),
                     u(keys[6], (4 * H, H), H)],
        'lstm_whh': [u(keys[7 + i], (4 * H, H), H) for i in range(3)],
        'lstm_bih': [u(keys[10 + i], (4 * H,), H) for i in range(3)],
        'lstm_bhh': [u(keys[13 + i], (4 * H,), H) for i in range(3)],
        'lin1_w': u(keys[16], (linear_transform, H), H),
        'lin1_b': u(keys[17], (linear_transform,), H),
        'lin2_w': u(keys[18], (classes, linear_transform), linear_transform),
        'lin2_b': u(keys[19], (classes,), linear_transform),
    }
    return p


# --------------------------------------------------------------------------- #
# Pure-JAX reference for validation
# --------------------------------------------------------------------------- #
def rnn1_forward_ref(params, inp):
    def conv1d(x, w, b):
        y = jax.lax.conv_general_dilated(x, w, window_strides=(1,), padding=((1, 1),),
                                         dimension_numbers=('NCH', 'OIH', 'NCH'))
        return y + b[None, :, None]

    def pool(x):
        N, C, L = x.shape
        return jnp.max(x.reshape(N, C, L // 2, 2), axis=-1)

    x = pool(jax.nn.relu(conv1d(inp, params['conv1_w'], params['conv1_b'])))
    x = pool(jax.nn.relu(conv1d(x, params['conv2_w'], params['conv2_b'])))
    T, B, _ = x.shape
    H = 16
    h = [jnp.zeros((B, H), jnp.float32) for _ in range(3)]
    c = [jnp.zeros((B, H), jnp.float32) for _ in range(3)]
    ys = []
    for t in range(T):
        inp_t = x[t]
        for l in range(3):
            g = (inp_t @ params['lstm_wih'][l].T + h[l] @ params['lstm_whh'][l].T
                 + params['lstm_bih'][l] + params['lstm_bhh'][l])
            i_g = jax.nn.sigmoid(g[:, 0:H])
            f_g = jax.nn.sigmoid(g[:, H:2 * H])
            g_g = jnp.tanh(g[:, 2 * H:3 * H])
            o_g = jax.nn.sigmoid(g[:, 3 * H:4 * H])
            c[l] = f_g * c[l] + i_g * g_g
            h[l] = o_g * jnp.tanh(c[l])
            inp_t = h[l]
        ys.append(h[2])
    y = jnp.stack(ys)
    feat = y[:, -1]
    out = (jax.nn.relu(feat @ params['lin1_w'].T + params['lin1_b'])
           @ params['lin2_w'].T + params['lin2_b'])
    return out, (jnp.stack(h), jnp.stack(c))


if __name__ == "__main__":
    N = 2          # sample batch (becomes LSTM seq_len per PyTorch semantics)
    L = 1400       # nn.LSTM(350, ...) forces L // 4 == 350
    key = jax.random.PRNGKey(0)
    kx, kp = jax.random.split(key)
    x = jax.random.normal(kx, (N, 96, L), dtype=jnp.float32)
    params = init_params(kp)

    out, (h_n, c_n) = jax.block_until_ready(rnn1_forward(params, x))

    ref_out, (ref_h, ref_c) = rnn1_forward_ref(params, x)
    np.testing.assert_allclose(np.asarray(out), np.asarray(ref_out), rtol=1e-2, atol=1e-2)
    np.testing.assert_allclose(np.asarray(h_n), np.asarray(ref_h), rtol=1e-2, atol=1e-2)
    np.testing.assert_allclose(np.asarray(c_n), np.asarray(ref_c), rtol=1e-2, atol=1e-2)
    print("KERNEL_OK")
</pallas_src>

<mosaic_0001>
module attributes {stable_mosaic.version = 11 : i64} {
  func.func @_conv_stage_kernel(%arg0: i32, %arg1: memref<1x576x350xf32, #tpu.memory_space<vmem>>, %arg2: memref<32x576xf32, #tpu.memory_space<vmem>>, %arg3: memref<32x1xf32, #tpu.memory_space<vmem>>, %arg4: memref<32x32xf32, #tpu.memory_space<vmem>>, %arg5: memref<32x1xf32, #tpu.memory_space<vmem>>, %arg6: memref<350x64xf32, #tpu.memory_space<vmem>>, %arg7: memref<1x16x64xf32, #tpu.memory_space<vmem>>) attributes {dimension_semantics = [#tpu.dimension_semantics<parallel>], iteration_bounds = array<i64: 2>, scalar_prefetch = 0 : i64, scratch_operands = 0 : i64, tpu.core_type = #tpu.core_type<tc>, window_params = [{transform_indices = @transform_0, window_bounds = array<i64: 1, 576, 350>}, {pipeline_mode = #tpu.pipeline_mode<synchronous>, transform_indices = @transform_1, window_bounds = array<i64: 32, 576>}, {pipeline_mode = #tpu.pipeline_mode<synchronous>, transform_indices = @transform_2, window_bounds = array<i64: 32, 1>}, {pipeline_mode = #tpu.pipeline_mode<synchronous>, transform_indices = @transform_3, window_bounds = array<i64: 32, 32>}, {pipeline_mode = #tpu.pipeline_mode<synchronous>, transform_indices = @transform_4, window_bounds = array<i64: 32, 1>}, {pipeline_mode = #tpu.pipeline_mode<synchronous>, transform_indices = @transform_5, window_bounds = array<i64: 350, 64>}, {transform_indices = @transform_6, window_bounds = array<i64: 1, 16, 64>}]} {
    %c0 = arith.constant 0 : index
    %c0_0 = arith.constant 0 : index
    %0 = vector.load %arg2[%c0, %c0_0] : memref<32x576xf32, #tpu.memory_space<vmem>>, vector<32x576xf32>
    %c0_1 = arith.constant 0 : index
    %c0_2 = arith.constant 0 : index
    %c0_3 = arith.constant 0 : index
    %1 = vector.load %arg1[%c0_1, %c0_2, %c0_3] : memref<1x576x350xf32, #tpu.memory_space<vmem>>, vector<1x576x350xf32>
    %2 = vector.shape_cast %1 : vector<1x576x350xf32> to vector<576x350xf32>
    %cst = arith.constant dense<0.000000e+00> : vector<32x350xf32>
    %3 = tpu.matmul %0, %2, %cst {dimension_numbers = #tpu.dot_dimension_numbers<[1], [0], [0], [1], [0, 0, 1, 1], [], []>} : vector<32x576xf32>, vector<576x350xf32>, vector<32x350xf32> -> vector<32x350xf32>
    %c0_4 = arith.constant 0 : index
    %c0_5 = arith.constant 0 : index
    %4 = vector.load %arg3[%c0_4, %c0_5] : memref<32x1xf32, #tpu.memory_space<vmem>>, vector<32x1xf32>
    %5 = vector.broadcast %4 : vector<32x1xf32> to vector<32x350xf32>
    %6 = arith.addf %3, %5 : vector<32x350xf32>
    %cst_6 = arith.constant 0.000000e+00 : f32
    %7 = vector.broadcast %cst_6 : f32 to vector<32x350xf32>
    %8 = arith.maximumf %6, %7 : vector<32x350xf32>
    %9 = vector.extract_strided_slice %8 {offsets = [0, 0], sizes = [8, 350], strides = [1, 1]} : vector<32x350xf32> to vector<8x350xf32>
    %10 = vector.extract_strided_slice %8 {offsets = [8, 0], sizes = [8, 350], strides = [1, 1]} : vector<32x350xf32> to vector<8x350xf32>
    %11 = arith.maximumf %9, %10 : vector<8x350xf32>
    %12 = vector.extract_strided_slice %8 {offsets = [16, 0], sizes = [8, 350], strides = [1, 1]} : vector<32x350xf32> to vector<8x350xf32>
    %13 = vector.extract_strided_slice %8 {offsets = [24, 0], sizes = [8, 350], strides = [1, 1]} : vector<32x350xf32> to vector<8x350xf32>
    %14 = arith.maximumf %12, %13 : vector<8x350xf32>
    %cst_7 = arith.constant 0.000000e+00 : f32
    %15 = vector.broadcast %cst_7 : f32 to vector<8x1xf32>
    %16 = vector.extract_strided_slice %14 {offsets = [0, 0], sizes = [8, 349], strides = [1, 1]} : vector<8x350xf32> to vector<8x349xf32>
    %17 = tpu.concatenate %15, %16 in 1 : vector<8x1xf32>, vector<8x349xf32> -> vector<8x350xf32>
    %18 = vector.extract_strided_slice %11 {offsets = [0, 1], sizes = [8, 349], strides = [1, 1]} : vector<8x350xf32> to vector<8x349xf32>
    %19 = tpu.concatenate %18, %15 in 1 : vector<8x349xf32>, vector<8x1xf32> -> vector<8x350xf32>
    %20 = tpu.concatenate %17, %11, %14, %19 in 0 : vector<8x350xf32>, vector<8x350xf32>, vector<8x350xf32>, vector<8x350xf32> -> vector<32x350xf32>
    %c0_8 = arith.constant 0 : index
    %c0_9 = arith.constant 0 : index
    %21 = vector.load %arg4[%c0_8, %c0_9] : memref<32x32xf32, #tpu.memory_space<vmem>>, vector<32x32xf32>
    %cst_10 = arith.constant dense<0.000000e+00> : vector<32x350xf32>
    %22 = tpu.matmul %21, %20, %cst_10 {dimension_numbers = #tpu.dot_dimension_numbers<[1], [0], [0], [1], [0, 0, 1, 1], [], []>} : vector<32x32xf32>, vector<32x350xf32>, vector<32x350xf32> -> vector<32x350xf32>
    %c0_11 = arith.constant 0 : index
    %c0_12 = arith.constant 0 : index
    %23 = vector.load %arg5[%c0_11, %c0_12] : memref<32x1xf32, #tpu.memory_space<vmem>>, vector<32x1xf32>
    %24 = vector.broadcast %23 : vector<32x1xf32> to vector<32x350xf32>
    %25 = arith.addf %22, %24 : vector<32x350xf32>
    %cst_13 = arith.constant 0.000000e+00 : f32
    %26 = vector.broadcast %cst_13 : f32 to vector<32x350xf32>
    %27 = arith.maximumf %25, %26 : vector<32x350xf32>
    %28 = vector.extract_strided_slice %27 {offsets = [0, 0], sizes = [16, 350], strides = [1, 1]} : vector<32x350xf32> to vector<16x350xf32>
    %29 = vector.extract_strided_slice %27 {offsets = [16, 0], sizes = [16, 350], strides = [1, 1]} : vector<32x350xf32> to vector<16x350xf32>
    %30 = arith.maximumf %28, %29 : vector<16x350xf32>
    %c0_14 = arith.constant 0 : index
    %c0_15 = arith.constant 0 : index
    %31 = vector.load %arg6[%c0_14, %c0_15] : memref<350x64xf32, #tpu.memory_space<vmem>>, vector<350x64xf32>
    %cst_16 = arith.constant dense<0.000000e+00> : vector<16x64xf32>
    %32 = tpu.matmul %30, %31, %cst_16 {dimension_numbers = #tpu.dot_dimension_numbers<[1], [0], [0], [1], [0, 0, 1, 1], [], []>} : vector<16x350xf32>, vector<350x64xf32>, vector<16x64xf32> -> vector<16x64xf32>
    %c0_17 = arith.constant 0 : index
    %c0_18 = arith.constant 0 : index
    %c0_19 = arith.constant 0 : index
    %33 = vector.load %arg7[%c0_17, %c0_18, %c0_19] : memref<1x16x64xf32, #tpu.memory_space<vmem>>, vector<1x16x64xf32>
    %34 = vector.shape_cast %33 : vector<1x16x64xf32> to vector<16x64xf32>
    %35 = vector.shape_cast %32 : vector<16x64xf32> to vector<1x16x64xf32>
    tpu.vector_store %arg7[%c0_17, %c0_18, %c0_19], %35 {strides = array<i32>} : memref<1x16x64xf32, #tpu.memory_space<vmem>>, vector<1x16x64xf32>,
    return
  }
  func.func @transform_0(%arg0: i32) -> (i32, i32, i32) {
    %c0_i32 = arith.constant 0 : i32
    %c0_i32_0 = arith.constant 0 : i32
    %c0_i32_1 = arith.constant 0 : i32
    return %arg0, %c0_i32, %c0_i32_0 : i32, i32, i32
  }
  func.func @transform_1(%arg0: i32) -> (i32, i32) {
    %c0_i32 = arith.constant 0 : i32
    %c0_i32_0 = arith.constant 0 : i32
    %c0_i32_1 = arith.constant 0 : i32
    return %c0_i32, %c0_i32_0 : i32, i32
  }
  func.func @transform_2(%arg0: i32) -> (i32, i32) {
    %c0_i32 = arith.constant 0 : i32
    %c0_i32_0 = arith.constant 0 : i32
    %c0_i32_1 = arith.constant 0 : i32
    return %c0_i32, %c0_i32_0 : i32, i32
  }
  func.func @transform_3(%arg0: i32) -> (i32, i32) {
    %c0_i32 = arith.constant 0 : i32
    %c0_i32_0 = arith.constant 0 : i32
    %c0_i32_1 = arith.constant 0 : i32
    return %c0_i32, %c0_i32_0 : i32, i32
  }
  func.func @transform_4(%arg0: i32) -> (i32, i32) {
    %c0_i32 = arith.constant 0 : i32
    %c0_i32_0 = arith.constant 0 : i32
    %c0_i32_1 = arith.constant 0 : i32
    return %c0_i32, %c0_i32_0 : i32, i32
  }
  func.func @transform_5(%arg0: i32) -> (i32, i32) {
    %c0_i32 = arith.constant 0 : i32
    %c0_i32_0 = arith.constant 0 : i32
    %c0_i32_1 = arith.constant 0 : i32
    return %c0_i32, %c0_i32_0 : i32, i32
  }
  func.func @transform_6(%arg0: i32) -> (i32, i32, i32) {
    %c0_i32 = arith.constant 0 : i32
    %c0_i32_0 = arith.constant 0 : i32
    %c0_i32_1 = arith.constant 0 : i32
    return %arg0, %c0_i32, %c0_i32_0 : i32, i32, i32
  }
}

module attributes {stable_mosaic.version = 11 : i64} {
  func.func @_lstm3_mlp_kernel(%arg0: memref<2x16x64xf32, #tpu.memory_space<vmem>>, %arg1: memref<2x16x64xf32, #tpu.memory_space<vmem>>, %arg2: memref<3x16x64xf32, #tpu.memory_space<vmem>>, %arg3: memref<3x1x64xf32, #tpu.memory_space<vmem>>, %arg4: memref<16x32xf32, #tpu.memory_space<vmem>>, %arg5: memref<1x32xf32, #tpu.memory_space<vmem>>, %arg6: memref<32x1xf32, #tpu.memory_space<vmem>>, %arg7: memref<1x1xf32, #tpu.memory_space<vmem>>, %arg8: memref<2x1xf32, #tpu.memory_space<vmem>>, %arg9: memref<3x16x16xf32, #tpu.memory_space<vmem>>, %arg10: memref<3x16x16xf32, #tpu.memory_space<vmem>>) attributes {dimension_semantics = [], scalar_prefetch = 0 : i64, scratch_operands = 0 : i64, tpu.core_type = #tpu.core_type<tc>} {
    %0 = tpu.iota {dimensions = array<i32: 0>} : vector<2x16xi32>
    %cst = arith.constant 0.000000e+00 : f32
    %1 = vector.broadcast %cst : f32 to vector<16x16xf32>
    %cst_0 = arith.constant 0.000000e+00 : f32
    %2 = vector.broadcast %cst_0 : f32 to vector<2x16xf32>
    %c0_i32 = arith.constant 0 : i32
    %c2_i32 = arith.constant 2 : i32
    %3 = arith.addi %c0_i32, %c2_i32 : i32
    %c1_i32 = arith.constant 1 : i32
    %4:7 = scf.for %arg11 = %c0_i32 to %3 step %c1_i32 iter_args(%arg12 = %1, %arg13 = %1, %arg14 = %1, %arg15 = %1, %arg16 = %1, %arg17 = %1, %arg18 = %2) -> (vector<16x16xf32>, vector<16x16xf32>, vector<16x16xf32>, vector<16x16xf32>, vector<16x16xf32>, vector<16x16xf32>, vector<2x16xf32>)  : i32 {
      %36 = arith.index_cast %arg11 : i32 to index
      %c0_30 = arith.constant 0 : index
      %c0_31 = arith.constant 0 : index
      %37 = vector.load %arg0[%36, %c0_30, %c0_31] : memref<2x16x64xf32, #tpu.memory_space<vmem>>, vector<1x16x64xf32>
      %38 = vector.shape_cast %37 : vector<1x16x64xf32> to vector<16x64xf32>
      %c0_32 = arith.constant 0 : index
      %c0_33 = arith.constant 0 : index
      %c0_34 = arith.constant 0 : index
      %39 = vector.load %arg2[%c0_32, %c0_33, %c0_34] : memref<3x16x64xf32, #tpu.memory_space<vmem>>, vector<1x16x64xf32>
      %40 = vector.shape_cast %39 : vector<1x16x64xf32> to vector<16x64xf32>
      %cst_35 = arith.constant dense<0.000000e+00> : vector<16x64xf32>
      %41 = tpu.matmul %arg12, %40, %cst_35 {dimension_numbers = #tpu.dot_dimension_numbers<[1], [0], [0], [1], [0, 0, 1, 1], [], []>} : vector<16x16xf32>, vector<16x64xf32>, vector<16x64xf32> -> vector<16x64xf32>
      %42 = arith.addf %38, %41 : vector<16x64xf32>
      %c0_36 = arith.constant 0 : index
      %c0_37 = arith.constant 0 : index
      %c0_38 = arith.constant 0 : index
      %43 = vector.load %arg3[%c0_36, %c0_37, %c0_38] : memref<3x1x64xf32, #tpu.memory_space<vmem>>, vector<1x1x64xf32>
      %44 = vector.shape_cast %43 : vector<1x1x64xf32> to vector<1x64xf32>
      %45 = vector.broadcast %44 : vector<1x64xf32> to vector<16x64xf32>
      %46 = arith.addf %42, %45 : vector<16x64xf32>
      %47 = arith.negf %46 : vector<16x64xf32>
      %48 = math.exp %47 : vector<16x64xf32>
      %cst_39 = arith.constant 1.000000e+00 : f32
      %49 = vector.broadcast %cst_39 : f32 to vector<16x64xf32>
      %50 = arith.addf %49, %48 : vector<16x64xf32>
      %51 = arith.divf %49, %50 : vector<16x64xf32>
      %52 = vector.extract_strided_slice %51 {offsets = [0, 0], sizes = [16, 16], strides = [1, 1]} : vector<16x64xf32> to vector<16x16xf32>
      %53 = vector.extract_strided_slice %51 {offsets = [0, 16], sizes = [16, 16], strides = [1, 1]} : vector<16x64xf32> to vector<16x16xf32>
      %54 = vector.extract_strided_slice %51 {offsets = [0, 48], sizes = [16, 16], strides = [1, 1]} : vector<16x64xf32> to vector<16x16xf32>
      %55 = vector.extract_strided_slice %46 {offsets = [0, 32], sizes = [16, 16], strides = [1, 1]} : vector<16x64xf32> to vector<16x16xf32>
      %56 = math.tanh %55 : vector<16x16xf32>
      %57 = arith.mulf %53, %arg13 : vector<16x16xf32>
      %58 = arith.mulf %52, %56 : vector<16x16xf32>
      %59 = arith.addf %57, %58 : vector<16x16xf32>
      %60 = math.tanh %59 : vector<16x16xf32>
      %61 = arith.mulf %54, %60 : vector<16x16xf32>
      %c0_40 = arith.constant 0 : index
      %c0_41 = arith.constant 0 : index
      %c0_42 = arith.constant 0 : index
      %62 = vector.load %arg1[%c0_40, %c0_41, %c0_42] : memref<2x16x64xf32, #tpu.memory_space<vmem>>, vector<1x16x64xf32>
      %63 = vector.shape_cast %62 : vector<1x16x64xf32> to vector<16x64xf32>
      %cst_43 = arith.constant dense<0.000000e+00> : vector<16x64xf32>
      %64 = tpu.matmul %61, %63, %cst_43 {dimension_numbers = #tpu.dot_dimension_numbers<[1], [0], [0], [1], [0, 0, 1, 1], [], []>} : vector<16x16xf32>, vector<16x64xf32>, vector<16x64xf32> -> vector<16x64xf32>
      %c1_44 = arith.constant 1 : index
      %c0_45 = arith.constant 0 : index
      %c0_46 = arith.constant 0 : index
      %65 = vector.load %arg2[%c1_44, %c0_45, %c0_46] : memref<3x16x64xf32, #tpu.memory_space<vmem>>, vector<1x16x64xf32>
      %66 = vector.shape_cast %65 : vector<1x16x64xf32> to vector<16x64xf32>
      %cst_47 = arith.constant dense<0.000000e+00> : vector<16x64xf32>
      %67 = tpu.matmul %arg14, %66, %cst_47 {dimension_numbers = #tpu.dot_dimension_numbers<[1], [0], [0], [1], [0, 0, 1, 1], [], []>} : vector<16x16xf32>, vector<16x64xf32>, vector<16x64xf32> -> vector<16x64xf32>
      %68 = arith.addf %64, %67 : vector<16x64xf32>
      %c1_48 = arith.constant 1 : index
      %c0_49 = arith.constant 0 : index
      %c0_50 = arith.constant 0 : index
      %69 = vector.load %arg3[%c1_48, %c0_49, %c0_50] : memref<3x1x64xf32, #tpu.memory_space<vmem>>, vector<1x1x64xf32>
      %70 = vector.shape_cast %69 : vector<1x1x64xf32> to vector<1x64xf32>
      %71 = vector.broadcast %70 : vector<1x64xf32> to vector<16x64xf32>
      %72 = arith.addf %68, %71 : vector<16x64xf32>
      %73 = arith.negf %72 : vector<16x64xf32>
      %74 = math.exp %73 : vector<16x64xf32>
      %cst_51 = arith.constant 1.000000e+00 : f32
      %75 = vector.broadcast %cst_51 : f32 to vector<16x64xf32>
      %76 = arith.addf %75, %74 : vector<16x64xf32>
      %77 = arith.divf %75, %76 : vector<16x64xf32>
      %78 = vector.extract_strided_slice %77 {offsets = [0, 0], sizes = [16, 16], strides = [1, 1]} : vector<16x64xf32> to vector<16x16xf32>
      %79 = vector.extract_strided_slice %77 {offsets = [0, 16], sizes = [16, 16], strides = [1, 1]} : vector<16x64xf32> to vector<16x16xf32>
      %80 = vector.extract_strided_slice %77 {offsets = [0, 48], sizes = [16, 16], strides = [1, 1]} : vector<16x64xf32> to vector<16x16xf32>
      %81 = vector.extract_strided_slice %72 {offsets = [0, 32], sizes = [16, 16], strides = [1, 1]} : vector<16x64xf32> to vector<16x16xf32>
      %82 = math.tanh %81 : vector<16x16xf32>
      %83 = arith.mulf %79, %arg15 : vector<16x16xf32>
      %84 = arith.mulf %78, %82 : vector<16x16xf32>
      %85 = arith.addf %83, %84 : vector<16x16xf32>
      %86 = math.tanh %85 : vector<16x16xf32>
      %87 = arith.mulf %80, %86 : vector<16x16xf32>
      %c1_52 = arith.constant 1 : index
      %c0_53 = arith.constant 0 : index
      %c0_54 = arith.constant 0 : index
      %88 = vector.load %arg1[%c1_52, %c0_53, %c0_54] : memref<2x16x64xf32, #tpu.memory_space<vmem>>, vector<1x16x64xf32>
      %89 = vector.shape_cast %88 : vector<1x16x64xf32> to vector<16x64xf32>
      %cst_55 = arith.constant dense<0.000000e+00> : vector<16x64xf32>
      %90 = tpu.matmul %87, %89, %cst_55 {dimension_numbers = #tpu.dot_dimension_numbers<[1], [0], [0], [1], [0, 0, 1, 1], [], []>} : vector<16x16xf32>, vector<16x64xf32>, vector<16x64xf32> -> vector<16x64xf32>
      %c2_56 = arith.constant 2 : index
      %c0_57 = arith.constant 0 : index
      %c0_58 = arith.constant 0 : index
      %91 = vector.load %arg2[%c2_56, %c0_57, %c0_58] : memref<3x16x64xf32, #tpu.memory_space<vmem>>, vector<1x16x64xf32>
      %92 = vector.shape_cast %91 : vector<1x16x64xf32> to vector<16x64xf32>
      %cst_59 = arith.constant dense<0.000000e+00> : vector<16x64xf32>
      %93 = tpu.matmul %arg16, %92, %cst_59 {dimension_numbers = #tpu.dot_dimension_numbers<[1], [0], [0], [1], [0, 0, 1, 1], [], []>} : vector<16x16xf32>, vector<16x64xf32>, vector<16x64xf32> -> vector<16x64xf32>
      %94 = arith.addf %90, %93 : vector<16x64xf32>
      %c2_60 = arith.constant 2 : index
      %c0_61 = arith.constant 0 : index
      %c0_62 = arith.constant 0 : index
      %95 = vector.load %arg3[%c2_60, %c0_61, %c0_62] : memref<3x1x64xf32, #tpu.memory_space<vmem>>, vector<1x1x64xf32>
      %96 = vector.shape_cast %95 : vector<1x1x64xf32> to vector<1x64xf32>
      %97 = vector.broadcast %96 : vector<1x64xf32> to vector<16x64xf32>
      %98 = arith.addf %94, %97 : vector<16x64xf32>
      %99 = arith.negf %98 : vector<16x64xf32>
      %100 = math.exp %99 : vector<16x64xf32>
      %cst_63 = arith.constant 1.000000e+00 : f32
      %101 = vector.broadcast %cst_63 : f32 to vector<16x64xf32>
      %102 = arith.addf %101, %100 : vector<16x64xf32>
      %103 = arith.divf %101, %102 : vector<16x64xf32>
      %104 = vector.extract_strided_slice %103 {offsets = [0, 0], sizes = [16, 16], strides = [1, 1]} : vector<16x64xf32> to vector<16x16xf32>
      %105 = vector.extract_strided_slice %103 {offsets = [0, 16], sizes = [16, 16], strides = [1, 1]} : vector<16x64xf32> to vector<16x16xf32>
      %106 = vector.extract_strided_slice %103 {offsets = [0, 48], sizes = [16, 16], strides = [1, 1]} : vector<16x64xf32> to vector<16x16xf32>
      %107 = vector.extract_strided_slice %98 {offsets = [0, 32], sizes = [16, 16], strides = [1, 1]} : vector<16x64xf32> to vector<16x16xf32>
      %108 = math.tanh %107 : vector<16x16xf32>
      %109 = arith.mulf %105, %arg17 : vector<16x16xf32>
      %110 = arith.mulf %104, %108 : vector<16x16xf32>
      %111 = arith.addf %109, %110 : vector<16x16xf32>
      %112 = math.tanh %111 : vector<16x16xf32>
      %113 = arith.mulf %106, %112 : vector<16x16xf32>
      %114 = vector.broadcast %arg11 : i32 to vector<2x16xi32>
      %115 = arith.cmpi eq, %0, %114 : vector<2x16xi32>
      %116 = vector.extract_strided_slice %113 {offsets = [15, 0], sizes = [1, 16], strides = [1, 1]} : vector<16x16xf32> to vector<1x16xf32>
      %117 = vector.shape_cast %116 : vector<1x16xf32> to vector<1x16xf32>
      %118 = vector.broadcast %117 : vector<1x16xf32> to vector<2x16xf32>
      %119 = arith.select %115, %118, %arg18 : vector<2x16xi1>, vector<2x16xf32>
      scf.yield %61, %59, %87, %85, %113, %111, %119 : vector<16x16xf32>, vector<16x16xf32>, vector<16x16xf32>, vector<16x16xf32>, vector<16x16xf32>, vector<16x16xf32>, vector<2x16xf32>
    }
    %c2_i32_1 = arith.constant 2 : i32
    %c0 = arith.constant 0 : index
    %c0_2 = arith.constant 0 : index
    %c0_3 = arith.constant 0 : index
    %5 = vector.load %arg9[%c0, %c0_2, %c0_3] : memref<3x16x16xf32, #tpu.memory_space<vmem>>, vector<1x16x16xf32>
    %6 = vector.shape_cast %5 : vector<1x16x16xf32> to vector<16x16xf32>
    %7 = vector.shape_cast %4#0 : vector<16x16xf32> to vector<1x16x16xf32>
    tpu.vector_store %arg9[%c0, %c0_2, %c0_3], %7 {strides = array<i32>} : memref<3x16x16xf32, #tpu.memory_space<vmem>>, vector<1x16x16xf32>,
    %c1 = arith.constant 1 : index
    %c0_4 = arith.constant 0 : index
    %c0_5 = arith.constant 0 : index
    %8 = vector.load %arg9[%c1, %c0_4, %c0_5] : memref<3x16x16xf32, #tpu.memory_space<vmem>>, vector<1x16x16xf32>
    %9 = vector.shape_cast %8 : vector<1x16x16xf32> to vector<16x16xf32>
    %10 = vector.shape_cast %4#2 : vector<16x16xf32> to vector<1x16x16xf32>
    tpu.vector_store %arg9[%c1, %c0_4, %c0_5], %10 {strides = array<i32>} : memref<3x16x16xf32, #tpu.memory_space<vmem>>, vector<1x16x16xf32>,
    %c2 = arith.constant 2 : index
    %c0_6 = arith.constant 0 : index
    %c0_7 = arith.constant 0 : index
    %11 = vector.load %arg9[%c2, %c0_6, %c0_7] : memref<3x16x16xf32, #tpu.memory_space<vmem>>, vector<1x16x16xf32>
    %12 = vector.shape_cast %11 : vector<1x16x16xf32> to vector<16x16xf32>
    %13 = vector.shape_cast %4#4 : vector<16x16xf32> to vector<1x16x16xf32>
    tpu.vector_store %arg9[%c2, %c0_6, %c0_7], %13 {strides = array<i32>} : memref<3x16x16xf32, #tpu.memory_space<vmem>>, vector<1x16x16xf32>,
    %c0_8 = arith.constant 0 : index
    %c0_9 = arith.constant 0 : index
    %c0_10 = arith.constant 0 : index
    %14 = vector.load %arg10[%c0_8, %c0_9, %c0_10] : memref<3x16x16xf32, #tpu.memory_space<vmem>>, vector<1x16x16xf32>
    %15 = vector.shape_cast %14 : vector<1x16x16xf32> to vector<16x16xf32>
    %16 = vector.shape_cast %4#1 : vector<16x16xf32> to vector<1x16x16xf32>
    tpu.vector_store %arg10[%c0_8, %c0_9, %c0_10], %16 {strides = array<i32>} : memref<3x16x16xf32, #tpu.memory_space<vmem>>, vector<1x16x16xf32>,
    %c1_11 = arith.constant 1 : index
    %c0_12 = arith.constant 0 : index
    %c0_13 = arith.constant 0 : index
    %17 = vector.load %arg10[%c1_11, %c0_12, %c0_13] : memref<3x16x16xf32, #tpu.memory_space<vmem>>, vector<1x16x16xf32>
    %18 = vector.shape_cast %17 : vector<1x16x16xf32> to vector<16x16xf32>
    %19 = vector.shape_cast %4#3 : vector<16x16xf32> to vector<1x16x16xf32>
    tpu.vector_store %arg10[%c1_11, %c0_12, %c0_13], %19 {strides = array<i32>} : memref<3x16x16xf32, #tpu.memory_space<vmem>>, vector<1x16x16xf32>,
    %c2_14 = arith.constant 2 : index
    %c0_15 = arith.constant 0 : index
    %c0_16 = arith.constant 0 : index
    %20 = vector.load %arg10[%c2_14, %c0_15, %c0_16] : memref<3x16x16xf32, #tpu.memory_space<vmem>>, vector<1x16x16xf32>
    %21 = vector.shape_cast %20 : vector<1x16x16xf32> to vector<16x16xf32>
    %22 = vector.shape_cast %4#5 : vector<16x16xf32> to vector<1x16x16xf32>
    tpu.vector_store %arg10[%c2_14, %c0_15, %c0_16], %22 {strides = array<i32>} : memref<3x16x16xf32, #tpu.memory_space<vmem>>, vector<1x16x16xf32>,
    %c0_17 = arith.constant 0 : index
    %c0_18 = arith.constant 0 : index
    %23 = vector.load %arg4[%c0_17, %c0_18] : memref<16x32xf32, #tpu.memory_space<vmem>>, vector<16x32xf32>
    %cst_19 = arith.constant dense<0.000000e+00> : vector<2x32xf32>
    %24 = tpu.matmul %4#6, %23, %cst_19 {dimension_numbers = #tpu.dot_dimension_numbers<[1], [0], [0], [1], [0, 0, 1, 1], [], []>} : vector<2x16xf32>, vector<16x32xf32>, vector<2x32xf32> -> vector<2x32xf32>
    %c0_20 = arith.constant 0 : index
    %c0_21 = arith.constant 0 : index
    %25 = vector.load %arg5[%c0_20, %c0_21] : memref<1x32xf32, #tpu.memory_space<vmem>>, vector<1x32xf32>
    %26 = vector.broadcast %25 : vector<1x32xf32> to vector<2x32xf32>
    %27 = arith.addf %24, %26 : vector<2x32xf32>
    %cst_22 = arith.constant 0.000000e+00 : f32
    %28 = vector.broadcast %cst_22 : f32 to vector<2x32xf32>
    %29 = arith.maximumf %27, %28 : vector<2x32xf32>
    %c0_23 = arith.constant 0 : index
    %c0_24 = arith.constant 0 : index
    %30 = vector.load %arg6[%c0_23, %c0_24] : memref<32x1xf32, #tpu.memory_space<vmem>>, vector<32x1xf32>
    %cst_25 = arith.constant dense<0.000000e+00> : vector<2x1xf32>
    %31 = tpu.matmul %29, %30, %cst_25 {dimension_numbers = #tpu.dot_dimension_numbers<[1], [0], [0], [1], [0, 0, 1, 1], [], []>} : vector<2x32xf32>, vector<32x1xf32>, vector<2x1xf32> -> vector<2x1xf32>
    %c0_26 = arith.constant 0 : index
    %c0_27 = arith.constant 0 : index
    %32 = vector.load %arg7[%c0_26, %c0_27] : memref<1x1xf32, #tpu.memory_space<vmem>>, vector<1x1xf32>
    %33 = vector.broadcast %32 : vector<1x1xf32> to vector<2x1xf32>
    %34 = arith.addf %31, %33 : vector<2x1xf32>
    %c0_28 = arith.constant 0 : index
    %c0_29 = arith.constant 0 : index
    %35 = vector.load %arg8[%c0_28, %c0_29] : memref<2x1xf32, #tpu.memory_space<vmem>>, vector<2x1xf32>
    tpu.vector_store %arg8[%c0_28, %c0_29], %34 {strides = array<i32>} : memref<2x1xf32, #tpu.memory_space<vmem>>, vector<2x1xf32>,
    return
  }
}

</mosaic_0001>

<llo_original>
// kernel: tile.13
$region0: #{tile.13}
  #allocation0 [shape = 's32[1]{0}', space=sflag, size = 0x4, scoped, tag = 'scoped memory for tile.13']
  %s0 = inlined_call_operand.vmem [shape: f32[8], index: 0, kind: input, shape index: {}]
  %s1 = inlined_call_operand.vmem [shape: f32[4,8], index: 1, kind: output, shape index: {}]
  // Predicated region
  $region2: #{tile.13} parent=0 // pred_check
    _
  $region3: #{tile.13} parent=0 // pred_check_branch
    %3 = sbr.rel (0) target = $region5
  $region4: #{tile.13} parent=0 // pred_region
    _
  $region5: #{tile.13} parent=0 // pred_fallthru
    _
  %v4 = vld [vmem:[%s0] ss:$0 sm:$0xff]
  %5 = vst [vmem:[%s1] sm:$0xf] %v4

// kernel: tile.0
$region0: #{tile.0}
  %s0 = inlined_call_operand.vmem [shape: f32[4,8], index: 0, kind: input, shape index: {}]
  %s1 = inlined_call_operand.vmem [shape: f32[32,1], index: 1, kind: output, shape index: {}]
  $region1: #{tile.0} parent=0
    #allocation0 [shape = 'u8[4096]{0}', space=vmem, size = 0x1000, scoped, tag = 'scoped mem for input reshape']
    %s3 = sshllo.u32 0, 4
    %v4 = vld [vmem:[%s0] sm:%s3]
    %5 = vst [vmem:[#allocation0] sm:%s3] %v4
    %v6 = vld [vmem:[#allocation0] sm:$0xf]
    %vm7 = vcmask 7168
    %8 = vst.msk [vmem:[%s1] ss:$8 sm:$0xf] %vm7, %v6
    %v9 = vld [vmem:[#allocation0] sm:$0xf]
    %10 = vrot.lane.b32.xlu0 %v9, 127
    %v11 = vpop.permute.xlu0 %10
    %vm12 = vcmask 7168
    %s13 = scalar_lea.vmem %s1, 1
    %14 = vst.msk [vmem:[%s13] ss:$8 sm:$0xf] %vm12, %v11
    %v15 = vld [vmem:[#allocation0] sm:$0xf]
    %16 = vrot.lane.b32.xlu0 %v15, 126
    %v17 = vpop.permute.xlu0 %16
    %vm18 = vcmask 7168
    %s19 = scalar_lea.vmem %s1, 2
    %20 = vst.msk [vmem:[%s19] ss:$8 sm:$0xf] %vm18, %v17
    %v21 = vld [vmem:[#allocation0] sm:$0xf]
    %22 = vrot.lane.b32.xlu0 %v21, 125
    %v23 = vpop.permute.xlu0 %22
    %vm24 = vcmask 7168
    %s25 = scalar_lea.vmem %s1, 3
    %26 = vst.msk [vmem:[%s25] ss:$8 sm:$0xf] %vm24, %v23
    %v27 = vld [vmem:[#allocation0] sm:$0xf]
    %28 = vrot.lane.b32.xlu0 %v27, 124
    %v29 = vpop.permute.xlu0 %28
    %vm30 = vcmask 7168
    %s31 = scalar_lea.vmem %s1, 4
    %32 = vst.msk [vmem:[%s31] ss:$8 sm:$0xf] %vm30, %v29
    %v33 = vld [vmem:[#allocation0] sm:$0xf]
    %34 = vrot.lane.b32.xlu0 %v33, 123
    %v35 = vpop.permute.xlu0 %34
    %vm36 = vcmask 7168
    %s37 = scalar_lea.vmem %s1, 5
    %38 = vst.msk [vmem:[%s37] ss:$8 sm:$0xf] %vm36, %v35
    %v39 = vld [vmem:[#allocation0] sm:$0xf]
    %40 = vrot.lane.b32.xlu0 %v39, 122
    %v41 = vpop.permute.xlu0 %40
    %vm42 = vcmask 7168
    %s43 = scalar_lea.vmem %s1, 6
    %44 = vst.msk [vmem:[%s43] ss:$8 sm:$0xf] %vm42, %v41
    %v45 = vld [vmem:[#allocation0] sm:$0xf]
    %46 = vrot.lane.b32.xlu0 %v45, 121
    %v47 = vpop.permute.xlu0 %46
    %vm48 = vcmask 7168
    %s49 = scalar_lea.vmem %s1, 7
    %50 = vst.msk [vmem:[%s49] ss:$8 sm:$0xf] %vm48, %v47

// kernel: tile.18
$region0: #{tile.18}
  #allocation0 [shape = 's32[1]{0}', space=sflag, size = 0x4, scoped, tag = 'scoped memory for tile.18']
  %s0 = inlined_call_operand.vmem [shape: f32[16], index: 0, kind: input, shape index: {}]
  %s1 = inlined_call_operand.vmem [shape: f32[2,16], index: 1, kind: output, shape index: {}]
  // Predicated region
  $region2: #{tile.18} parent=0 // pred_check
    _
  $region3: #{tile.18} parent=0 // pred_check_branch
    %3 = sbr.rel (0) target = $region5
  $region4: #{tile.18} parent=0 // pred_region
    _
  $region5: #{tile.18} parent=0 // pred_fallthru
    _
  %v4 = vld [vmem:[%s0] ss:$0 sm:$0xff]
  %5 = vst [vmem:[%s1] sm:$0x3] %v4

// kernel: tile.1
$region0: #{tile.1}
  %s0 = inlined_call_operand.vmem [shape: f32[2,16], index: 0, kind: input, shape index: {}]
  %s1 = inlined_call_operand.vmem [shape: f32[32,1], index: 1, kind: output, shape index: {}]
  $region1: #{tile.1} parent=0
    #allocation0 [shape = 'u8[4096]{0}', space=vmem, size = 0x1000, scoped, tag = 'scoped mem for input reshape']
    %s3 = sshllo.u32 0, 2
    %v4 = vld [vmem:[%s0] sm:%s3]
    %5 = vst [vmem:[#allocation0] sm:%s3] %v4
    %v6 = vld [vmem:[#allocation0] sm:$0x3]
    %vm7 = vcmask 7168
    %8 = vst.msk [vmem:[%s1] ss:$16 sm:$0x3] %vm7, %v6
    %v9 = vld [vmem:[#allocation0] sm:$0x3]
    %10 = vrot.lane.b32.xlu0 %v9, 127
    %v11 = vpop.permute.xlu0 %10
    %vm12 = vcmask 7168
    %s13 = scalar_lea.vmem %s1, 1
    %14 = vst.msk [vmem:[%s13] ss:$16 sm:$0x3] %vm12, %v11
    %v15 = vld [vmem:[#allocation0] sm:$0x3]
    %16 = vrot.lane.b32.xlu0 %v15, 126
    %v17 = vpop.permute.xlu0 %16
    %vm18 = vcmask 7168
    %s19 = scalar_lea.vmem %s1, 2
    %20 = vst.msk [vmem:[%s19] ss:$16 sm:$0x3] %vm18, %v17
    %v21 = vld [vmem:[#allocation0] sm:$0x3]
    %22 = vrot.lane.b32.xlu0 %v21, 125
    %v23 = vpop.permute.xlu0 %22
    %vm24 = vcmask 7168
    %s25 = scalar_lea.vmem %s1, 3
    %26 = vst.msk [vmem:[%s25] ss:$16 sm:$0x3] %vm24, %v23
    %v27 = vld [vmem:[#allocation0] sm:$0x3]
    %28 = vrot.lane.b32.xlu0 %v27, 124
    %v29 = vpop.permute.xlu0 %28
    %vm30 = vcmask 7168
    %s31 = scalar_lea.vmem %s1, 4
    %32 = vst.msk [vmem:[%s31] ss:$16 sm:$0x3] %vm30, %v29
    %v33 = vld [vmem:[#allocation0] sm:$0x3]
    %34 = vrot.lane.b32.xlu0 %v33, 123
    %v35 = vpop.permute.xlu0 %34
    %vm36 = vcmask 7168
    %s37 = scalar_lea.vmem %s1, 5
    %38 = vst.msk [vmem:[%s37] ss:$16 sm:$0x3] %vm36, %v35
    %v39 = vld [vmem:[#allocation0] sm:$0x3]
    %40 = vrot.lane.b32.xlu0 %v39, 122
    %v41 = vpop.permute.xlu0 %40
    %vm42 = vcmask 7168
    %s43 = scalar_lea.vmem %s1, 6
    %44 = vst.msk [vmem:[%s43] ss:$16 sm:$0x3] %vm42, %v41
    %v45 = vld [vmem:[#allocation0] sm:$0x3]
    %46 = vrot.lane.b32.xlu0 %v45, 121
    %v47 = vpop.permute.xlu0 %46
    %vm48 = vcmask 7168
    %s49 = scalar_lea.vmem %s1, 7
    %50 = vst.msk [vmem:[%s49] ss:$16 sm:$0x3] %vm48, %v47
    %v51 = vld [vmem:[#allocation0] sm:$0x3]
    %52 = vrot.lane.b32.xlu0 %v51, 120
    %v53 = vpop.permute.xlu0 %52
    %vm54 = vcmask 7168
    %s55 = scalar_lea.vmem %s1, 8
    %56 = vst.msk [vmem:[%s55] ss:$16 sm:$0x3] %vm54, %v53
    %v57 = vld [vmem:[#allocation0] sm:$0x3]
    %58 = vrot.lane.b32.xlu0 %v57, 119
    %v59 = vpop.permute.xlu0 %58
    %vm60 = vcmask 7168
    %s61 = scalar_lea.vmem %s1, 9
    %62 = vst.msk [vmem:[%s61] ss:$16 sm:$0x3] %vm60, %v59
    %v63 = vld [vmem:[#allocation0] sm:$0x3]
    %64 = vrot.lane.b32.xlu0 %v63, 118
    %v65 = vpop.permute.xlu0 %64
    %vm66 = vcmask 7168
    %s67 = scalar_lea.vmem %s1, 10
    %68 = vst.msk [vmem:[%s67] ss:$16 sm:$0x3] %vm66, %v65
    %v69 = vld [vmem:[#allocation0] sm:$0x3]
    %70 = vrot.lane.b32.xlu0 %v69, 117
    %v71 = vpop.permute.xlu0 %70
    %vm72 = vcmask 7168
    %s73 = scalar_lea.vmem %s1, 11
    %74 = vst.msk [vmem:[%s73] ss:$16 sm:$0x3] %vm72, %v71
    %v75 = vld [vmem:[#allocation0] sm:$0x3]
    %76 = vrot.lane.b32.xlu0 %v75, 116
    %v77 = vpop.permute.xlu0 %76
    %vm78 = vcmask 7168
    %s79 = scalar_lea.vmem %s1, 12
    %80 = vst.msk [vmem:[%s79] ss:$16 sm:$0x3] %vm78, %v77
    %v81 = vld [vmem:[#allocation0] sm:$0x3]
    %82 = vrot.lane.b32.xlu0 %v81, 115
    %v83 = vpop.permute.xlu0 %82
    %vm84 = vcmask 7168
    %s85 = scalar_lea.vmem %s1, 13
    %86 = vst.msk [vmem:[%s85] ss:$16 sm:$0x3] %vm84, %v83
    %v87 = vld [vmem:[#allocation0] sm:$0x3]
    %88 = vrot.lane.b32.xlu0 %v87, 114
    %v89 = vpop.permute.xlu0 %88
    %vm90 = vcmask 7168
    %s91 = scalar_lea.vmem %s1, 14
    %92 = vst.msk [vmem:[%s91] ss:$16 sm:$0x3] %vm90, %v89
    %v93 = vld [vmem:[#allocation0] sm:$0x3]
    %94 = vrot.lane.b32.xlu0 %v93, 113
    %v95 = vpop.permute.xlu0 %94
    %vm96 = vcmask 7168
    %s97 = scalar_lea.vmem %s1, 15
    %98 = vst.msk [vmem:[%s97] ss:$16 sm:$0x3] %vm96, %v95

// kernel: _rnn1_forward_impl.3
$region0: #{_rnn1_forward_impl.3}
  #allocation0 [shape = 'u32[]', space=smem, size = 0x4, offset = 0x4, fixed_abs, tag = 'smem constant byte address 0x4 - core index']
  #allocation1 [shape = 'u32[144,128]{1,0:T(1,128)}', space=vmem, size = 0x12000, scoped, tag = 'internal scratch']
  #allocation2 [shape = 'f32[1,1]{1,0:T(1,128)S(1)}', space=vmem, size = 0x200, scoped, tag = 'scoped memory for _rnn1_forward_impl.3']
  %s0 = inlined_call_operand.vmem [shape: f32[2,16,64], index: 0, kind: input, shape index: {}]
  %s1 = inlined_call_operand.vmem [shape: f32[2,16,64], index: 1, kind: input, shape index: {}]
  %s2 = inlined_call_operand.vmem [shape: f32[3,16,64], index: 2, kind: input, shape index: {}]
  %s3 = inlined_call_operand.vmem [shape: f32[3,1,64], index: 3, kind: input, shape index: {}]
  %s4 = inlined_call_operand.vmem [shape: f32[16,32], index: 4, kind: input, shape index: {}]
  %s5 = inlined_call_operand.vmem [shape: f32[1,32], index: 5, kind: input, shape index: {}]
  %s6 = inlined_call_operand.vmem [shape: f32[32,1], index: 6, kind: input, shape index: {}]
  %s7 = inlined_call_operand.<no memory space> [shape: f32[1,1], index: 7, kind: input, shape index: {}]
  %s8 = inlined_call_operand.vmem [shape: f32[2,1], index: 8, kind: output, shape index: {0}]
  %s9 = inlined_call_operand.hbm [shape: f32[3,16,16], index: 9, kind: output, shape index: {1}]
  %s10 = inlined_call_operand.hbm [shape: f32[3,16,16], index: 10, kind: output, shape index: {2}]
  %11 = xla_tuple %s8, %s9, %s10
  %s12 = sld [smem:[#allocation0]]
  $region65: #{_rnn1_forward_impl.3} parent=0
    _
  %s14 = ssub.s32 1, %s12
  %s15 = scalar_select 0, %s14, %s12
  %v16 = vstv %s7
  %17 = vst [vmem:[#allocation2] sm:$0x1] %v16
  $region1: #{_rnn1_forward_impl.3} parent=0
    #allocation3 [shape = 'u8[24576]{0}', space=vmem, size = 0x6000, scoped, tag = 'output window, operand 1, single buffered']
    #allocation4 [shape = 's32[1]{0}', space=sflag, size = 0x4, scoped, tag = 'scoped memory for _rnn1_forward_impl.3']
    #allocation5 [shape = 'u8[24576]{0}', space=vmem, size = 0x6000, scoped, tag = 'output window, operand 2, single buffered']
    #allocation6 [shape = 's32[1]{0}', space=sflag, size = 0x4, scoped, tag = 'scoped memory for _rnn1_forward_impl.3']
    %18 = vsyncpa [#allocation4], 0
    %19 = vsyncpa [#allocation6], 0
    // Predicated region
    $region2: #{_rnn1_forward_impl.3} parent=1 // pred_check
      _
    $region3: #{_rnn1_forward_impl.3} parent=1 // pred_check_branch
      %21 = sbr.rel (0) target = $region5
    $region4: #{_rnn1_forward_impl.3} parent=1 // pred_region
      _
    $region5: #{_rnn1_forward_impl.3} parent=1 // pred_fallthru
      _
    // Predicated region
    $region6: #{_rnn1_forward_impl.3} parent=1 // pred_check
      _
    $region7: #{_rnn1_forward_impl.3} parent=1 // pred_check_branch
      %23 = sbr.rel (0) target = $region9
    $region8: #{_rnn1_forward_impl.3} parent=1 // pred_region
      _
    $region9: #{_rnn1_forward_impl.3} parent=1 // pred_fallthru
      _
    // Predicated region
    $region10: #{_rnn1_forward_impl.3} parent=1 // pred_check
      _
    $region11: #{_rnn1_forward_impl.3} parent=1 // pred_check_branch
      %25 = sbr.rel (0) target = $region13
    $region12: #{_rnn1_forward_impl.3} parent=1 // pred_region
      _
    $region13: #{_rnn1_forward_impl.3} parent=1 // pred_fallthru
      _
    // Predicated region
    $region14: #{_rnn1_forward_impl.3} parent=1 // pred_check
      _
    $region15: #{_rnn1_forward_impl.3} parent=1 // pred_check_branch
      %27 = sbr.rel (0) target = $region17
    $region16: #{_rnn1_forward_impl.3} parent=1 // pred_region
      _
    $region17: #{_rnn1_forward_impl.3} parent=1 // pred_fallthru
      _
    // Predicated region
    $region18: #{_rnn1_forward_impl.3} parent=1 // pred_check
      _
    $region19: #{_rnn1_forward_impl.3} parent=1 // pred_check_branch
      %29 = sbr.rel (0) target = $region21
    $region20: #{_rnn1_forward_impl.3} parent=1 // pred_region
      _
    $region21: #{_rnn1_forward_impl.3} parent=1 // pred_fallthru
      _
    // Predicated region
    $region22: #{_rnn1_forward_impl.3} parent=1 // pred_check
      _
    $region23: #{_rnn1_forward_impl.3} parent=1 // pred_check_branch
      %31 = sbr.rel (0) target = $region25
    $region24: #{_rnn1_forward_impl.3} parent=1 // pred_region
      _
    $region25: #{_rnn1_forward_impl.3} parent=1 // pred_fallthru
      _
    // Predicated region
    $region26: #{_rnn1_forward_impl.3} parent=1 // pred_check
      _
    $region27: #{_rnn1_forward_impl.3} parent=1 // pred_check_branch
      %33 = sbr.rel (0) target = $region29
    $region28: #{_rnn1_forward_impl.3} parent=1 // pred_region
      _
    $region29: #{_rnn1_forward_impl.3} parent=1 // pred_fallthru
      _
    // Predicated region
    $region30: #{_rnn1_forward_impl.3} parent=1 // pred_check
      _
    $region31: #{_rnn1_forward_impl.3} parent=1 // pred_check_branch
      %35 = sbr.rel (0) target = $region33
    $region32: #{_rnn1_forward_impl.3} parent=1 // pred_region
      _
    $region33: #{_rnn1_forward_impl.3} parent=1 // pred_fallthru
      _
    %v36 = vlaneseq
    %v37 = vshrl.u32 %v36, 7
    loop: start=0, step=1, limit=2
    $region34: #{_rnn1_forward_impl.3} parent=1 // loop_pre_header
      _
    $region35: #{_rnn1_forward_impl.3} parent=1 // loop_header
      %s39 = sphi 0, %s43
      %p40 = scmp.ge.s32.totalorder %s39, 2
      %v44 = vphi 0.0, %v206
      %v45 = vphi 0.0, %v207
      %v46 = vphi 0.0, %v194
      %v47 = vphi 0.0, %v195
      %v48 = vphi 0.0, %v439
      %v49 = vphi 0.0, %v440
      %v50 = vphi 0.0, %v427
      %v51 = vphi 0.0, %v428
      %v52 = vphi 0.0, %v673
      %v53 = vphi 0.0, %v674
      %v54 = vphi 0.0, %v661
      %v55 = vphi 0.0, %v662
      %v56 = vphi 0.0, %v681
    $region36: #{_rnn1_forward_impl.3} parent=1 // loop_header_branch
      %42 = sbr.rel (%p40) target = $region40
    $region37: #{_rnn1_forward_impl.3} parent=1 // loop_body
      %s57 = smul.u32 %s39, 16
      %s58 = scalar_lea.vmem %s0, %s57
      %v59 = vld [vmem:[%s58] sm:$0xff]
      %v60 = vld [vmem:[%s58 + $0x8] sm:$0xff]
      %v61 = vld [vmem:[%s2] sm:$0xff]
      %v62 = vld [vmem:[%s2 + $0x8] sm:$0xff]
      %65 = vrot.lane.b32.xlu0 %v44, 80
      %v66 = vpop.permute.xlu0 %65
      %67 = vrot.lane.b32.xlu0 %v45, 80
      %v68 = vpop.permute.xlu0 %67
      %vm69 = vcmask 130048
      %v70 = vsel %vm69, %v66, 0
      %v72 = vsel %vm69, %v68, 0
      %74 = vmatprep.subr.mxu0 0.0
      %75 = vmatpush1.msra.mxu0 %v61
      %76 = vmatprep.subr.mxu0 0.0
      %77 = vmatpush1.msra.mxu0 %v62
      %78 = vmatprep.subr.mxu0 0.0
      %79 = vmatpush1.msra.mxu0 0.0
      %80 = vmatprep.subr.mxu0 0.0
      %81 = vmatpush1.msra.mxu0 0.0
      %82 = vmatprep.subr.mxu0 0.0
      %83 = vmatpush1.msra.mxu0 0.0
      %84 = vmatprep.subr.mxu0 0.0
      %85 = vmatpush1.msra.mxu0 0.0
      %86 = vmatprep.subr.mxu0 0.0
      %87 = vmatpush1.msra.mxu0 0.0
      %88 = vmatprep.subr.mxu0 0.0
      %89 = vmatpush1.msra.mxu0 0.0
      %90 = vmatprep.subr.mxu0 0.0
      %91 = vmatpush1.msra.mxu0 0.0
      %92 = vmatprep.subr.mxu0 0.0
      %93 = vmatpush1.msra.mxu0 0.0
      %94 = vmatprep.subr.mxu0 0.0
      %95 = vmatpush1.msra.mxu0 0.0
      %96 = vmatprep.subr.mxu0 0.0
      %97 = vmatpush1.msra.mxu0 0.0
      %98 = vmatprep.subr.mxu0 0.0
      %99 = vmatpush1.msra.mxu0 0.0
      %100 = vmatprep.subr.mxu0 0.0
      %101 = vmatpush1.msra.mxu0 0.0
      %102 = vmatprep.subr.mxu0 0.0
      %103 = vmatpush1.msra.mxu0 0.0
      %104 = vmatprep.subr.mxu0 0.0
      %105 = vmatpush1.msra.mxu0 0.0
      %106 = vmatprep.subr.mxu0 0.0
      %107 = vmatpush1.msra.mxu0 0.0
      %108 = vmatprep.subr.mxu0 0.0
      %109 = vmatpush1.msra.mxu0 0.0
      %110 = vmatprep.subr.mxu0 0.0
      %111 = vmatpush1.msra.mxu0 0.0
      %112 = vmatprep.subr.mxu0 0.0
      %113 = vmatpush1.msra.mxu0 0.0
      %114 = vmatprep.subr.mxu0 0.0
      %115 = vmatpush1.msra.mxu0 0.0
      %116 = vmatprep.subr.mxu0 0.0
      %117 = vmatpush1.msra.mxu0 0.0
      %118 = vmatprep.subr.mxu0 0.0
      %119 = vmatpush1.msra.mxu0 0.0
      %120 = vmatprep.subr.mxu0 0.0
      %121 = vmatpush1.msra.mxu0 0.0
      %122 = vmatprep.subr.mxu0 0.0
      %123 = vmatpush1.msra.mxu0 0.0
      %124 = vmatprep.subr.mxu0 0.0
      %125 = vmatpush1.msra.mxu0 0.0
      %126 = vmatprep.subr.mxu0 0.0
      %127 = vmatpush1.msra.mxu0 0.0
      %128 = vmatprep.subr.mxu0 0.0
      %129 = vmatpush1.msra.mxu0 0.0
      %130 = vmatprep.subr.mxu0 0.0
      %131 = vmatpush1.msra.mxu0 0.0
      %132 = vmatprep.subr.mxu0 0.0
      %133 = vmatpush1.msra.mxu0 0.0
      %134 = vmatprep.subr.mxu0 0.0
      %135 = vmatpush1.msra.mxu0 0.0
      %136 = vmatprep.subr.mxu0 0.0
      %137 = vmatpush1.msra.mxu0 0.0
      %138 = vmatprep.mubr.f32.mxu0 0.0
      %139 = vmatmul.mubr.f32.gmra.mrb[0].mxu0 %v70
      %v140 = vpop.f32.mrb[0].mxu0
      %v141 = vadd.f32 0.0, %v140
      %v142 = vpop.f32.mrb[0].mxu0
      %143 = vmatprep.mubr.f32.mxu0 0.0
      %144 = vmatmul.mubr.f32.gmra.mrb[0].mxu0 %v72
      %v145 = vpop.f32.mrb[0].mxu0
      %v146 = vadd.f32 0.0, %v145
      %v147 = vpop.f32.mrb[0].mxu0
      %148 = vdwg.mxu0
      %v149 = vadd.f32 %v59, %v141
      %v150 = vadd.f32 %v60, %v146
      %v151 = vld [vmem:[%s3] sm:$0x1]
      %v153 = vlaneseq
      %v154 = vshrl.u32 %v153, 7
      %v155 = vsub.s32 0, %v154
      %v156 = vrot.slane %v151, %v155
      %v158 = vadd.f32 %v149, %v156
      %v159 = vadd.f32 %v150, %v156
      %v160 = vxor.u32 %v158, 2147483648
      %v161 = vxor.u32 %v159, 2147483648
      %v162 = vmul.f32 %v160, 1.442695
      %v163 = vpow.pop %v162
      %v164 = vmul.f32 %v161, 1.442695
      %v165 = vpow.pop %v164
      %v166 = vadd.f32 %v163, 1.0
      %v167 = vadd.f32 %v165, 1.0
      %v168 = vrcp.pop %v166
      %v169 = vmul.f32 1.0, %v168
      %v170 = vrcp.pop %v167
      %v171 = vmul.f32 1.0, %v170
      %v172 = vtanh.pop %v158
      %v173 = vtanh.pop %v159
      %v174 = vmul.f32 %v169, %v46
      %v175 = vmul.f32 %v171, %v47
      %178 = vrot.lane.b32.xlu0 %v172, 96
      %v179 = vpop.permute.xlu0 %178
      %180 = vrot.lane.b32.xlu0 %v173, 96
      %v181 = vpop.permute.xlu0 %180
      %v184 = vmul.f32 %v169, %v179
      %v185 = vmul.f32 %v171, %v181
      %188 = vrot.lane.b32.xlu0 %v184, 16
      %v189 = vpop.permute.xlu0 %188
      %190 = vrot.lane.b32.xlu0 %v185, 16
      %v191 = vpop.permute.xlu0 %190
      %v194 = vadd.f32 %v174, %v189
      %v195 = vadd.f32 %v175, %v191
      %v196 = vtanh.pop %v194
      %v197 = vtanh.pop %v195
      %200 = vrot.lane.b32.xlu0 %v196, 32
      %v201 = vpop.permute.xlu0 %200
      %202 = vrot.lane.b32.xlu0 %v197, 32
      %v203 = vpop.permute.xlu0 %202
      %v206 = vmul.f32 %v169, %v201
      %v207 = vmul.f32 %v171, %v203
      %v208 = vld [vmem:[%s1] sm:$0xff]
      %v209 = vld [vmem:[%s1 + $0x8] sm:$0xff]
      %s210 = scalar_lea.vmem %s2, 16
      %v211 = vld [vmem:[%s210] sm:$0xff]
      %v212 = vld [vmem:[%s210 + $0x8] sm:$0xff]
      %215 = vrot.lane.b32.xlu0 %v48, 80
      %v216 = vpop.permute.xlu0 %215
      %217 = vrot.lane.b32.xlu0 %v49, 80
      %v218 = vpop.permute.xlu0 %217
      %v219 = vsel %vm69, %v216, 0
      %v221 = vsel %vm69, %v218, 0
      %223 = vmatprep.subr.mxu0 0.0
      %224 = vmatpush1.msra.mxu0 %v211
      %225 = vmatprep.subr.mxu0 0.0
      %226 = vmatpush1.msra.mxu0 %v212
      %227 = vmatprep.subr.mxu0 0.0
      %228 = vmatpush1.msra.mxu0 0.0
      %229 = vmatprep.subr.mxu0 0.0
      %230 = vmatpush1.msra.mxu0 0.0
      %231 = vmatprep.subr.mxu0 0.0
      %232 = vmatpush1.msra.mxu0 0.0
      %233 = vmatprep.subr.mxu0 0.0
      %234 = vmatpush1.msra.mxu0 0.0
      %235 = vmatprep.subr.mxu0 0.0
      %236 = vmatpush1.msra.mxu0 0.0
      %237 = vmatprep.subr.mxu0 0.0
      %238 = vmatpush1.msra.mxu0 0.0
      %239 = vmatprep.subr.mxu0 0.0
      %240 = vmatpush1.msra.mxu0 0.0
      %241 = vmatprep.subr.mxu0 0.0
      %242 = vmatpush1.msra.mxu0 0.0
      %243 = vmatprep.subr.mxu0 0.0
      %244 = vmatpush1.msra.mxu0 0.0
      %245 = vmatprep.subr.mxu0 0.0
      %246 = vmatpush1.msra.mxu0 0.0
      %247 = vmatprep.subr.mxu0 0.0
      %248 = vmatpush1.msra.mxu0 0.0
      %249 = vmatprep.subr.mxu0 0.0
      %250 = vmatpush1.msra.mxu0 0.0
      %251 = vmatprep.subr.mxu0 0.0
      %252 = vmatpush1.msra.mxu0 0.0
      %253 = vmatprep.subr.mxu0 0.0
      %254 = vmatpush1.msra.mxu0 0.0
      %255 = vmatprep.subr.mxu0 0.0
      %256 = vmatpush1.msra.mxu0 0.0
      %257 = vmatprep.subr.mxu0 0.0
      %258 = vmatpush1.msra.mxu0 0.0
      %259 = vmatprep.subr.mxu0 0.0
      %260 = vmatpush1.msra.mxu0 0.0
      %261 = vmatprep.subr.mxu0 0.0
      %262 = vmatpush1.msra.mxu0 0.0
      %263 = vmatprep.subr.mxu0 0.0
      %264 = vmatpush1.msra.mxu0 0.0
      %265 = vmatprep.subr.mxu0 0.0
      %266 = vmatpush1.msra.mxu0 0.0
      %267 = vmatprep.subr.mxu0 0.0
      %268 = vmatpush1.msra.mxu0 0.0
      %269 = vmatprep.subr.mxu0 0.0
      %270 = vmatpush1.msra.mxu0 0.0
      %271 = vmatprep.subr.mxu0 0.0
      %272 = vmatpush1.msra.mxu0 0.0
      %273 = vmatprep.subr.mxu0 0.0
      %274 = vmatpush1.msra.mxu0 0.0
      %275 = vmatprep.subr.mxu0 0.0
      %276 = vmatpush1.msra.mxu0 0.0
      %277 = vmatprep.subr.mxu0 0.0
      %278 = vmatpush1.msra.mxu0 0.0
      %279 = vmatprep.subr.mxu0 0.0
      %280 = vmatpush1.msra.mxu0 0.0
      %281 = vmatprep.subr.mxu0 0.0
      %282 = vmatpush1.msra.mxu0 0.0
      %283 = vmatprep.subr.mxu0 0.0
      %284 = vmatpush1.msra.mxu0 0.0
      %285 = vmatprep.subr.mxu0 0.0
      %286 = vmatpush1.msra.mxu0 0.0
      %287 = vmatprep.mubr.f32.mxu0 0.0
      %288 = vmatmul.mubr.f32.gmra.mrb[0].mxu0 %v219
      %v289 = vpop.f32.mrb[0].mxu0
      %v290 = vadd.f32 0.0, %v289
      %v291 = vpop.f32.mrb[0].mxu0
      %292 = vmatprep.mubr.f32.mxu0 0.0
      %293 = vmatmul.mubr.f32.gmra.mrb[0].mxu0 %v221
      %v294 = vpop.f32.mrb[0].mxu0
      %v295 = vadd.f32 0.0, %v294
      %v296 = vpop.f32.mrb[0].mxu0
      %297 = vdwg.mxu0
      %300 = vrot.lane.b32.xlu0 %v206, 80
      %v301 = vpop.permute.xlu0 %300
      %302 = vrot.lane.b32.xlu0 %v207, 80
      %v303 = vpop.permute.xlu0 %302
      %v304 = vsel %vm69, %v301, 0
      %v306 = vsel %vm69, %v303, 0
      %308 = vmatprep.subr.mxu0 0.0
      %309 = vmatpush1.msra.mxu0 %v208
      %310 = vmatprep.subr.mxu0 0.0
      %311 = vmatpush1.msra.mxu0 %v209
      %312 = vmatprep.subr.mxu0 0.0
      %313 = vmatpush1.msra.mxu0 0.0
      %314 = vmatprep.subr.mxu0 0.0
      %315 = vmatpush1.msra.mxu0 0.0
      %316 = vmatprep.subr.mxu0 0.0
      %317 = vmatpush1.msra.mxu0 0.0
      %318 = vmatprep.subr.mxu0 0.0
      %319 = vmatpush1.msra.mxu0 0.0
      %320 = vmatprep.subr.mxu0 0.0
      %321 = vmatpush1.msra.mxu0 0.0
      %322 = vmatprep.subr.mxu0 0.0
      %323 = vmatpush1.msra.mxu0 0.0
      %324 = vmatprep.subr.mxu0 0.0
      %325 = vmatpush1.msra.mxu0 0.0
      %326 = vmatprep.subr.mxu0 0.0
      %327 = vmatpush1.msra.mxu0 0.0
      %328 = vmatprep.subr.mxu0 0.0
      %329 = vmatpush1.msra.mxu0 0.0
      %330 = vmatprep.subr.mxu0 0.0
      %331 = vmatpush1.msra.mxu0 0.0
      %332 = vmatprep.subr.mxu0 0.0
      %333 = vmatpush1.msra.mxu0 0.0
      %334 = vmatprep.subr.mxu0 0.0
      %335 = vmatpush1.msra.mxu0 0.0
      %336 = vmatprep.subr.mxu0 0.0
      %337 = vmatpush1.msra.mxu0 0.0
      %338 = vmatprep.subr.mxu0 0.0
      %339 = vmatpush1.msra.mxu0 0.0
      %340 = vmatprep.subr.mxu0 0.0
      %341 = vmatpush1.msra.mxu0 0.0
      %342 = vmatprep.subr.mxu0 0.0
      %343 = vmatpush1.msra.mxu0 0.0
      %344 = vmatprep.subr.mxu0 0.0
      %345 = vmatpush1.msra.mxu0 0.0
      %346 = vmatprep.subr.mxu0 0.0
      %347 = vmatpush1.msra.mxu0 0.0
      %348 = vmatprep.subr.mxu0 0.0
      %349 = vmatpush1.msra.mxu0 0.0
      %350 = vmatprep.subr.mxu0 0.0
      %351 = vmatpush1.msra.mxu0 0.0
      %352 = vmatprep.subr.mxu0 0.0
      %353 = vmatpush1.msra.mxu0 0.0
      %354 = vmatprep.subr.mxu0 0.0
      %355 = vmatpush1.msra.mxu0 0.0
      %356 = vmatprep.subr.mxu0 0.0
      %357 = vmatpush1.msra.mxu0 0.0
      %358 = vmatprep.subr.mxu0 0.0
      %359 = vmatpush1.msra.mxu0 0.0
      %360 = vmatprep.subr.mxu0 0.0
      %361 = vmatpush1.msra.mxu0 0.0
      %362 = vmatprep.subr.mxu0 0.0
      %363 = vmatpush1.msra.mxu0 0.0
      %364 = vmatprep.subr.mxu0 0.0
      %365 = vmatpush1.msra.mxu0 0.0
      %366 = vmatprep.subr.mxu0 0.0
      %367 = vmatpush1.msra.mxu0 0.0
      %368 = vmatprep.subr.mxu0 0.0
      %369 = vmatpush1.msra.mxu0 0.0
      %370 = vmatprep.subr.mxu0 0.0
      %371 = vmatpush1.msra.mxu0 0.0
      %372 = vmatprep.mubr.f32.mxu0 0.0
      %373 = vmatmul.mubr.f32.gmra.mrb[0].mxu0 %v304
      %v374 = vpop.f32.mrb[0].mxu0
      %v375 = vadd.f32 %v290, %v374
      %v376 = vpop.f32.mrb[0].mxu0
      %377 = vmatprep.mubr.f32.mxu0 0.0
      %378 = vmatmul.mubr.f32.gmra.mrb[0].mxu0 %v306
      %v379 = vpop.f32.mrb[0].mxu0
      %v380 = vadd.f32 %v295, %v379
      %v381 = vpop.f32.mrb[0].mxu0
      %382 = vdwg.mxu0
      %s383 = scalar_lea.vmem %s3, 1
      %v384 = vld [vmem:[%s383] sm:$0x1]
      %v386 = vlaneseq
      %v387 = vshrl.u32 %v386, 7
      %v388 = vsub.s32 0, %v387
      %v389 = vrot.slane %v384, %v388
      %v391 = vadd.f32 %v375, %v389
      %v392 = vadd.f32 %v380, %v389
      %v393 = vxor.u32 %v391, 2147483648
      %v394 = vxor.u32 %v392, 2147483648
      %v395 = vmul.f32 %v393, 1.442695
      %v396 = vpow.pop %v395
      %v397 = vmul.f32 %v394, 1.442695
      %v398 = vpow.pop %v397
      %v399 = vadd.f32 %v396, 1.0
      %v400 = vadd.f32 %v398, 1.0
      %v401 = vrcp.pop %v399
      %v402 = vmul.f32 1.0, %v401
      %v403 = vrcp.pop %v400
      %v404 = vmul.f32 1.0, %v403
      %v405 = vtanh.pop %v391
      %v406 = vtanh.pop %v392
      %v407 = vmul.f32 %v402, %v50
      %v408 = vmul.f32 %v404, %v51
      %411 = vrot.lane.b32.xlu0 %v405, 96
      %v412 = vpop.permute.xlu0 %411
      %413 = vrot.lane.b32.xlu0 %v406, 96
      %v414 = vpop.permute.xlu0 %413
      %v417 = vmul.f32 %v402, %v412
      %v418 = vmul.f32 %v404, %v414
      %421 = vrot.lane.b32.xlu0 %v417, 16
      %v422 = vpop.permute.xlu0 %421
      %423 = vrot.lane.b32.xlu0 %v418, 16
      %v424 = vpop.permute.xlu0 %423
      %v427 = vadd.f32 %v407, %v422
      %v428 = vadd.f32 %v408, %v424
      %v429 = vtanh.pop %v427
      %v430 = vtanh.pop %v428
      %433 = vrot.lane.b32.xlu0 %v429, 32
      %v434 = vpop.permute.xlu0 %433
      %435 = vrot.lane.b32.xlu0 %v430, 32
      %v436 = vpop.permute.xlu0 %435
      %v439 = vmul.f32 %v402, %v434
      %v440 = vmul.f32 %v404, %v436
      %s441 = scalar_lea.vmem %s1, 16
      %v442 = vld [vmem:[%s441] sm:$0xff]
      %v443 = vld [vmem:[%s441 + $0x8] sm:$0xff]
      %s444 = scalar_lea.vmem %s2, 32
      %v445 = vld [vmem:[%s444] sm:$0xff]
      %v446 = vld [vmem:[%s444 + $0x8] sm:$0xff]
      %449 = vrot.lane.b32.xlu0 %v52, 80
      %v450 = vpop.permute.xlu0 %449
      %451 = vrot.lane.b32.xlu0 %v53, 80
      %v452 = vpop.permute.xlu0 %451
      %v453 = vsel %vm69, %v450, 0
      %v455 = vsel %vm69, %v452, 0
      %457 = vmatprep.subr.mxu0 0.0
      %458 = vmatpush1.msra.mxu0 %v445
      %459 = vmatprep.subr.mxu0 0.0
      %460 = vmatpush1.msra.mxu0 %v446
      %461 = vmatprep.subr.mxu0 0.0
      %462 = vmatpush1.msra.mxu0 0.0
      %463 = vmatprep.subr.mxu0 0.0
      %464 = vmatpush1.msra.mxu0 0.0
      %465 = vmatprep.subr.mxu0 0.0
      %466 = vmatpush1.msra.mxu0 0.0
      %467 = vmatprep.subr.mxu0 0.0
      %468 = vmatpush1.msra.mxu0 0.0
      %469 = vmatprep.subr.mxu0 0.0
      %470 = vmatpush1.msra.mxu0 0.0
      %471 = vmatprep.subr.mxu0 0.0
      %472 = vmatpush1.msra.mxu0 0.0
      %473 = vmatprep.subr.mxu0 0.0
      %474 = vmatpush1.msra.mxu0 0.0
      %475 = vmatprep.subr.mxu0 0.0
      %476 = vmatpush1.msra.mxu0 0.0
      %477 = vmatprep.subr.mxu0 0.0
      %478 = vmatpush1.msra.mxu0 0.0
      %479 = vmatprep.subr.mxu0 0.0
      %480 = vmatpush1.msra.mxu0 0.0
      %481 = vmatprep.subr.mxu0 0.0
      %482 = vmatpush1.msra.mxu0 0.0
      %483 = vmatprep.subr.mxu0 0.0
      %484 = vmatpush1.msra.mxu0 0.0
      %485 = vmatprep.subr.mxu0 0.0
      %486 = vmatpush1.msra.mxu0 0.0
      %487 = vmatprep.subr.mxu0 0.0
      %488 = vmatpush1.msra.mxu0 0.0
      %489 = vmatprep.subr.mxu0 0.0
      %490 = vmatpush1.msra.mxu0 0.0
      %491 = vmatprep.subr.mxu0 0.0
      %492 = vmatpush1.msra.mxu0 0.0
      %493 = vmatprep.subr.mxu0 0.0
      %494 = vmatpush1.msra.mxu0 0.0
      %495 = vmatprep.subr.mxu0 0.0
      %496 = vmatpush1.msra.mxu0 0.0
      %497 = vmatprep.subr.mxu0 0.0
      %498 = vmatpush1.msra.mxu0 0.0
      %499 = vmatprep.subr.mxu0 0.0
      %500 = vmatpush1.msra.mxu0 0.0
      %501 = vmatprep.subr.mxu0 0.0
      %502 = vmatpush1.msra.mxu0 0.0
      %503 = vmatprep.subr.mxu0 0.0
      %504 = vmatpush1.msra.mxu0 0.0
      %505 = vmatprep.subr.mxu0 0.0
      %506 = vmatpush1.msra.mxu0 0.0
      %507 = vmatprep.subr.mxu0 0.0
      %508 = vmatpush1.msra.mxu0 0.0
      %509 = vmatprep.subr.mxu0 0.0
      %510 = vmatpush1.msra.mxu0 0.0
      %511 = vmatprep.subr.mxu0 0.0
      %512 = vmatpush1.msra.mxu0 0.0
      %513 = vmatprep.subr.mxu0 0.0
      %514 = vmatpush1.msra.mxu0 0.0
      %515 = vmatprep.subr.mxu0 0.0
      %516 = vmatpush1.msra.mxu0 0.0
      %517 = vmatprep.subr.mxu0 0.0
      %518 = vmatpush1.msra.mxu0 0.0
      %519 = vmatprep.subr.mxu0 0.0
      %520 = vmatpush1.msra.mxu0 0.0
      %521 = vmatprep.mubr.f32.mxu0 0.0
      %522 = vmatmul.mubr.f32.gmra.mrb[0].mxu0 %v453
      %v523 = vpop.f32.mrb[0].mxu0
      %v524 = vadd.f32 0.0, %v523
      %v525 = vpop.f32.mrb[0].mxu0
      %526 = vmatprep.mubr.f32.mxu0 0.0
      %527 = vmatmul.mubr.f32.gmra.mrb[0].mxu0 %v455
      %v528 = vpop.f32.mrb[0].mxu0
      %v529 = vadd.f32 0.0, %v528
      %v530 = vpop.f32.mrb[0].mxu0
      %531 = vdwg.mxu0
      %534 = vrot.lane.b32.xlu0 %v439, 80
      %v535 = vpop.permute.xlu0 %534
      %536 = vrot.lane.b32.xlu0 %v440, 80
      %v537 = vpop.permute.xlu0 %536
      %v538 = vsel %vm69, %v535, 0
      %v540 = vsel %vm69, %v537, 0
      %542 = vmatprep.subr.mxu0 0.0
      %543 = vmatpush1.msra.mxu0 %v442
      %544 = vmatprep.subr.mxu0 0.0
      %545 = vmatpush1.msra.mxu0 %v443
      %546 = vmatprep.subr.mxu0 0.0
      %547 = vmatpush1.msra.mxu0 0.0
      %548 = vmatprep.subr.mxu0 0.0
      %549 = vmatpush1.msra.mxu0 0.0
      %550 = vmatprep.subr.mxu0 0.0
      %551 = vmatpush1.msra.mxu0 0.0
      %552 = vmatprep.subr.mxu0 0.0
      %553 = vmatpush1.msra.mxu0 0.0
      %554 = vmatprep.subr.mxu0 0.0
      %555 = vmatpush1.msra.mxu0 0.0
      %556 = vmatprep.subr.mxu0 0.0
      %557 = vmatpush1.msra.mxu0 0.0
      %558 = vmatprep.subr.mxu0 0.0
      %559 = vmatpush1.msra.mxu0 0.0
      %560 = vmatprep.subr.mxu0 0.0
      %561 = vmatpush1.msra.mxu0 0.0
      %562 = vmatprep.subr.mxu0 0.0
      %563 = vmatpush1.msra.mxu0 0.0
      %564 = vmatprep.subr.mxu0 0.0
      %565 = vmatpush1.msra.mxu0 0.0
      %566 = vmatprep.subr.mxu0 0.0
      %567 = vmatpush1.msra.mxu0 0.0
      %568 = vmatprep.subr.mxu0 0.0
      %569 = vmatpush1.msra.mxu0 0.0
      %570 = vmatprep.subr.mxu0 0.0
      %571 = vmatpush1.msra.mxu0 0.0
      %572 = vmatprep.subr.mxu0 0.0
      %573 = vmatpush1.msra.mxu0 0.0
      %574 = vmatprep.subr.mxu0 0.0
      %575 = vmatpush1.msra.mxu0 0.0
      %576 = vmatprep.subr.mxu0 0.0
      %577 = vmatpush1.msra.mxu0 0.0
      %578 = vmatprep.subr.mxu0 0.0
      %579 = vmatpush1.msra.mxu0 0.0
      %580 = vmatprep.subr.mxu0 0.0
      %581 = vmatpush1.msra.mxu0 0.0
      %582 = vmatprep.subr.mxu0 0.0
      %583 = vmatpush1.msra.mxu0 0.0
      %584 = vmatprep.subr.mxu0 0.0
      %585 = vmatpush1.msra.mxu0 0.0
      %586 = vmatprep.subr.mxu0 0.0
      %587 = vmatpush1.msra.mxu0 0.0
      %588 = vmatprep.subr.mxu0 0.0
      %589 = vmatpush1.msra.mxu0 0.0
      %590 = vmatprep.subr.mxu0 0.0
      %591 = vmatpush1.msra.mxu0 0.0
      %592 = vmatprep.subr.mxu0 0.0
      %593 = vmatpush1.msra.mxu0 0.0
      %594 = vmatprep.subr.mxu0 0.0
      %595 = vmatpush1.msra.mxu0 0.0
      %596 = vmatprep.subr.mxu0 0.0
      %597 = vmatpush1.msra.mxu0 0.0
      %598 = vmatprep.subr.mxu0 0.0
      %599 = vmatpush1.msra.mxu0 0.0
      %600 = vmatprep.subr.mxu0 0.0
      %601 = vmatpush1.msra.mxu0 0.0
      %602 = vmatprep.subr.mxu0 0.0
      %603 = vmatpush1.msra.mxu0 0.0
      %604 = vmatprep.subr.mxu0 0.0
      %605 = vmatpush1.msra.mxu0 0.0
      %606 = vmatprep.mubr.f32.mxu0 0.0
      %607 = vmatmul.mubr.f32.gmra.mrb[0].mxu0 %v538
      %v608 = vpop.f32.mrb[0].mxu0
      %v609 = vadd.f32 %v524, %v608
      %v610 = vpop.f32.mrb[0].mxu0
      %611 = vmatprep.mubr.f32.mxu0 0.0
      %612 = vmatmul.mubr.f32.gmra.mrb[0].mxu0 %v540
      %v613 = vpop.f32.mrb[0].mxu0
      %v614 = vadd.f32 %v529, %v613
      %v615 = vpop.f32.mrb[0].mxu0
      %616 = vdwg.mxu0
      %s617 = scalar_lea.vmem %s3, 2
      %v618 = vld [vmem:[%s617] sm:$0x1]
      %v620 = vlaneseq
      %v621 = vshrl.u32 %v620, 7
      %v622 = vsub.s32 0, %v621
      %v623 = vrot.slane %v618, %v622
      %v625 = vadd.f32 %v609, %v623
      %v626 = vadd.f32 %v614, %v623
      %v627 = vxor.u32 %v625, 2147483648
      %v628 = vxor.u32 %v626, 2147483648
      %v629 = vmul.f32 %v627, 1.442695
      %v630 = vpow.pop %v629
      %v631 = vmul.f32 %v628, 1.442695
      %v632 = vpow.pop %v631
      %v633 = vadd.f32 %v630, 1.0
      %v634 = vadd.f32 %v632, 1.0
      %v635 = vrcp.pop %v633
      %v636 = vmul.f32 1.0, %v635
      %v637 = vrcp.pop %v634
      %v638 = vmul.f32 1.0, %v637
      %v639 = vtanh.pop %v625
      %v640 = vtanh.pop %v626
      %v641 = vmul.f32 %v636, %v54
      %v642 = vmul.f32 %v638, %v55
      %645 = vrot.lane.b32.xlu0 %v639, 96
      %v646 = vpop.permute.xlu0 %645
      %647 = vrot.lane.b32.xlu0 %v640, 96
      %v648 = vpop.permute.xlu0 %647
      %v651 = vmul.f32 %v636, %v646
      %v652 = vmul.f32 %v638, %v648
      %655 = vrot.lane.b32.xlu0 %v651, 16
      %v656 = vpop.permute.xlu0 %655
      %657 = vrot.lane.b32.xlu0 %v652, 16
      %v658 = vpop.permute.xlu0 %657
      %v661 = vadd.f32 %v641, %v656
      %v662 = vadd.f32 %v642, %v658
      %v663 = vtanh.pop %v661
      %v664 = vtanh.pop %v662
      %667 = vrot.lane.b32.xlu0 %v663, 32
      %v668 = vpop.permute.xlu0 %667
      %669 = vrot.lane.b32.xlu0 %v664, 32
      %v670 = vpop.permute.xlu0 %669
      %v673 = vmul.f32 %v636, %v668
      %v674 = vmul.f32 %v638, %v670
      %v675 = vstv %s39
      %vm676 = vcmp.eq.s32.totalorder %v37, %v675
      %v677 = vlaneseq
      %v678 = vshrl.u32 %v677, 7
      %v679 = vsub.s32 7, %v678
      %v680 = vrot.slane %v674, %v679
      %v681 = vsel %vm676, %v680, %v56
    $region38: #{_rnn1_forward_impl.3} parent=1 // loop_footer
      %s43 = sadd.s32 1, %s39
    $region39: #{_rnn1_forward_impl.3} parent=1 // loop_footer_branch
      %38 = sbr.rel target = $region35
    $region40: #{_rnn1_forward_impl.3} parent=1 // loop_exit
      _
    %684 = vrot.lane.b32.xlu0 %v44, 80
    %v685 = vpop.permute.xlu0 %684
    %686 = vrot.lane.b32.xlu0 %v45, 80
    %v687 = vpop.permute.xlu0 %686
    %vm690 = vcmask 130048
    %691 = vst.msk [vmem:[#allocation3] sm:$0xff] %vm690, %v685
    %692 = vst.msk [vmem:[#allocation3 + $0x8] sm:$0xff] %vm690, %v687
    %695 = vrot.lane.b32.xlu0 %v48, 80
    %v696 = vpop.permute.xlu0 %695
    %697 = vrot.lane.b32.xlu0 %v49, 80
    %v698 = vpop.permute.xlu0 %697
    %s701 = scalar_lea.vmem [#allocation3], 16
    %702 = vst.msk [vmem:[%s701] sm:$0xff] %vm690, %v696
    %703 = vst.msk [vmem:[%s701 + $0x8] sm:$0xff] %vm690, %v698
    %706 = vrot.lane.b32.xlu0 %v52, 80
    %v707 = vpop.permute.xlu0 %706
    %708 = vrot.lane.b32.xlu0 %v53, 80
    %v709 = vpop.permute.xlu0 %708
    %s712 = scalar_lea.vmem [#allocation3], 32
    %713 = vst.msk [vmem:[%s712] sm:$0xff] %vm690, %v707
    %714 = vst.msk [vmem:[%s712 + $0x8] sm:$0xff] %vm690, %v709
    %717 = vrot.lane.b32.xlu0 %v46, 112
    %v718 = vpop.permute.xlu0 %717
    %719 = vrot.lane.b32.xlu0 %v47, 112
    %v720 = vpop.permute.xlu0 %719
    %723 = vst.msk [vmem:[#allocation5] sm:$0xff] %vm690, %v718
    %724 = vst.msk [vmem:[#allocation5 + $0x8] sm:$0xff] %vm690, %v720
    %727 = vrot.lane.b32.xlu0 %v50, 112
    %v728 = vpop.permute.xlu0 %727
    %729 = vrot.lane.b32.xlu0 %v51, 112
    %v730 = vpop.permute.xlu0 %729
    %s733 = scalar_lea.vmem [#allocation5], 16
    %734 = vst.msk [vmem:[%s733] sm:$0xff] %vm690, %v728
    %735 = vst.msk [vmem:[%s733 + $0x8] sm:$0xff] %vm690, %v730
    %738 = vrot.lane.b32.xlu0 %v54, 112
    %v739 = vpop.permute.xlu0 %738
    %740 = vrot.lane.b32.xlu0 %v55, 112
    %v741 = vpop.permute.xlu0 %740
    %s744 = scalar_lea.vmem [#allocation5], 32
    %745 = vst.msk [vmem:[%s744] sm:$0xff] %vm690, %v739
    %746 = vst.msk [vmem:[%s744 + $0x8] sm:$0xff] %vm690, %v741
    %v747 = vld [vmem:[%s4] sm:$0xff]
    %v748 = vld [vmem:[%s4 + $0x8] sm:$0xff]
    %v749 = vld [vmem:[%s5] sm:$0x1]
    %v751 = vlaneseq
    %v752 = vshrl.u32 %v751, 7
    %v753 = vsub.s32 0, %v752
    %v754 = vrot.slane %v749, %v753
    %757 = vrot.lane.b32.xlu0 %v56, 80
    %v758 = vpop.permute.xlu0 %757
    %v759 = vsel %vm690, %v758, 0
    %761 = vmatprep.subr.mxu0 0.0
    %762 = vmatpush1.msra.mxu0 %v747
    %763 = vmatprep.subr.mxu0 0.0
    %764 = vmatpush1.msra.mxu0 %v748
    %765 = vmatprep.subr.mxu0 0.0
    %766 = vmatpush1.msra.mxu0 0.0
    %767 = vmatprep.subr.mxu0 0.0
    %768 = vmatpush1.msra.mxu0 0.0
    %769 = vmatprep.subr.mxu0 0.0
    %770 = vmatpush1.msra.mxu0 0.0
    %771 = vmatprep.subr.mxu0 0.0
    %772 = vmatpush1.msra.mxu0 0.0
    %773 = vmatprep.subr.mxu0 0.0
    %774 = vmatpush1.msra.mxu0 0.0
    %775 = vmatprep.subr.mxu0 0.0
    %776 = vmatpush1.msra.mxu0 0.0
    %777 = vmatprep.subr.mxu0 0.0
    %778 = vmatpush1.msra.mxu0 0.0
    %779 = vmatprep.subr.mxu0 0.0
    %780 = vmatpush1.msra.mxu0 0.0
    %781 = vmatprep.subr.mxu0 0.0
    %782 = vmatpush1.msra.mxu0 0.0
    %783 = vmatprep.subr.mxu0 0.0
    %784 = vmatpush1.msra.mxu0 0.0
    %785 = vmatprep.subr.mxu0 0.0
    %786 = vmatpush1.msra.mxu0 0.0
    %787 = vmatprep.subr.mxu0 0.0
    %788 = vmatpush1.msra.mxu0 0.0
    %789 = vmatprep.subr.mxu0 0.0
    %790 = vmatpush1.msra.mxu0 0.0
    %791 = vmatprep.subr.mxu0 0.0
    %792 = vmatpush1.msra.mxu0 0.0
    %793 = vmatprep.subr.mxu0 0.0
    %794 = vmatpush1.msra.mxu0 0.0
    %795 = vmatprep.subr.mxu0 0.0
    %796 = vmatpush1.msra.mxu0 0.0
    %797 = vmatprep.subr.mxu0 0.0
    %798 = vmatpush1.msra.mxu0 0.0
    %799 = vmatprep.subr.mxu0 0.0
    %800 = vmatpush1.msra.mxu0 0.0
    %801 = vmatprep.subr.mxu0 0.0
    %802 = vmatpush1.msra.mxu0 0.0
    %803 = vmatprep.subr.mxu0 0.0
    %804 = vmatpush1.msra.mxu0 0.0
    %805 = vmatprep.subr.mxu0 0.0
    %806 = vmatpush1.msra.mxu0 0.0
    %807 = vmatprep.subr.mxu0 0.0
    %808 = vmatpush1.msra.mxu0 0.0
    %809 = vmatprep.subr.mxu0 0.0
    %810 = vmatpush1.msra.mxu0 0.0
    %811 = vmatprep.subr.mxu0 0.0
    %812 = vmatpush1.msra.mxu0 0.0
    %813 = vmatprep.subr.mxu0 0.0
    %814 = vmatpush1.msra.mxu0 0.0
    %815 = vmatprep.subr.mxu0 0.0
    %816 = vmatpush1.msra.mxu0 0.0
    %817 = vmatprep.subr.mxu0 0.0
    %818 = vmatpush1.msra.mxu0 0.0
    %819 = vmatprep.subr.mxu0 0.0
    %820 = vmatpush1.msra.mxu0 0.0
    %821 = vmatprep.subr.mxu0 0.0
    %822 = vmatpush1.msra.mxu0 0.0
    %823 = vmatprep.subr.mxu0 0.0
    %824 = vmatpush1.msra.mxu0 0.0
    %825 = vmatprep.mubr.f32.mxu0 0.0
    %826 = vmatmul.mubr.f32.gmra.mrb[0].mxu0 %v759
    %v827 = vpop.f32.mrb[0].mxu0
    %v828 = vadd.f32 %v754, %v827
    %v829 = vpop.f32.mrb[0].mxu0
    %830 = vdwg.mxu0
    %v831 = vmax.f32 %v828, 0.0
    %v832 = vld [vmem:[%s6] sm:$0xff]
    %v833 = vld [vmem:[%s6 + $0x8] sm:$0xff]
    %v834 = vld [vmem:[%s6 + $0x10] sm:$0xff]
    %v835 = vld [vmem:[%s6 + $0x18] sm:$0xff]
    %v836 = vld [vmem:[#allocation2] sm:$0x1]
    %v838 = vlaneseq
    %v839 = vshrl.u32 %v838, 7
    %v840 = vsub.s32 0, %v839
    %v841 = vrot.slane %v836, %v840
    %vm843 = vcmask 261120
    %v845 = vsel %vm843, %v831, 0
    %847 = vmatprep.subr.mxu0 0.0
    %848 = vmatpush1.msra.mxu0 %v832
    %849 = vmatprep.subr.mxu0 0.0
    %850 = vmatpush1.msra.mxu0 %v833
    %851 = vmatprep.subr.mxu0 0.0
    %852 = vmatpush1.msra.mxu0 %v834
    %853 = vmatprep.subr.mxu0 0.0
    %854 = vmatpush1.msra.mxu0 %v835
    %855 = vmatprep.subr.mxu0 0.0
    %856 = vmatpush1.msra.mxu0 0.0
    %857 = vmatprep.subr.mxu0 0.0
    %858 = vmatpush1.msra.mxu0 0.0
    %859 = vmatprep.subr.mxu0 0.0
    %860 = vmatpush1.msra.mxu0 0.0
    %861 = vmatprep.subr.mxu0 0.0
    %862 = vmatpush1.msra.mxu0 0.0
    %863 = vmatprep.subr.mxu0 0.0
    %864 = vmatpush1.msra.mxu0 0.0
    %865 = vmatprep.subr.mxu0 0.0
    %866 = vmatpush1.msra.mxu0 0.0
    %867 = vmatprep.subr.mxu0 0.0
    %868 = vmatpush1.msra.mxu0 0.0
    %869 = vmatprep.subr.mxu0 0.0
    %870 = vmatpush1.msra.mxu0 0.0
    %871 = vmatprep.subr.mxu0 0.0
    %872 = vmatpush1.msra.mxu0 0.0
    %873 = vmatprep.subr.mxu0 0.0
    %874 = vmatpush1.msra.mxu0 0.0
    %875 = vmatprep.subr.mxu0 0.0
    %876 = vmatpush1.msra.mxu0 0.0
    %877 = vmatprep.subr.mxu0 0.0
    %878 = vmatpush1.msra.mxu0 0.0
    %879 = vmatprep.subr.mxu0 0.0
    %880 = vmatpush1.msra.mxu0 0.0
    %881 = vmatprep.subr.mxu0 0.0
    %882 = vmatpush1.msra.mxu0 0.0
    %883 = vmatprep.subr.mxu0 0.0
    %884 = vmatpush1.msra.mxu0 0.0
    %885 = vmatprep.subr.mxu0 0.0
    %886 = vmatpush1.msra.mxu0 0.0
    %887 = vmatprep.subr.mxu0 0.0
    %888 = vmatpush1.msra.mxu0 0.0
    %889 = vmatprep.subr.mxu0 0.0
    %890 = vmatpush1.msra.mxu0 0.0
    %891 = vmatprep.subr.mxu0 0.0
    %892 = vmatpush1.msra.mxu0 0.0
    %893 = vmatprep.subr.mxu0 0.0
    %894 = vmatpush1.msra.mxu0 0.0
    %895 = vmatprep.subr.mxu0 0.0
    %896 = vmatpush1.msra.mxu0 0.0
    %897 = vmatprep.subr.mxu0 0.0
    %898 = vmatpush1.msra.mxu0 0.0
    %899 = vmatprep.subr.mxu0 0.0
    %900 = vmatpush1.msra.mxu0 0.0
    %901 = vmatprep.subr.mxu0 0.0
    %902 = vmatpush1.msra.mxu0 0.0
    %903 = vmatprep.subr.mxu0 0.0
    %904 = vmatpush1.msra.mxu0 0.0
    %905 = vmatprep.subr.mxu0 0.0
    %906 = vmatpush1.msra.mxu0 0.0
    %907 = vmatprep.subr.mxu0 0.0
    %908 = vmatpush1.msra.mxu0 0.0
    %909 = vmatprep.subr.mxu0 0.0
    %910 = vmatpush1.msra.mxu0 0.0
    %911 = vmatprep.mubr.f32.mxu0 0.0
    %912 = vmatmul.mubr.f32.gmra.mrb[0].mxu0 %v845
    %v913 = vpop.f32.mrb[0].mxu0
    %v914 = vadd.f32 %v841, %v913
    %v915 = vpop.f32.mrb[0].mxu0
    %916 = vdwg.mxu0
    %vm917 = vcmask 1024
    %918 = vst.msk [vmem:[%s8] sm:$0x3] %vm917, %v914
    // Predicated region
    $region41: #{_rnn1_forward_impl.3} parent=1 // pred_check
      _
    $region42: #{_rnn1_forward_impl.3} parent=1 // pred_check_branch
      %920 = sbr.rel (0) target = $region44
    $region43: #{_rnn1_forward_impl.3} parent=1 // pred_region
      _
    $region44: #{_rnn1_forward_impl.3} parent=1 // pred_fallthru
      _
    // Predicated region
    $region45: #{_rnn1_forward_impl.3} parent=1 // pred_check
      _
    $region46: #{_rnn1_forward_impl.3} parent=1 // pred_check_branch
      %922 = sbr.rel (0) target = $region48
    $region47: #{_rnn1_forward_impl.3} parent=1 // pred_region
      %s924 = ssub.s32 768, 768
      %925 = vsyncadd [#allocation4], %s924
      %s926 = sshll.u32 [#allocation3], 4
      %s927 = int_to_ptr.vmem [resolvable:$true] %s926
      %932 = dma.vmem_to_hbm [thread:$0]  %s927, 768, %s9, [#allocation4], 128, 128, 8
    $region48: #{_rnn1_forward_impl.3} parent=1 // pred_fallthru
      _
    // Predicated region
    $region49: #{_rnn1_forward_impl.3} parent=1 // pred_check
      _
    $region50: #{_rnn1_forward_impl.3} parent=1 // pred_check_branch
      %934 = sbr.rel (0) target = $region52
    $region51: #{_rnn1_forward_impl.3} parent=1 // pred_region
      %s936 = ssub.s32 768, 768
      %937 = vsyncadd [#allocation6], %s936
      %s938 = sshll.u32 [#allocation5], 4
      %s939 = int_to_ptr.vmem [resolvable:$true] %s938
      %944 = dma.vmem_to_hbm [thread:$0]  %s939, 768, %s10, [#allocation6], 128, 128, 8
    $region52: #{_rnn1_forward_impl.3} parent=1 // pred_fallthru
      _
    // Predicated region
    $region53: #{_rnn1_forward_impl.3} parent=1 // pred_check
      _
    $region54: #{_rnn1_forward_impl.3} parent=1 // pred_check_branch
      %946 = sbr.rel (0) target = $region56
    $region55: #{_rnn1_forward_impl.3} parent=1 // pred_region
      _
    $region56: #{_rnn1_forward_impl.3} parent=1 // pred_fallthru
      _
    // Predicated region
    $region57: #{_rnn1_forward_impl.3} parent=1 // pred_check
      _
    $region58: #{_rnn1_forward_impl.3} parent=1 // pred_check_branch
      %948 = sbr.rel (0) target = $region60
    $region59: #{_rnn1_forward_impl.3} parent=1 // pred_region
      %949 = dma.done [#allocation4], 768
    $region60: #{_rnn1_forward_impl.3} parent=1 // pred_fallthru
      _
    // Predicated region
    $region61: #{_rnn1_forward_impl.3} parent=1 // pred_check
      _
    $region62: #{_rnn1_forward_impl.3} parent=1 // pred_check_branch
      %951 = sbr.rel (0) target = $region64
    $region63: #{_rnn1_forward_impl.3} parent=1 // pred_region
      %952 = dma.done [#allocation6], 768
    $region64: #{_rnn1_forward_impl.3} parent=1 // pred_fallthru
      _
    %953 = vsyncpa [#allocation4], 1
    %954 = vsyncpa [#allocation6], 1

// kernel: _rnn1_forward_impl.2
$region0: #{_rnn1_forward_impl.2}
  #allocation0 [shape = 'u32[]', space=smem, size = 0x4, offset = 0x4, fixed_abs, tag = 'smem constant byte address 0x4 - core index']
  #allocation1 [shape = 'u32[144,128]{1,0:T(1,128)}', space=vmem, size = 0x12000, scoped, tag = 'internal scratch']
  %s0 = inlined_call_operand.vmem [shape: f32[2,576,350], index: 0, kind: input, shape index: {}]
  %s1 = inlined_call_operand.vmem [shape: f32[32,576], index: 1, kind: input, shape index: {}]
  %s2 = inlined_call_operand.vmem [shape: f32[32,1], index: 2, kind: input, shape index: {}]
  %s3 = inlined_call_operand.vmem [shape: f32[32,32], index: 3, kind: input, shape index: {}]
  %s4 = inlined_call_operand.vmem [shape: f32[32,1], index: 4, kind: input, shape index: {}]
  %s5 = inlined_call_operand.vmem [shape: f32[350,64], index: 5, kind: input, shape index: {}]
  %s6 = inlined_call_operand.vmem [shape: f32[2,16,64], index: 6, kind: output, shape index: {}]
  %s7 = sld [smem:[#allocation0]]
  $region57: #{_rnn1_forward_impl.2} parent=0
    _
  %s9 = ssub.s32 1, %s7
  %s10 = scalar_select 0, %s9, %s7
  loop: start=0, step=1, limit=4
  $region2: #{_rnn1_forward_impl.2} parent=0 // loop_pre_header
    _
  $region3: #{_rnn1_forward_impl.2} parent=0 // loop_header
    %s12 = sphi 0, %s16
    %p13 = scmp.ge.s32.totalorder %s12, 4
    %s22 = sphi 0, %s24
    %s25 = sphi 0, %s22
    %s26 = sphi 0, %s25
    %s42 = sphi 0, %s26
    %s46 = sphi 0, %s46
    %s48 = sphi 0, %s46
    %s49 = sphi 0, %s48
    %s63 = sphi 0, %s49
    %s67 = sphi 0, %s67
    %s69 = sphi 0, %s67
    %s70 = sphi 0, %s69
    %s84 = sphi 0, %s70
    %s88 = sphi 0, %s88
    %s90 = sphi 0, %s88
    %s91 = sphi 0, %s90
    %s105 = sphi 0, %s91
    %s109 = sphi 0, %s109
    %s111 = sphi 0, %s109
    %s112 = sphi 0, %s111
    %s126 = sphi 0, %s112
    %s130 = sphi 0, %s130
    %s132 = sphi 0, %s130
    %s133 = sphi 0, %s132
    %s147 = sphi 0, %s133
    %s153 = sphi 0, %s155
    %s156 = sphi 0, %s153
    %s157 = sphi 0, %s156
    %s173 = sphi 0, %s157
  $region4: #{_rnn1_forward_impl.2} parent=0 // loop_header_branch
    %15 = sbr.rel (%p13) target = $region8
  $region5: #{_rnn1_forward_impl.2} parent=0 // loop_body
    %s17 = ssub.s32 %s12, 1
    %s18 = ssub.s32 %s12, 2
    %s19 = sadd.s32 %s12, 1
    %s20 = ssub.s32 %s12, %s19
    %p21 = scmp.eq.s32.totalorder %s20, 0
    %s23 = sadd.s32 %s22, 1
    %s24 = scalar_select %p21, %s22, %s23
    %p27 = pneg %p21
    %p28 = scmp.eq.s32.totalorder %s12, 1
    %p29 = por %p27, %p28
    %p30 = scmp.ne.s32.totalorder %s22, %s25
    %p31 = scmp.eq.s32.totalorder %s12, 0
    %p32 = por %p30, %p31
    %p33 = scmp.ne.s32.totalorder %s22, %s25
    %p34 = scmp.eq.s32.totalorder %s17, 1
    %p35 = por %p33, %p34
    %p36 = scmp.ne.s32.totalorder %s25, %s26
    %p37 = scmp.eq.s32.totalorder %s17, 0
    %p38 = por %p36, %p37
    %p39 = scmp.ne.s32.totalorder %s25, %s26
    %p40 = scmp.eq.s32.totalorder %s18, 1
    %p41 = por %p39, %p40
    %p43 = scmp.ne.s32.totalorder %s26, %s42
    %p44 = scmp.eq.s32.totalorder %s18, 0
    %p45 = por %p43, %p44
    %s47 = sadd.s32 %s46, 1
    %p50 = scmp.eq.s32.totalorder %s12, 1
    %p51 = scmp.ne.s32.totalorder %s46, %s48
    %p52 = scmp.eq.s32.totalorder %s12, 0
    %p53 = por %p51, %p52
    %p54 = scmp.ne.s32.totalorder %s46, %s48
    %p55 = scmp.eq.s32.totalorder %s17, 1
    %p56 = por %p54, %p55
    %p57 = scmp.ne.s32.totalorder %s48, %s49
    %p58 = scmp.eq.s32.totalorder %s17, 0
    %p59 = por %p57, %p58
    %p60 = scmp.ne.s32.totalorder %s48, %s49
    %p61 = scmp.eq.s32.totalorder %s18, 1
    %p62 = por %p60, %p61
    %p64 = scmp.ne.s32.totalorder %s49, %s63
    %p65 = scmp.eq.s32.totalorder %s18, 0
    %p66 = por %p64, %p65
    %s68 = sadd.s32 %s67, 1
    %p71 = scmp.eq.s32.totalorder %s12, 1
    %p72 = scmp.ne.s32.totalorder %s67, %s69
    %p73 = scmp.eq.s32.totalorder %s12, 0
    %p74 = por %p72, %p73
    %p75 = scmp.ne.s32.totalorder %s67, %s69
    %p76 = scmp.eq.s32.totalorder %s17, 1
    %p77 = por %p75, %p76
    %p78 = scmp.ne.s32.totalorder %s69, %s70
    %p79 = scmp.eq.s32.totalorder %s17, 0
    %p80 = por %p78, %p79
    %p81 = scmp.ne.s32.totalorder %s69, %s70
    %p82 = scmp.eq.s32.totalorder %s18, 1
    %p83 = por %p81, %p82
    %p85 = scmp.ne.s32.totalorder %s70, %s84
    %p86 = scmp.eq.s32.totalorder %s18, 0
    %p87 = por %p85, %p86
    %s89 = sadd.s32 %s88, 1
    %p92 = scmp.eq.s32.totalorder %s12, 1
    %p93 = scmp.ne.s32.totalorder %s88, %s90
    %p94 = scmp.eq.s32.totalorder %s12, 0
    %p95 = por %p93, %p94
    %p96 = scmp.ne.s32.totalorder %s88, %s90
    %p97 = scmp.eq.s32.totalorder %s17, 1
    %p98 = por %p96, %p97
    %p99 = scmp.ne.s32.totalorder %s90, %s91
    %p100 = scmp.eq.s32.totalorder %s17, 0
    %p101 = por %p99, %p100
    %p102 = scmp.ne.s32.totalorder %s90, %s91
    %p103 = scmp.eq.s32.totalorder %s18, 1
    %p104 = por %p102, %p103
    %p106 = scmp.ne.s32.totalorder %s91, %s105
    %p107 = scmp.eq.s32.totalorder %s18, 0
    %p108 = por %p106, %p107
    %s110 = sadd.s32 %s109, 1
    %p113 = scmp.eq.s32.totalorder %s12, 1
    %p114 = scmp.ne.s32.totalorder %s109, %s111
    %p115 = scmp.eq.s32.totalorder %s12, 0
    %p116 = por %p114, %p115
    %p117 = scmp.ne.s32.totalorder %s109, %s111
    %p118 = scmp.eq.s32.totalorder %s17, 1
    %p119 = por %p117, %p118
    %p120 = scmp.ne.s32.totalorder %s111, %s112
    %p121 = scmp.eq.s32.totalorder %s17, 0
    %p122 = por %p120, %p121
    %p123 = scmp.ne.s32.totalorder %s111, %s112
    %p124 = scmp.eq.s32.totalorder %s18, 1
    %p125 = por %p123, %p124
    %p127 = scmp.ne.s32.totalorder %s112, %s126
    %p128 = scmp.eq.s32.totalorder %s18, 0
    %p129 = por %p127, %p128
    %s131 = sadd.s32 %s130, 1
    %p134 = scmp.eq.s32.totalorder %s12, 1
    %p135 = scmp.ne.s32.totalorder %s130, %s132
    %p136 = scmp.eq.s32.totalorder %s12, 0
    %p137 = por %p135, %p136
    %p138 = scmp.ne.s32.totalorder %s130, %s132
    %p139 = scmp.eq.s32.totalorder %s17, 1
    %p140 = por %p138, %p139
    %p141 = scmp.ne.s32.totalorder %s132, %s133
    %p142 = scmp.eq.s32.totalorder %s17, 0
    %p143 = por %p141, %p142
    %p144 = scmp.ne.s32.totalorder %s132, %s133
    %p145 = scmp.eq.s32.totalorder %s18, 1
    %p146 = por %p144, %p145
    %p148 = scmp.ne.s32.totalorder %s133, %s147
    %p149 = scmp.eq.s32.totalorder %s18, 0
    %p150 = por %p148, %p149
    %s151 = ssub.s32 %s12, %s19
    %p152 = scmp.eq.s32.totalorder %s151, 0
    %s154 = sadd.s32 %s153, 1
    %s155 = scalar_select %p152, %s153, %s154
    %p158 = pneg %p152
    %p159 = scmp.eq.s32.totalorder %s12, 1
    %p160 = por %p158, %p159
    %p161 = scmp.ne.s32.totalorder %s153, %s156
    %p162 = scmp.eq.s32.totalorder %s12, 0
    %p163 = por %p161, %p162
    %p164 = scmp.ne.s32.totalorder %s153, %s156
    %p165 = scmp.eq.s32.totalorder %s17, 1
    %p166 = por %p164, %p165
    %p167 = scmp.ne.s32.totalorder %s156, %s157
    %p168 = scmp.eq.s32.totalorder %s17, 0
    %p169 = por %p167, %p168
    %p170 = scmp.ne.s32.totalorder %s156, %s157
    %p171 = scmp.eq.s32.totalorder %s18, 1
    %p172 = por %p170, %p171
    %p174 = scmp.ne.s32.totalorder %s157, %s173
    %p175 = scmp.eq.s32.totalorder %s18, 0
    %p176 = por %p174, %p175
    %p177 = scmp.le.s32.totalorder 1, %s12
    %p178 = scmp.lt.s32.totalorder %s12, 3
    %p179 = pnand %p177, %p178
    %p180 = pneg %p179
    // Predicated region
    $region9: #{_rnn1_forward_impl.2} parent=5 // pred_check
      _
    $region10: #{_rnn1_forward_impl.2} parent=5 // pred_check_branch
      %182 = sbr.rel (%p179) target = $region12
    $region11: #{_rnn1_forward_impl.2} parent=5 // pred_region
      %s183 = ssub.s32 %s12, 1
      // Predicated region
      $region13: #{_rnn1_forward_impl.2} parent=11 // pred_check
        %p184 = pneg %p59
      $region14: #{_rnn1_forward_impl.2} parent=11 // pred_check_branch
        %186 = sbr.rel (%p184) target = $region16
      $region15: #{_rnn1_forward_impl.2} parent=11 // pred_region
        _
      $region16: #{_rnn1_forward_impl.2} parent=11 // pred_fallthru
        _
      // Predicated region
      $region17: #{_rnn1_forward_impl.2} parent=11 // pred_check
        %p187 = pneg %p80
      $region18: #{_rnn1_forward_impl.2} parent=11 // pred_check_branch
        %189 = sbr.rel (%p187) target = $region20
      $region19: #{_rnn1_forward_impl.2} parent=11 // pred_region
        _
      $region20: #{_rnn1_forward_impl.2} parent=11 // pred_fallthru
        _
      // Predicated region
      $region21: #{_rnn1_forward_impl.2} parent=11 // pred_check
        %p190 = pneg %p101
      $region22: #{_rnn1_forward_impl.2} parent=11 // pred_check_branch
        %192 = sbr.rel (%p190) target = $region24
      $region23: #{_rnn1_forward_impl.2} parent=11 // pred_region
        _
      $region24: #{_rnn1_forward_impl.2} parent=11 // pred_fallthru
        _
      // Predicated region
      $region25: #{_rnn1_forward_impl.2} parent=11 // pred_check
        %p193 = pneg %p122
      $region26: #{_rnn1_forward_impl.2} parent=11 // pred_check_branch
        %195 = sbr.rel (%p193) target = $region28
      $region27: #{_rnn1_forward_impl.2} parent=11 // pred_region
        _
      $region28: #{_rnn1_forward_impl.2} parent=11 // pred_fallthru
        _
      // Predicated region
      $region29: #{_rnn1_forward_impl.2} parent=11 // pred_check
        %p196 = pneg %p143
      $region30: #{_rnn1_forward_impl.2} parent=11 // pred_check_branch
        %198 = sbr.rel (%p196) target = $region32
      $region31: #{_rnn1_forward_impl.2} parent=11 // pred_region
        _
      $region32: #{_rnn1_forward_impl.2} parent=11 // pred_fallthru
        _
    $region12: #{_rnn1_forward_impl.2} parent=5 // pred_fallthru
      _
    %p199 = scmp.lt.s32.totalorder %s12, 2
    // Predicated region
    $region33: #{_rnn1_forward_impl.2} parent=5 // pred_check
      %p200 = pneg %p199
    $region34: #{_rnn1_forward_impl.2} parent=5 // pred_check_branch
      %202 = sbr.rel (%p200) target = $region36
    $region35: #{_rnn1_forward_impl.2} parent=5 // pred_region
      // Predicated region
      $region37: #{_rnn1_forward_impl.2} parent=35 // pred_check
        %p203 = pneg %p32
      $region38: #{_rnn1_forward_impl.2} parent=35 // pred_check_branch
        %205 = sbr.rel (%p203) target = $region40
      $region39: #{_rnn1_forward_impl.2} parent=35 // pred_region
        %p206 = scmp.lt.s32.totalorder %s12, 1
        %s207 = scalar_select %p206, %s12, 1
        %s208 = smul.addr %s207, 216
        %s209 = smul.addr %s208, 8
        %s210 = scalar_lea.vmem %s0, %s209
      $region40: #{_rnn1_forward_impl.2} parent=35 // pred_fallthru
        _
    $region36: #{_rnn1_forward_impl.2} parent=5 // pred_fallthru
      _
    %p211 = scmp.le.s32.totalorder 1, %s12
    %p212 = scmp.lt.s32.totalorder %s12, 3
    %p213 = pnand %p211, %p212
    %p214 = pneg %p213
    // Predicated region
    $region41: #{_rnn1_forward_impl.2} parent=5 // pred_check
      _
    $region42: #{_rnn1_forward_impl.2} parent=5 // pred_check_branch
      %216 = sbr.rel (%p213) target = $region44
    $region43: #{_rnn1_forward_impl.2} parent=5 // pred_region
      %s217 = ssub.s32 %s12, 1
      %p218 = scmp.lt.s32.totalorder %s17, 1
      %s219 = scalar_select %p218, %s17, 1
      %s220 = smul.addr %s219, 216
      %s221 = smul.addr %s220, 8
      %s222 = scalar_lea.vmem %s0, %s221
      %p223 = pneg %p38
      %p224 = pneg %p35
      %p225 = pneg %p59
      %p226 = pneg %p56
      %p227 = pneg %p80
      %p228 = pneg %p77
      %p229 = pneg %p101
      %p230 = pneg %p98
      %p231 = pneg %p122
      %p232 = pneg %p119
      %p233 = pneg %p143
      %p234 = pneg %p140
      %p235 = pneg %p169
      %p236 = pneg %p166
      %p237 = scmp.lt.s32.totalorder %s17, 1
      %s238 = scalar_select %p237, %s17, 1
      %s239 = smul.addr %s238, 2
      %s240 = smul.addr %s239, 8
      %s241 = scalar_lea.vmem %s6, %s240
      %p242 = scmp.lt.s32.totalorder %s17, 1
      %s243 = scalar_select %p242, %s17, 1
      %s244 = smul.addr %s243, 216
      %s245 = smul.addr %s244, 8
      %s246 = scalar_lea.vmem %s0, %s245
      %p247 = scmp.lt.s32.totalorder %s17, 1
      %s248 = scalar_select %p247, %s17, 1
      %s249 = smul.addr %s248, 2
      %s250 = smul.addr %s249, 8
      %s251 = scalar_lea.vmem %s6, %s250
      %v252 = vld [vmem:[%s1] sm:$0xff]
      %v253 = vld [vmem:[%s1 + $0x8] sm:$0xff]
      %v254 = vld [vmem:[%s1 + $0x10] sm:$0xff]
      %v255 = vld [vmem:[%s1 + $0x18] sm:$0xff]
      %v256 = vld [vmem:[%s1 + $0x20] sm:$0xff]
      %v257 = vld [vmem:[%s1 + $0x28] sm:$0xff]
      %v258 = vld [vmem:[%s1 + $0x30] sm:$0xff]
      %v259 = vld [vmem:[%s1 + $0x38] sm:$0xff]
      %v260 = vld [vmem:[%s1 + $0x40] sm:$0xff]
      %v261 = vld [vmem:[%s1 + $0x48] sm:$0xff]
      %v262 = vld [vmem:[%s1 + $0x50] sm:$0xff]
      %v263 = vld [vmem:[%s1 + $0x58] sm:$0xff]
      %v264 = vld [vmem:[%s1 + $0x60] sm:$0xff]
      %v265 = vld [vmem:[%s1 + $0x68] sm:$0xff]
      %v266 = vld [vmem:[%s1 + $0x70] sm:$0xff]
      %v267 = vld [vmem:[%s1 + $0x78] sm:$0xff]
      %v268 = vld [vmem:[%s1 + $0x80] sm:$0xff]
      %v269 = vld [vmem:[%s1 + $0x88] sm:$0xff]
      %v270 = vld [vmem:[%s1 + $0x90] sm:$0xff]
      %v271 = vld [vmem:[%s1 + $0x98] sm:$0xff]
      %v272 = vld [vmem:[%s246] sm:$0xff]
      %v273 = vld [vmem:[%s246 + $0x8] sm:$0xff]
      %v274 = vld [vmem:[%s246 + $0x10] sm:$0xff]
      %v275 = vld [vmem:[%s246 + $0x18] sm:$0xff]
      %v276 = vld [vmem:[%s246 + $0x20] sm:$0xff]
      %v277 = vld [vmem:[%s246 + $0x28] sm:$0xff]
      %v278 = vld [vmem:[%s246 + $0x30] sm:$0xff]
      %v279 = vld [vmem:[%s246 + $0x38] sm:$0xff]
      %v280 = vld [vmem:[%s246 + $0x40] sm:$0xff]
      %v281 = vld [vmem:[%s246 + $0x48] sm:$0xff]
      %v282 = vld [vmem:[%s246 + $0x50] sm:$0xff]
      %v283 = vld [vmem:[%s246 + $0x58] sm:$0xff]
      %v284 = vld [vmem:[%s246 + $0x60] sm:$0xff]
      %v285 = vld [vmem:[%s246 + $0x68] sm:$0xff]
      %v286 = vld [vmem:[%s246 + $0x70] sm:$0xff]
      %v287 = vld [vmem:[%s246 + $0x78] sm:$0xff]
      %v288 = vld [vmem:[%s246 + $0x80] sm:$0xff]
      %v289 = vld [vmem:[%s246 + $0x88] sm:$0xff]
      %v290 = vld [vmem:[%s246 + $0x90] sm:$0xff]
      %v291 = vld [vmem:[%s246 + $0x98] sm:$0xff]
      %v292 = vld [vmem:[%s246 + $0xa0] sm:$0xff]
      %v293 = vld [vmem:[%s246 + $0xa8] sm:$0xff]
      %v294 = vld [vmem:[%s246 + $0xb0] sm:$0xff]
      %v295 = vld [vmem:[%s246 + $0xb8] sm:$0xff]
      %v296 = vld [vmem:[%s246 + $0xc0] sm:$0xff]
      %v297 = vld [vmem:[%s246 + $0xc8] sm:$0xff]
      %v298 = vld [vmem:[%s246 + $0xd0] sm:$0xff]
      %v299 = vld [vmem:[%s246 + $0xd8] sm:$0xff]
      %v300 = vld [vmem:[%s246 + $0xe0] sm:$0xff]
      %v301 = vld [vmem:[%s246 + $0xe8] sm:$0xff]
      %v302 = vld [vmem:[%s246 + $0xf0] sm:$0xff]
      %v303 = vld [vmem:[%s246 + $0xf8] sm:$0xff]
      %v304 = vld [vmem:[%s246 + $0x100] sm:$0xff]
      %v305 = vld [vmem:[%s246 + $0x108] sm:$0xff]
      %v306 = vld [vmem:[%s246 + $0x110] sm:$0xff]
      %v307 = vld [vmem:[%s246 + $0x118] sm:$0xff]
      %v308 = vld [vmem:[%s246 + $0x120] sm:$0xff]
      %v309 = vld [vmem:[%s246 + $0x128] sm:$0xff]
      %v310 = vld [vmem:[%s246 + $0x130] sm:$0xff]
      %v311 = vld [vmem:[%s246 + $0x138] sm:$0xff]
      %v312 = vld [vmem:[%s246 + $0x140] sm:$0xff]
      %v313 = vld [vmem:[%s246 + $0x148] sm:$0xff]
      %v314 = vld [vmem:[%s246 + $0x150] sm:$0xff]
      %v315 = vld [vmem:[%s246 + $0x158] sm:$0xff]
      %v316 = vld [vmem:[%s246 + $0x160] sm:$0xff]
      %v317 = vld [vmem:[%s246 + $0x168] sm:$0xff]
      %v318 = vld [vmem:[%s246 + $0x170] sm:$0xff]
      %v319 = vld [vmem:[%s246 + $0x178] sm:$0xff]
      %v320 = vld [vmem:[%s246 + $0x180] sm:$0xff]
      %v321 = vld [vmem:[%s246 + $0x188] sm:$0xff]
      %v322 = vld [vmem:[%s246 + $0x190] sm:$0xff]
      %v323 = vld [vmem:[%s246 + $0x198] sm:$0xff]
      %v324 = vld [vmem:[%s246 + $0x1a0] sm:$0xff]
      %v325 = vld [vmem:[%s246 + $0x1a8] sm:$0xff]
      %v326 = vld [vmem:[%s246 + $0x1b0] sm:$0xff]
      %v327 = vld [vmem:[%s246 + $0x1b8] sm:$0xff]
      %v328 = vld [vmem:[%s246 + $0x1c0] sm:$0xff]
      %v329 = vld [vmem:[%s246 + $0x1c8] sm:$0xff]
      %v330 = vld [vmem:[%s246 + $0x1d0] sm:$0xff]
      %v331 = vld [vmem:[%s246 + $0x1d8] sm:$0xff]
      %v332 = vld [vmem:[%s246 + $0x1e0] sm:$0xff]
      %v333 = vld [vmem:[%s246 + $0x1e8] sm:$0xff]
      %v334 = vld [vmem:[%s246 + $0x1f0] sm:$0xff]
      %v335 = vld [vmem:[%s246 + $0x1f8] sm:$0xff]
      %v336 = vld [vmem:[%s246 + $0x200] sm:$0xff]
      %v337 = vld [vmem:[%s246 + $0x208] sm:$0xff]
      %v338 = vld [vmem:[%s246 + $0x210] sm:$0xff]
      %v339 = vld [vmem:[%s246 + $0x218] sm:$0xff]
      %v340 = vld [vmem:[%s246 + $0x220] sm:$0xff]
      %v341 = vld [vmem:[%s246 + $0x228] sm:$0xff]
      %v342 = vld [vmem:[%s246 + $0x230] sm:$0xff]
      %v343 = vld [vmem:[%s246 + $0x238] sm:$0xff]
      %v344 = vld [vmem:[%s246 + $0x240] sm:$0xff]
      %v345 = vld [vmem:[%s246 + $0x248] sm:$0xff]
      %v346 = vld [vmem:[%s246 + $0x250] sm:$0xff]
      %v347 = vld [vmem:[%s246 + $0x258] sm:$0xff]
      %v348 = vld [vmem:[%s246 + $0x260] sm:$0xff]
      %v349 = vld [vmem:[%s246 + $0x268] sm:$0xff]
      %v350 = vld [vmem:[%s246 + $0x270] sm:$0xff]
      %v351 = vld [vmem:[%s246 + $0x278] sm:$0xff]
      %v352 = vld [vmem:[%s246 + $0x280] sm:$0xff]
      %v353 = vld [vmem:[%s246 + $0x288] sm:$0xff]
      %v354 = vld [vmem:[%s246 + $0x290] sm:$0xff]
      %v355 = vld [vmem:[%s246 + $0x298] sm:$0xff]
      %v356 = vld [vmem:[%s246 + $0x2a0] sm:$0xff]
      %v357 = vld [vmem:[%s246 + $0x2a8] sm:$0xff]
      %v358 = vld [vmem:[%s246 + $0x2b0] sm:$0xff]
      %v359 = vld [vmem:[%s246 + $0x2b8] sm:$0xff]
      %v360 = vld [vmem:[%s246 + $0x2c0] sm:$0xff]
      %v361 = vld [vmem:[%s246 + $0x2c8] sm:$0xff]
      %v362 = vld [vmem:[%s246 + $0x2d0] sm:$0xff]
      %v363 = vld [vmem:[%s246 + $0x2d8] sm:$0xff]
      %v364 = vld [vmem:[%s246 + $0x2e0] sm:$0xff]
      %v365 = vld [vmem:[%s246 + $0x2e8] sm:$0xff]
      %v366 = vld [vmem:[%s246 + $0x2f0] sm:$0xff]
      %v367 = vld [vmem:[%s246 + $0x2f8] sm:$0xff]
      %v368 = vld [vmem:[%s246 + $0x300] sm:$0xff]
      %v369 = vld [vmem:[%s246 + $0x308] sm:$0xff]
      %v370 = vld [vmem:[%s246 + $0x310] sm:$0xff]
      %v371 = vld [vmem:[%s246 + $0x318] sm:$0xff]
      %v372 = vld [vmem:[%s246 + $0x320] sm:$0xff]
      %v373 = vld [vmem:[%s246 + $0x328] sm:$0xff]
      %v374 = vld [vmem:[%s246 + $0x330] sm:$0xff]
      %v375 = vld [vmem:[%s246 + $0x338] sm:$0xff]
      %v376 = vld [vmem:[%s246 + $0x340] sm:$0xff]
      %v377 = vld [vmem:[%s246 + $0x348] sm:$0xff]
      %v378 = vld [vmem:[%s246 + $0x350] sm:$0xff]
      %v379 = vld [vmem:[%s246 + $0x358] sm:$0xff]
      %v380 = vld [vmem:[%s246 + $0x360] sm:$0xff]
      %v381 = vld [vmem:[%s246 + $0x368] sm:$0xff]
      %v382 = vld [vmem:[%s246 + $0x370] sm:$0xff]
      %v383 = vld [vmem:[%s246 + $0x378] sm:$0xff]
      %v384 = vld [vmem:[%s246 + $0x380] sm:$0xff]
      %v385 = vld [vmem:[%s246 + $0x388] sm:$0xff]
      %v386 = vld [vmem:[%s246 + $0x390] sm:$0xff]
      %v387 = vld [vmem:[%s246 + $0x398] sm:$0xff]
      %v388 = vld [vmem:[%s246 + $0x3a0] sm:$0xff]
      %v389 = vld [vmem:[%s246 + $0x3a8] sm:$0xff]
      %v390 = vld [vmem:[%s246 + $0x3b0] sm:$0xff]
      %v391 = vld [vmem:[%s246 + $0x3b8] sm:$0xff]
      %v392 = vld [vmem:[%s246 + $0x3c0] sm:$0xff]
      %v393 = vld [vmem:[%s246 + $0x3c8] sm:$0xff]
      %v394 = vld [vmem:[%s246 + $0x3d0] sm:$0xff]
      %v395 = vld [vmem:[%s246 + $0x3d8] sm:$0xff]
      %v396 = vld [vmem:[%s246 + $0x3e0] sm:$0xff]
      %v397 = vld [vmem:[%s246 + $0x3e8] sm:$0xff]
      %v398 = vld [vmem:[%s246 + $0x3f0] sm:$0xff]
      %v399 = vld [vmem:[%s246 + $0x3f8] sm:$0xff]
      %v400 = vld [vmem:[%s246 + $0x400] sm:$0xff]
      %v401 = vld [vmem:[%s246 + $0x408] sm:$0xff]
      %v402 = vld [vmem:[%s246 + $0x410] sm:$0xff]
      %v403 = vld [vmem:[%s246 + $0x418] sm:$0xff]
      %v404 = vld [vmem:[%s246 + $0x420] sm:$0xff]
      %v405 = vld [vmem:[%s246 + $0x428] sm:$0xff]
      %v406 = vld [vmem:[%s246 + $0x430] sm:$0xff]
      %v407 = vld [vmem:[%s246 + $0x438] sm:$0xff]
      %v408 = vld [vmem:[%s246 + $0x440] sm:$0xff]
      %v409 = vld [vmem:[%s246 + $0x448] sm:$0xff]
      %v410 = vld [vmem:[%s246 + $0x450] sm:$0xff]
      %v411 = vld [vmem:[%s246 + $0x458] sm:$0xff]
      %v412 = vld [vmem:[%s246 + $0x460] sm:$0xff]
      %v413 = vld [vmem:[%s246 + $0x468] sm:$0xff]
      %v414 = vld [vmem:[%s246 + $0x470] sm:$0xff]
      %v415 = vld [vmem:[%s246 + $0x478] sm:$0xff]
      %v416 = vld [vmem:[%s246 + $0x480] sm:$0xff]
      %v417 = vld [vmem:[%s246 + $0x488] sm:$0xff]
      %v418 = vld [vmem:[%s246 + $0x490] sm:$0xff]
      %v419 = vld [vmem:[%s246 + $0x498] sm:$0xff]
      %v420 = vld [vmem:[%s246 + $0x4a0] sm:$0xff]
      %v421 = vld [vmem:[%s246 + $0x4a8] sm:$0xff]
      %v422 = vld [vmem:[%s246 + $0x4b0] sm:$0xff]
      %v423 = vld [vmem:[%s246 + $0x4b8] sm:$0xff]
      %v424 = vld [vmem:[%s246 + $0x4c0] sm:$0xff]
      %v425 = vld [vmem:[%s246 + $0x4c8] sm:$0xff]
      %v426 = vld [vmem:[%s246 + $0x4d0] sm:$0xff]
      %v427 = vld [vmem:[%s246 + $0x4d8] sm:$0xff]
      %v428 = vld [vmem:[%s246 + $0x4e0] sm:$0xff]
      %v429 = vld [vmem:[%s246 + $0x4e8] sm:$0xff]
      %v430 = vld [vmem:[%s246 + $0x4f0] sm:$0xff]
      %v431 = vld [vmem:[%s246 + $0x4f8] sm:$0xff]
      %v432 = vld [vmem:[%s246 + $0x500] sm:$0xff]
      %v433 = vld [vmem:[%s246 + $0x508] sm:$0xff]
      %v434 = vld [vmem:[%s246 + $0x510] sm:$0xff]
      %v435 = vld [vmem:[%s246 + $0x518] sm:$0xff]
      %v436 = vld [vmem:[%s246 + $0x520] sm:$0xff]
      %v437 = vld [vmem:[%s246 + $0x528] sm:$0xff]
      %v438 = vld [vmem:[%s246 + $0x530] sm:$0xff]
      %v439 = vld [vmem:[%s246 + $0x538] sm:$0xff]
      %v440 = vld [vmem:[%s246 + $0x540] sm:$0xff]
      %v441 = vld [vmem:[%s246 + $0x548] sm:$0xff]
      %v442 = vld [vmem:[%s246 + $0x550] sm:$0xff]
      %v443 = vld [vmem:[%s246 + $0x558] sm:$0xff]
      %v444 = vld [vmem:[%s246 + $0x560] sm:$0xff]
      %v445 = vld [vmem:[%s246 + $0x568] sm:$0xff]
      %v446 = vld [vmem:[%s246 + $0x570] sm:$0xff]
      %v447 = vld [vmem:[%s246 + $0x578] sm:$0xff]
      %v448 = vld [vmem:[%s246 + $0x580] sm:$0xff]
      %v449 = vld [vmem:[%s246 + $0x588] sm:$0xff]
      %v450 = vld [vmem:[%s246 + $0x590] sm:$0xff]
      %v451 = vld [vmem:[%s246 + $0x598] sm:$0xff]
      %v452 = vld [vmem:[%s246 + $0x5a0] sm:$0xff]
      %v453 = vld [vmem:[%s246 + $0x5a8] sm:$0xff]
      %v454 = vld [vmem:[%s246 + $0x5b0] sm:$0xff]
      %v455 = vld [vmem:[%s246 + $0x5b8] sm:$0xff]
      %v456 = vld [vmem:[%s246 + $0x5c0] sm:$0xff]
      %v457 = vld [vmem:[%s246 + $0x5c8] sm:$0xff]
      %v458 = vld [vmem:[%s246 + $0x5d0] sm:$0xff]
      %v459 = vld [vmem:[%s246 + $0x5d8] sm:$0xff]
      %v460 = vld [vmem:[%s246 + $0x5e0] sm:$0xff]
      %v461 = vld [vmem:[%s246 + $0x5e8] sm:$0xff]
      %v462 = vld [vmem:[%s246 + $0x5f0] sm:$0xff]
      %v463 = vld [vmem:[%s246 + $0x5f8] sm:$0xff]
      %v464 = vld [vmem:[%s246 + $0x600] sm:$0xff]
      %v465 = vld [vmem:[%s246 + $0x608] sm:$0xff]
      %v466 = vld [vmem:[%s246 + $0x610] sm:$0xff]
      %v467 = vld [vmem:[%s246 + $0x618] sm:$0xff]
      %v468 = vld [vmem:[%s246 + $0x620] sm:$0xff]
      %v469 = vld [vmem:[%s246 + $0x628] sm:$0xff]
      %v470 = vld [vmem:[%s246 + $0x630] sm:$0xff]
      %v471 = vld [vmem:[%s246 + $0x638] sm:$0xff]
      %v472 = vld [vmem:[%s246 + $0x640] sm:$0xff]
      %v473 = vld [vmem:[%s246 + $0x648] sm:$0xff]
      %v474 = vld [vmem:[%s246 + $0x650] sm:$0xff]
      %v475 = vld [vmem:[%s246 + $0x658] sm:$0xff]
      %v476 = vld [vmem:[%s246 + $0x660] sm:$0xff]
      %v477 = vld [vmem:[%s246 + $0x668] sm:$0xff]
      %v478 = vld [vmem:[%s246 + $0x670] sm:$0xff]
      %v479 = vld [vmem:[%s246 + $0x678] sm:$0xff]
      %v480 = vld [vmem:[%s246 + $0x680] sm:$0xff]
      %v481 = vld [vmem:[%s246 + $0x688] sm:$0xff]
      %v482 = vld [vmem:[%s246 + $0x690] sm:$0xff]
      %v483 = vld [vmem:[%s246 + $0x698] sm:$0xff]
      %v484 = vld [vmem:[%s246 + $0x6a0] sm:$0xff]
      %v485 = vld [vmem:[%s246 + $0x6a8] sm:$0xff]
      %v486 = vld [vmem:[%s246 + $0x6b0] sm:$0xff]
      %v487 = vld [vmem:[%s246 + $0x6b8] sm:$0xff]
      %v488 = vld [vmem:[%s2] sm:$0xff]
      %v489 = vld [vmem:[%s2 + $0x8] sm:$0xff]
      %v490 = vld [vmem:[%s2 + $0x10] sm:$0xff]
      %v491 = vld [vmem:[%s2 + $0x18] sm:$0xff]
      %493 = vset.pattern.permute.xlu0 0
      %494 = vperm.xlu0 %493, %v488
      %v495 = vpop.permute.xlu0 %494
      %498 = vset.pattern.permute.xlu0 0
      %499 = vperm.xlu0 %498, %v489
      %v500 = vpop.permute.xlu0 %499
      %503 = vset.pattern.permute.xlu0 0
      %504 = vperm.xlu0 %503, %v490
      %v505 = vpop.permute.xlu0 %504
      %508 = vset.pattern.permute.xlu0 0
      %509 = vperm.xlu0 %508, %v491
      %v510 = vpop.permute.xlu0 %509
      %vm512 = vcmask 523264
      %v514 = vsel %vm512, %v256, 0
      %v517 = vsel %vm512, %v261, 0
      %v520 = vsel %vm512, %v266, 0
      %v523 = vsel %vm512, %v271, 0
      %525 = vmatprep.subr.mxu0 %v273
      %526 = vmatpush1.msra.mxu0 %v272
      %527 = vmatprep.subr.mxu0 %v276
      %528 = vmatpush1.msra.mxu0 %v275
      %529 = vmatprep.subr.mxu0 %v279
      %530 = vmatpush1.msra.mxu0 %v278
      %531 = vmatprep.subr.mxu0 %v282
      %532 = vmatpush1.msra.mxu0 %v281
      %533 = vmatprep.subr.mxu0 %v285
      %534 = vmatpush1.msra.mxu0 %v284
      %535 = vmatprep.subr.mxu0 %v288
      %536 = vmatpush1.msra.mxu0 %v287
      %537 = vmatprep.subr.mxu0 %v291
      %538 = vmatpush1.msra.mxu0 %v290
      %539 = vmatprep.subr.mxu0 %v294
      %540 = vmatpush1.msra.mxu0 %v293
      %541 = vmatprep.subr.mxu0 %v297
      %542 = vmatpush1.msra.mxu0 %v296
      %543 = vmatprep.subr.mxu0 %v300
      %544 = vmatpush1.msra.mxu0 %v299
      %545 = vmatprep.subr.mxu0 %v303
      %546 = vmatpush1.msra.mxu0 %v302
      %547 = vmatprep.subr.mxu0 %v306
      %548 = vmatpush1.msra.mxu0 %v305
      %549 = vmatprep.subr.mxu0 %v309
      %550 = vmatpush1.msra.mxu0 %v308
      %551 = vmatprep.subr.mxu0 %v312
      %552 = vmatpush1.msra.mxu0 %v311
      %553 = vmatprep.subr.mxu0 %v315
      %554 = vmatpush1.msra.mxu0 %v314
      %555 = vmatprep.subr.mxu0 %v318
      %556 = vmatpush1.msra.mxu0 %v317
      %557 = vmatprep.subr.mxu0 %v321
      %558 = vmatpush1.msra.mxu0 %v320
      %559 = vmatprep.subr.mxu0 %v324
      %560 = vmatpush1.msra.mxu0 %v323
      %561 = vmatprep.subr.mxu0 %v327
      %562 = vmatpush1.msra.mxu0 %v326
      %563 = vmatprep.subr.mxu0 %v330
      %564 = vmatpush1.msra.mxu0 %v329
      %565 = vmatprep.subr.mxu0 %v333
      %566 = vmatpush1.msra.mxu0 %v332
      %567 = vmatprep.subr.mxu0 %v336
      %568 = vmatpush1.msra.mxu0 %v335
      %569 = vmatprep.subr.mxu0 %v339
      %570 = vmatpush1.msra.mxu0 %v338
      %571 = vmatprep.subr.mxu0 %v342
      %572 = vmatpush1.msra.mxu0 %v341
      %573 = vmatprep.subr.mxu0 %v345
      %574 = vmatpush1.msra.mxu0 %v344
      %575 = vmatprep.subr.mxu0 %v348
      %576 = vmatpush1.msra.mxu0 %v347
      %577 = vmatprep.subr.mxu0 %v351
      %578 = vmatpush1.msra.mxu0 %v350
      %579 = vmatprep.subr.mxu0 %v354
      %580 = vmatpush1.msra.mxu0 %v353
      %581 = vmatprep.subr.mxu0 %v357
      %582 = vmatpush1.msra.mxu0 %v356
      %583 = vmatprep.subr.mxu0 %v360
      %584 = vmatpush1.msra.mxu0 %v359
      %585 = vmatprep.subr.mxu0 %v363
      %586 = vmatpush1.msra.mxu0 %v362
      %587 = vmatprep.subr.mxu0 %v366
      %588 = vmatpush1.msra.mxu0 %v365
      %589 = vmatprep.mubr.f32.mxu0 %v253
      %590 = vmatmul.mubr.f32.gmra.mrb[0].mxu0 %v252
      %v591 = vpop.f32.mrb[0].mxu0
      %v592 = vadd.f32 %v495, %v591
      %v593 = vpop.f32.mrb[0].mxu0
      %v594 = vadd.f32 %v495, %v593
      %595 = vmatprep.mubr.f32.mxu0 %v258
      %596 = vmatmul.mubr.f32.gmra.mrb[0].mxu0 %v257
      %v597 = vpop.f32.mrb[0].mxu0
      %v598 = vadd.f32 %v500, %v597
      %v599 = vpop.f32.mrb[0].mxu0
      %v600 = vadd.f32 %v500, %v599
      %601 = vmatprep.mubr.f32.mxu0 %v263
      %602 = vmatmul.mubr.f32.gmra.mrb[0].mxu0 %v262
      %v603 = vpop.f32.mrb[0].mxu0
      %v604 = vadd.f32 %v505, %v603
      %v605 = vpop.f32.mrb[0].mxu0
      %v606 = vadd.f32 %v505, %v605
      %607 = vmatprep.mubr.f32.mxu0 %v268
      %608 = vmatmul.mubr.f32.gmra.mrb[0].mxu0 %v267
      %v609 = vpop.f32.mrb[0].mxu0
      %v610 = vadd.f32 %v510, %v609
      %v611 = vpop.f32.mrb[0].mxu0
      %v612 = vadd.f32 %v510, %v611
      %613 = vdwg.mxu0
      %614 = vmatprep.subr.mxu0 %v369
      %615 = vmatpush1.msra.mxu0 %v368
      %616 = vmatprep.subr.mxu0 %v372
      %617 = vmatpush1.msra.mxu0 %v371
      %618 = vmatprep.subr.mxu0 %v375
      %619 = vmatpush1.msra.mxu0 %v374
      %620 = vmatprep.subr.mxu0 %v378
      %621 = vmatpush1.msra.mxu0 %v377
      %622 = vmatprep.subr.mxu0 %v381
      %623 = vmatpush1.msra.mxu0 %v380
      %624 = vmatprep.subr.mxu0 %v384
      %625 = vmatpush1.msra.mxu0 %v383
      %626 = vmatprep.subr.mxu0 %v387
      %627 = vmatpush1.msra.mxu0 %v386
      %628 = vmatprep.subr.mxu0 %v390
      %629 = vmatpush1.msra.mxu0 %v389
      %630 = vmatprep.subr.mxu0 %v393
      %631 = vmatpush1.msra.mxu0 %v392
      %632 = vmatprep.subr.mxu0 %v396
      %633 = vmatpush1.msra.mxu0 %v395
      %634 = vmatprep.subr.mxu0 %v399
      %635 = vmatpush1.msra.mxu0 %v398
      %636 = vmatprep.subr.mxu0 %v402
      %637 = vmatpush1.msra.mxu0 %v401
      %638 = vmatprep.subr.mxu0 %v405
      %639 = vmatpush1.msra.mxu0 %v404
      %640 = vmatprep.subr.mxu0 %v408
      %641 = vmatpush1.msra.mxu0 %v407
      %642 = vmatprep.subr.mxu0 %v411
      %643 = vmatpush1.msra.mxu0 %v410
      %644 = vmatprep.subr.mxu0 %v414
      %645 = vmatpush1.msra.mxu0 %v413
      %646 = vmatprep.subr.mxu0 %v417
      %647 = vmatpush1.msra.mxu0 %v416
      %648 = vmatprep.subr.mxu0 %v420
      %649 = vmatpush1.msra.mxu0 %v419
      %650 = vmatprep.subr.mxu0 %v423
      %651 = vmatpush1.msra.mxu0 %v422
      %652 = vmatprep.subr.mxu0 %v426
      %653 = vmatpush1.msra.mxu0 %v425
      %654 = vmatprep.subr.mxu0 %v429
      %655 = vmatpush1.msra.mxu0 %v428
      %656 = vmatprep.subr.mxu0 %v432
      %657 = vmatpush1.msra.mxu0 %v431
      %658 = vmatprep.subr.mxu0 %v435
      %659 = vmatpush1.msra.mxu0 %v434
      %660 = vmatprep.subr.mxu0 %v438
      %661 = vmatpush1.msra.mxu0 %v437
      %662 = vmatprep.subr.mxu0 %v441
      %663 = vmatpush1.msra.mxu0 %v440
      %664 = vmatprep.subr.mxu0 %v444
      %665 = vmatpush1.msra.mxu0 %v443
      %666 = vmatprep.subr.mxu0 %v447
      %667 = vmatpush1.msra.mxu0 %v446
      %668 = vmatprep.subr.mxu0 %v450
      %669 = vmatpush1.msra.mxu0 %v449
      %670 = vmatprep.subr.mxu0 %v453
      %671 = vmatpush1.msra.mxu0 %v452
      %672 = vmatprep.subr.mxu0 %v456
      %673 = vmatpush1.msra.mxu0 %v455
      %674 = vmatprep.subr.mxu0 %v459
      %675 = vmatpush1.msra.mxu0 %v458
      %676 = vmatprep.subr.mxu0 %v462
      %677 = vmatpush1.msra.mxu0 %v461
      %678 = vmatprep.mubr.f32.mxu0 %v255
      %679 = vmatmul.mubr.f32.gmra.mrb[0].mxu0 %v254
      %v680 = vpop.f32.mrb[0].mxu0
      %v681 = vadd.f32 %v592, %v680
      %v682 = vpop.f32.mrb[0].mxu0
      %v683 = vadd.f32 %v594, %v682
      %684 = vmatprep.mubr.f32.mxu0 %v260
      %685 = vmatmul.mubr.f32.gmra.mrb[0].mxu0 %v259
      %v686 = vpop.f32.mrb[0].mxu0
      %v687 = vadd.f32 %v598, %v686
      %v688 = vpop.f32.mrb[0].mxu0
      %v689 = vadd.f32 %v600, %v688
      %690 = vmatprep.mubr.f32.mxu0 %v265
      %691 = vmatmul.mubr.f32.gmra.mrb[0].mxu0 %v264
      %v692 = vpop.f32.mrb[0].mxu0
      %v693 = vadd.f32 %v604, %v692
      %v694 = vpop.f32.mrb[0].mxu0
      %v695 = vadd.f32 %v606, %v694
      %696 = vmatprep.mubr.f32.mxu0 %v270
      %697 = vmatmul.mubr.f32.gmra.mrb[0].mxu0 %v269
      %v698 = vpop.f32.mrb[0].mxu0
      %v699 = vadd.f32 %v610, %v698
      %v700 = vpop.f32.mrb[0].mxu0
      %v701 = vadd.f32 %v612, %v700
      %702 = vdwg.mxu0
      %703 = vmatprep.subr.mxu0 %v465
      %704 = vmatpush1.msra.mxu0 %v464
      %705 = vmatprep.subr.mxu0 %v468
      %706 = vmatpush1.msra.mxu0 %v467
      %707 = vmatprep.subr.mxu0 %v471
      %708 = vmatpush1.msra.mxu0 %v470
      %709 = vmatprep.subr.mxu0 %v474
      %710 = vmatpush1.msra.mxu0 %v473
      %711 = vmatprep.subr.mxu0 %v477
      %712 = vmatpush1.msra.mxu0 %v476
      %713 = vmatprep.subr.mxu0 %v480
      %714 = vmatpush1.msra.mxu0 %v479
      %715 = vmatprep.subr.mxu0 %v483
      %716 = vmatpush1.msra.mxu0 %v482
      %717 = vmatprep.subr.mxu0 %v486
      %718 = vmatpush1.msra.mxu0 %v485
      %719 = vmatprep.subr.mxu0 0.0
      %720 = vmatpush1.msra.mxu0 0.0
      %721 = vmatprep.subr.mxu0 0.0
      %722 = vmatpush1.msra.mxu0 0.0
      %723 = vmatprep.subr.mxu0 0.0
      %724 = vmatpush1.msra.mxu0 0.0
      %725 = vmatprep.subr.mxu0 0.0
      %726 = vmatpush1.msra.mxu0 0.0
      %727 = vmatprep.subr.mxu0 0.0
      %728 = vmatpush1.msra.mxu0 0.0
      %729 = vmatprep.subr.mxu0 0.0
      %730 = vmatpush1.msra.mxu0 0.0
      %731 = vmatprep.subr.mxu0 0.0
      %732 = vmatpush1.msra.mxu0 0.0
      %733 = vmatprep.subr.mxu0 0.0
      %734 = vmatpush1.msra.mxu0 0.0
      %735 = vmatprep.subr.mxu0 0.0
      %736 = vmatpush1.msra.mxu0 0.0
      %737 = vmatprep.subr.mxu0 0.0
      %738 = vmatpush1.msra.mxu0 0.0
      %739 = vmatprep.subr.mxu0 0.0
      %740 = vmatpush1.msra.mxu0 0.0
      %741 = vmatprep.subr.mxu0 0.0
      %742 = vmatpush1.msra.mxu0 0.0
      %743 = vmatprep.subr.mxu0 0.0
      %744 = vmatpush1.msra.mxu0 0.0
      %745 = vmatprep.subr.mxu0 0.0
      %746 = vmatpush1.msra.mxu0 0.0
      %747 = vmatprep.subr.mxu0 0.0
      %748 = vmatpush1.msra.mxu0 0.0
      %749 = vmatprep.subr.mxu0 0.0
      %750 = vmatpush1.msra.mxu0 0.0
      %751 = vmatprep.subr.mxu0 0.0
      %752 = vmatpush1.msra.mxu0 0.0
      %753 = vmatprep.subr.mxu0 0.0
      %754 = vmatpush1.msra.mxu0 0.0
      %755 = vmatprep.subr.mxu0 0.0
      %756 = vmatpush1.msra.mxu0 0.0
      %757 = vmatprep.subr.mxu0 0.0
      %758 = vmatpush1.msra.mxu0 0.0
      %759 = vmatprep.subr.mxu0 0.0
      %760 = vmatpush1.msra.mxu0 0.0
      %761 = vmatprep.subr.mxu0 0.0
      %762 = vmatpush1.msra.mxu0 0.0
      %763 = vmatprep.subr.mxu0 0.0
      %764 = vmatpush1.msra.mxu0 0.0
      %765 = vmatprep.subr.mxu0 0.0
      %766 = vmatpush1.msra.mxu0 0.0
      %767 = vmatprep.mubr.f32.mxu0 0.0
      %768 = vmatmul.mubr.f32.gmra.mrb[0].mxu0 %v514
      %v769 = vpop.f32.mrb[0].mxu0
      %v770 = vadd.f32 %v681, %v769
      %v771 = vpop.f32.mrb[0].mxu0
      %v772 = vadd.f32 %v683, %v771
      %773 = vmatprep.mubr.f32.mxu0 0.0
      %774 = vmatmul.mubr.f32.gmra.mrb[0].mxu0 %v517
      %v775 = vpop.f32.mrb[0].mxu0
      %v776 = vadd.f32 %v687, %v775
      %v777 = vpop.f32.mrb[0].mxu0
      %v778 = vadd.f32 %v689, %v777
      %779 = vmatprep.mubr.f32.mxu0 0.0
      %780 = vmatmul.mubr.f32.gmra.mrb[0].mxu0 %v520
      %v781 = vpop.f32.mrb[0].mxu0
      %v782 = vadd.f32 %v693, %v781
      %v783 = vpop.f32.mrb[0].mxu0
      %v784 = vadd.f32 %v695, %v783
      %785 = vmatprep.mubr.f32.mxu0 0.0
      %786 = vmatmul.mubr.f32.gmra.mrb[0].mxu0 %v523
      %v787 = vpop.f32.mrb[0].mxu0
      %v788 = vadd.f32 %v699, %v787
      %v789 = vpop.f32.mrb[0].mxu0
      %v790 = vadd.f32 %v701, %v789
      %791 = vdwg.mxu0
      %792 = vmatprep.subr.mxu0 0.0
      %793 = vmatpush1.msra.mxu0 %v274
      %794 = vmatprep.subr.mxu0 0.0
      %795 = vmatpush1.msra.mxu0 %v277
      %796 = vmatprep.subr.mxu0 0.0
      %797 = vmatpush1.msra.mxu0 %v280
      %798 = vmatprep.subr.mxu0 0.0
      %799 = vmatpush1.msra.mxu0 %v283
      %800 = vmatprep.subr.mxu0 0.0
      %801 = vmatpush1.msra.mxu0 %v286
      %802 = vmatprep.subr.mxu0 0.0
      %803 = vmatpush1.msra.mxu0 %v289
      %804 = vmatprep.subr.mxu0 0.0
      %805 = vmatpush1.msra.mxu0 %v292
      %806 = vmatprep.subr.mxu0 0.0
      %807 = vmatpush1.msra.mxu0 %v295
      %808 = vmatprep.subr.mxu0 0.0
      %809 = vmatpush1.msra.mxu0 %v298
      %810 = vmatprep.subr.mxu0 0.0
      %811 = vmatpush1.msra.mxu0 %v301
      %812 = vmatprep.subr.mxu0 0.0
      %813 = vmatpush1.msra.mxu0 %v304
      %814 = vmatprep.subr.mxu0 0.0
      %815 = vmatpush1.msra.mxu0 %v307
      %816 = vmatprep.subr.mxu0 0.0
      %817 = vmatpush1.msra.mxu0 %v310
      %818 = vmatprep.subr.mxu0 0.0
      %819 = vmatpush1.msra.mxu0 %v313
      %820 = vmatprep.subr.mxu0 0.0
      %821 = vmatpush1.msra.mxu0 %v316
      %822 = vmatprep.subr.mxu0 0.0
      %823 = vmatpush1.msra.mxu0 %v319
      %824 = vmatprep.subr.mxu0 0.0
      %825 = vmatpush1.msra.mxu0 %v322
      %826 = vmatprep.subr.mxu0 0.0
      %827 = vmatpush1.msra.mxu0 %v325
      %828 = vmatprep.subr.mxu0 0.0
      %829 = vmatpush1.msra.mxu0 %v328
      %830 = vmatprep.subr.mxu0 0.0
      %831 = vmatpush1.msra.mxu0 %v331
      %832 = vmatprep.subr.mxu0 0.0
      %833 = vmatpush1.msra.mxu0 %v334
      %834 = vmatprep.subr.mxu0 0.0
      %835 = vmatpush1.msra.mxu0 %v337
      %836 = vmatprep.subr.mxu0 0.0
      %837 = vmatpush1.msra.mxu0 %v340
      %838 = vmatprep.subr.mxu0 0.0
      %839 = vmatpush1.msra.mxu0 %v343
      %840 = vmatprep.subr.mxu0 0.0
      %841 = vmatpush1.msra.mxu0 %v346
      %842 = vmatprep.subr.mxu0 0.0
      %843 = vmatpush1.msra.mxu0 %v349
      %844 = vmatprep.subr.mxu0 0.0
      %845 = vmatpush1.msra.mxu0 %v352
      %846 = vmatprep.subr.mxu0 0.0
      %847 = vmatpush1.msra.mxu0 %v355
      %848 = vmatprep.subr.mxu0 0.0
      %849 = vmatpush1.msra.mxu0 %v358
      %850 = vmatprep.subr.mxu0 0.0
      %851 = vmatpush1.msra.mxu0 %v361
      %852 = vmatprep.subr.mxu0 0.0
      %853 = vmatpush1.msra.mxu0 %v364
      %854 = vmatprep.subr.mxu0 0.0
      %855 = vmatpush1.msra.mxu0 %v367
      %856 = vmatprep.mubr.f32.mxu0 %v253
      %857 = vmatmul.mubr.f32.gmra.mrb[0].mxu0 %v252
      %v858 = vpop.f32.mrb[0].mxu0
      %v859 = vadd.f32 %v495, %v858
      %v860 = vpop.f32.mrb[0].mxu0
      %861 = vmatprep.mubr.f32.mxu0 %v258
      %862 = vmatmul.mubr.f32.gmra.mrb[0].mxu0 %v257
      %v863 = vpop.f32.mrb[0].mxu0
      %v864 = vadd.f32 %v500, %v863
      %v865 = vpop.f32.mrb[0].mxu0
      %866 = vmatprep.mubr.f32.mxu0 %v263
      %867 = vmatmul.mubr.f32.gmra.mrb[0].mxu0 %v262
      %v868 = vpop.f32.mrb[0].mxu0
      %v869 = vadd.f32 %v505, %v868
      %v870 = vpop.f32.mrb[0].mxu0
      %871 = vmatprep.mubr.f32.mxu0 %v268
      %872 = vmatmul.mubr.f32.gmra.mrb[0].mxu0 %v267
      %v873 = vpop.f32.mrb[0].mxu0
      %v874 = vadd.f32 %v510, %v873
      %v875 = vpop.f32.mrb[0].mxu0
      %876 = vdwg.mxu0
      %877 = vmatprep.subr.mxu0 0.0
      %878 = vmatpush1.msra.mxu0 %v370
      %879 = vmatprep.subr.mxu0 0.0
      %880 = vmatpush1.msra.mxu0 %v373
      %881 = vmatprep.subr.mxu0 0.0
      %882 = vmatpush1.msra.mxu0 %v376
      %883 = vmatprep.subr.mxu0 0.0
      %884 = vmatpush1.msra.mxu0 %v379
      %885 = vmatprep.subr.mxu0 0.0
      %886 = vmatpush1.msra.mxu0 %v382
      %887 = vmatprep.subr.mxu0 0.0
      %888 = vmatpush1.msra.mxu0 %v385
      %889 = vmatprep.subr.mxu0 0.0
      %890 = vmatpush1.msra.mxu0 %v388
      %891 = vmatprep.subr.mxu0 0.0
      %892 = vmatpush1.msra.mxu0 %v391
      %893 = vmatprep.subr.mxu0 0.0
      %894 = vmatpush1.msra.mxu0 %v394
      %895 = vmatprep.subr.mxu0 0.0
      %896 = vmatpush1.msra.mxu0 %v397
      %897 = vmatprep.subr.mxu0 0.0
      %898 = vmatpush1.msra.mxu0 %v400
      %899 = vmatprep.subr.mxu0 0.0
      %900 = vmatpush1.msra.mxu0 %v403
      %901 = vmatprep.subr.mxu0 0.0
      %902 = vmatpush1.msra.mxu0 %v406
      %903 = vmatprep.subr.mxu0 0.0
      %904 = vmatpush1.msra.mxu0 %v409
      %905 = vmatprep.subr.mxu0 0.0
      %906 = vmatpush1.msra.mxu0 %v412
      %907 = vmatprep.subr.mxu0 0.0
      %908 = vmatpush1.msra.mxu0 %v415
      %909 = vmatprep.subr.mxu0 0.0
      %910 = vmatpush1.msra.mxu0 %v418
      %911 = vmatprep.subr.mxu0 0.0
      %912 = vmatpush1.msra.mxu0 %v421
      %913 = vmatprep.subr.mxu0 0.0
      %914 = vmatpush1.msra.mxu0 %v424
      %915 = vmatprep.subr.mxu0 0.0
      %916 = vmatpush1.msra.mxu0 %v427
      %917 = vmatprep.subr.mxu0 0.0
      %918 = vmatpush1.msra.mxu0 %v430
      %919 = vmatprep.subr.mxu0 0.0
      %920 = vmatpush1.msra.mxu0 %v433
      %921 = vmatprep.subr.mxu0 0.0
      %922 = vmatpush1.msra.mxu0 %v436
      %923 = vmatprep.subr.mxu0 0.0
      %924 = vmatpush1.msra.mxu0 %v439
      %925 = vmatprep.subr.mxu0 0.0
      %926 = vmatpush1.msra.mxu0 %v442
      %927 = vmatprep.subr.mxu0 0.0
      %928 = vmatpush1.msra.mxu0 %v445
      %929 = vmatprep.subr.mxu0 0.0
      %930 = vmatpush1.msra.mxu0 %v448
      %931 = vmatprep.subr.mxu0 0.0
      %932 = vmatpush1.msra.mxu0 %v451
      %933 = vmatprep.subr.mxu0 0.0
      %934 = vmatpush1.msra.mxu0 %v454
      %935 = vmatprep.subr.mxu0 0.0
      %936 = vmatpush1.msra.mxu0 %v457
      %937 = vmatprep.subr.mxu0 0.0
      %938 = vmatpush1.msra.mxu0 %v460
      %939 = vmatprep.subr.mxu0 0.0
      %940 = vmatpush1.msra.mxu0 %v463
      %941 = vmatprep.mubr.f32.mxu0 %v255
      %942 = vmatmul.mubr.f32.gmra.mrb[0].mxu0 %v254
      %v943 = vpop.f32.mrb[0].mxu0
      %v944 = vadd.f32 %v859, %v943
      %v945 = vpop.f32.mrb[0].mxu0
      %946 = vmatprep.mubr.f32.mxu0 %v260
      %947 = vmatmul.mubr.f32.gmra.mrb[0].mxu0 %v259
      %v948 = vpop.f32.mrb[0].mxu0
      %v949 = vadd.f32 %v864, %v948
      %v950 = vpop.f32.mrb[0].mxu0
      %951 = vmatprep.mubr.f32.mxu0 %v265
      %952 = vmatmul.mubr.f32.gmra.mrb[0].mxu0 %v264
      %v953 = vpop.f32.mrb[0].mxu0
      %v954 = vadd.f32 %v869, %v953
      %v955 = vpop.f32.mrb[0].mxu0
      %956 = vmatprep.mubr.f32.mxu0 %v270
      %957 = vmatmul.mubr.f32.gmra.mrb[0].mxu0 %v269
      %v958 = vpop.f32.mrb[0].mxu0
      %v959 = vadd.f32 %v874, %v958
      %v960 = vpop.f32.mrb[0].mxu0
      %961 = vdwg.mxu0
      %962 = vmatprep.subr.mxu0 0.0
      %963 = vmatpush1.msra.mxu0 %v466
      %964 = vmatprep.subr.mxu0 0.0
      %965 = vmatpush1.msra.mxu0 %v469
      %966 = vmatprep.subr.mxu0 0.0
      %967 = vmatpush1.msra.mxu0 %v472
      %968 = vmatprep.subr.mxu0 0.0
      %969 = vmatpush1.msra.mxu0 %v475
      %970 = vmatprep.subr.mxu0 0.0
      %971 = vmatpush1.msra.mxu0 %v478
      %972 = vmatprep.subr.mxu0 0.0
      %973 = vmatpush1.msra.mxu0 %v481
      %974 = vmatprep.subr.mxu0 0.0
      %975 = vmatpush1.msra.mxu0 %v484
      %976 = vmatprep.subr.mxu0 0.0
      %977 = vmatpush1.msra.mxu0 %v487
      %978 = vmatprep.subr.mxu0 0.0
      %979 = vmatpush1.msra.mxu0 0.0
      %980 = vmatprep.subr.mxu0 0.0
      %981 = vmatpush1.msra.mxu0 0.0
      %982 = vmatprep.subr.mxu0 0.0
      %983 = vmatpush1.msra.mxu0 0.0
      %984 = vmatprep.subr.mxu0 0.0
      %985 = vmatpush1.msra.mxu0 0.0
      %986 = vmatprep.subr.mxu0 0.0
      %987 = vmatpush1.msra.mxu0 0.0
      %988 = vmatprep.subr.mxu0 0.0
      %989 = vmatpush1.msra.mxu0 0.0
      %990 = vmatprep.subr.mxu0 0.0
      %991 = vmatpush1.msra.mxu0 0.0
      %992 = vmatprep.subr.mxu0 0.0
      %993 = vmatpush1.msra.mxu0 0.0
      %994 = vmatprep.subr.mxu0 0.0
      %995 = vmatpush1.msra.mxu0 0.0
      %996 = vmatprep.subr.mxu0 0.0
      %997 = vmatpush1.msra.mxu0 0.0
      %998 = vmatprep.subr.mxu0 0.0
      %999 = vmatpush1.msra.mxu0 0.0
      %1000 = vmatprep.subr.mxu0 0.0
      %1001 = vmatpush1.msra.mxu0 0.0
      %1002 = vmatprep.subr.mxu0 0.0
      %1003 = vmatpush1.msra.mxu0 0.0
      %1004 = vmatprep.subr.mxu0 0.0
      %1005 = vmatpush1.msra.mxu0 0.0
      %1006 = vmatprep.subr.mxu0 0.0
      %1007 = vmatpush1.msra.mxu0 0.0
      %1008 = vmatprep.subr.mxu0 0.0
      %1009 = vmatpush1.msra.mxu0 0.0
      %1010 = vmatprep.subr.mxu0 0.0
      %1011 = vmatpush1.msra.mxu0 0.0
      %1012 = vmatprep.subr.mxu0 0.0
      %1013 = vmatpush1.msra.mxu0 0.0
      %1014 = vmatprep.subr.mxu0 0.0
      %1015 = vmatpush1.msra.mxu0 0.0
      %1016 = vmatprep.subr.mxu0 0.0
      %1017 = vmatpush1.msra.mxu0 0.0
      %1018 = vmatprep.subr.mxu0 0.0
      %1019 = vmatpush1.msra.mxu0 0.0
      %1020 = vmatprep.subr.mxu0 0.0
      %1021 = vmatpush1.msra.mxu0 0.0
      %1022 = vmatprep.subr.mxu0 0.0
      %1023 = vmatpush1.msra.mxu0 0.0
      %1024 = vmatprep.subr.mxu0 0.0
      %1025 = vmatpush1.msra.mxu0 0.0
      %1026 = vmatprep.mubr.f32.mxu0 0.0
      %1027 = vmatmul.mubr.f32.gmra.mrb[0].mxu0 %v514
      %v1028 = vpop.f32.mrb[0].mxu0
      %v1029 = vadd.f32 %v944, %v1028
      %v1030 = vpop.f32.mrb[0].mxu0
      %1031 = vmatprep.mubr.f32.mxu0 0.0
      %1032 = vmatmul.mubr.f32.gmra.mrb[0].mxu0 %v517
      %v1033 = vpop.f32.mrb[0].mxu0
      %v1034 = vadd.f32 %v949, %v1033
      %v1035 = vpop.f32.mrb[0].mxu0
      %1036 = vmatprep.mubr.f32.mxu0 0.0
      %1037 = vmatmul.mubr.f32.gmra.mrb[0].mxu0 %v520
      %v1038 = vpop.f32.mrb[0].mxu0
      %v1039 = vadd.f32 %v954, %v1038
      %v1040 = vpop.f32.mrb[0].mxu0
      %1041 = vmatprep.mubr.f32.mxu0 0.0
      %1042 = vmatmul.mubr.f32.gmra.mrb[0].mxu0 %v523
      %v1043 = vpop.f32.mrb[0].mxu0
      %v1044 = vadd.f32 %v959, %v1043
      %v1045 = vpop.f32.mrb[0].mxu0
      %1046 = vdwg.mxu0
      %v1047 = vmax.f32 %v770, 0.0
      %v1048 = vmax.f32 %v772, 0.0
      %v1049 = vmax.f32 %v1029, 0.0
      %v1050 = vmax.f32 %v776, 0.0
      %v1051 = vmax.f32 %v778, 0.0
      %v1052 = vmax.f32 %v1034, 0.0
      %v1053 = vmax.f32 %v782, 0.0
      %v1054 = vmax.f32 %v784, 0.0
      %v1055 = vmax.f32 %v1039, 0.0
      %v1056 = vmax.f32 %v788, 0.0
      %v1057 = vmax.f32 %v790, 0.0
      %v1058 = vmax.f32 %v1044, 0.0
      %v1059 = vmax.f32 %v1047, %v1050
      %v1060 = vmax.f32 %v1048, %v1051
      %v1061 = vmax.f32 %v1049, %v1052
      %v1062 = vmax.f32 %v1053, %v1056
      %v1063 = vmax.f32 %v1054, %v1057
      %v1064 = vmax.f32 %v1055, %v1058
      %1068 = vrot.lane.b32.xlu0 %v1062, 1
      %v1069 = vpop.permute.xlu0 %1068
      %1070 = vrot.lane.b32.xlu0 %v1063, 1
      %v1071 = vpop.permute.xlu0 %1070
      %1072 = vrot.lane.b32.xlu0 %v1064, 1
      %v1073 = vpop.permute.xlu0 %1072
      %vm1074 = vcmask 7168
      %v1075 = vsel %vm1074, %v1069, %v1071
      %v1076 = vsel %vm1074, %v1071, %v1073
      %v1080 = vsel %vm1074, 0.0, %v1069
      %1084 = vrot.lane.b32.xlu0 %v1059, 127
      %v1085 = vpop.permute.xlu0 %1084
      %1086 = vrot.lane.b32.xlu0 %v1060, 127
      %v1087 = vpop.permute.xlu0 %1086
      %1088 = vrot.lane.b32.xlu0 %v1061, 127
      %v1089 = vpop.permute.xlu0 %1088
      %vm1090 = vcmask 1039360
      %v1091 = vsel %vm1090, %v1085, %v1087
      %v1092 = vsel %vm1090, %v1087, %v1089
      %vm1096 = vcmask 760832
      %v1097 = vsel %vm1096, %v1089, 0.0
      %v1098 = vld [vmem:[%s3] sm:$0xff]
      %v1099 = vld [vmem:[%s3 + $0x8] sm:$0xff]
      %v1100 = vld [vmem:[%s3 + $0x10] sm:$0xff]
      %v1101 = vld [vmem:[%s3 + $0x18] sm:$0xff]
      %v1102 = vld [vmem:[%s4] sm:$0xff]
      %v1103 = vld [vmem:[%s4 + $0x8] sm:$0xff]
      %v1104 = vld [vmem:[%s4 + $0x10] sm:$0xff]
      %v1105 = vld [vmem:[%s4 + $0x18] sm:$0xff]
      %1107 = vset.pattern.permute.xlu0 0
      %1108 = vperm.xlu0 %1107, %v1102
      %v1109 = vpop.permute.xlu0 %1108
      %1112 = vset.pattern.permute.xlu0 0
      %1113 = vperm.xlu0 %1112, %v1103
      %v1114 = vpop.permute.xlu0 %1113
      %1117 = vset.pattern.permute.xlu0 0
      %1118 = vperm.xlu0 %1117, %v1104
      %v1119 = vpop.permute.xlu0 %1118
      %1122 = vset.pattern.permute.xlu0 0
      %1123 = vperm.xlu0 %1122, %v1105
      %v1124 = vpop.permute.xlu0 %1123
      %vm1126 = vcmask 261120
      %v1128 = vsel %vm1126, %v1098, 0
      %v1131 = vsel %vm1126, %v1099, 0
      %v1134 = vsel %vm1126, %v1100, 0
      %v1137 = vsel %vm1126, %v1101, 0
      %1139 = vmatprep.subr.mxu0 %v1075
      %1140 = vmatpush1.msra.mxu0 %v1080
      %1141 = vmatprep.subr.mxu0 %v1060
      %1142 = vmatpush1.msra.mxu0 %v1059
      %1143 = vmatprep.subr.mxu0 %v1063
      %1144 = vmatpush1.msra.mxu0 %v1062
      %1145 = vmatprep.subr.mxu0 %v1092
      %1146 = vmatpush1.msra.mxu0 %v1091
      %1147 = vmatprep.subr.mxu0 0.0
      %1148 = vmatpush1.msra.mxu0 0.0
      %1149 = vmatprep.subr.mxu0 0.0
      %1150 = vmatpush1.msra.mxu0 0.0
      %1151 = vmatprep.subr.mxu0 0.0
      %1152 = vmatpush1.msra.mxu0 0.0
      %1153 = vmatprep.subr.mxu0 0.0
      %1154 = vmatpush1.msra.mxu0 0.0
      %1155 = vmatprep.subr.mxu0 0.0
      %1156 = vmatpush1.msra.mxu0 0.0
      %1157 = vmatprep.subr.mxu0 0.0
      %1158 = vmatpush1.msra.mxu0 0.0
      %1159 = vmatprep.subr.mxu0 0.0
      %1160 = vmatpush1.msra.mxu0 0.0
      %1161 = vmatprep.subr.mxu0 0.0
      %1162 = vmatpush1.msra.mxu0 0.0
      %1163 = vmatprep.subr.mxu0 0.0
      %1164 = vmatpush1.msra.mxu0 0.0
      %1165 = vmatprep.subr.mxu0 0.0
      %1166 = vmatpush1.msra.mxu0 0.0
      %1167 = vmatprep.subr.mxu0 0.0
      %1168 = vmatpush1.msra.mxu0 0.0
      %1169 = vmatprep.subr.mxu0 0.0
      %1170 = vmatpush1.msra.mxu0 0.0
      %1171 = vmatprep.subr.mxu0 0.0
      %1172 = vmatpush1.msra.mxu0 0.0
      %1173 = vmatprep.subr.mxu0 0.0
      %1174 = vmatpush1.msra.mxu0 0.0
      %1175 = vmatprep.subr.mxu0 0.0
      %1176 = vmatpush1.msra.mxu0 0.0
      %1177 = vmatprep.subr.mxu0 0.0
      %1178 = vmatpush1.msra.mxu0 0.0
      %1179 = vmatprep.subr.mxu0 0.0
      %1180 = vmatpush1.msra.mxu0 0.0
      %1181 = vmatprep.subr.mxu0 0.0
      %1182 = vmatpush1.msra.mxu0 0.0
      %1183 = vmatprep.subr.mxu0 0.0
      %1184 = vmatpush1.msra.mxu0 0.0
      %1185 = vmatprep.subr.mxu0 0.0
      %1186 = vmatpush1.msra.mxu0 0.0
      %1187 = vmatprep.subr.mxu0 0.0
      %1188 = vmatpush1.msra.mxu0 0.0
      %1189 = vmatprep.subr.mxu0 0.0
      %1190 = vmatpush1.msra.mxu0 0.0
      %1191 = vmatprep.subr.mxu0 0.0
      %1192 = vmatpush1.msra.mxu0 0.0
      %1193 = vmatprep.subr.mxu0 0.0
      %1194 = vmatpush1.msra.mxu0 0.0
      %1195 = vmatprep.subr.mxu0 0.0
      %1196 = vmatpush1.msra.mxu0 0.0
      %1197 = vmatprep.subr.mxu0 0.0
      %1198 = vmatpush1.msra.mxu0 0.0
      %1199 = vmatprep.subr.mxu0 0.0
      %1200 = vmatpush1.msra.mxu0 0.0
      %1201 = vmatprep.subr.mxu0 0.0
      %1202 = vmatpush1.msra.mxu0 0.0
      %1203 = vmatprep.mubr.f32.mxu0 0.0
      %1204 = vmatmul.mubr.f32.gmra.mrb[0].mxu0 %v1128
      %v1205 = vpop.f32.mrb[0].mxu0
      %v1206 = vadd.f32 %v1109, %v1205
      %v1207 = vpop.f32.mrb[0].mxu0
      %v1208 = vadd.f32 %v1109, %v1207
      %1209 = vmatprep.mubr.f32.mxu0 0.0
      %1210 = vmatmul.mubr.f32.gmra.mrb[0].mxu0 %v1131
      %v1211 = vpop.f32.mrb[0].mxu0
      %v1212 = vadd.f32 %v1114, %v1211
      %v1213 = vpop.f32.mrb[0].mxu0
      %v1214 = vadd.f32 %v1114, %v1213
      %1215 = vmatprep.mubr.f32.mxu0 0.0
      %1216 = vmatmul.mubr.f32.gmra.mrb[0].mxu0 %v1134
      %v1217 = vpop.f32.mrb[0].mxu0
      %v1218 = vadd.f32 %v1119, %v1217
      %v1219 = vpop.f32.mrb[0].mxu0
      %v1220 = vadd.f32 %v1119, %v1219
      %1221 = vmatprep.mubr.f32.mxu0 0.0
      %1222 = vmatmul.mubr.f32.gmra.mrb[0].mxu0 %v1137
      %v1223 = vpop.f32.mrb[0].mxu0
      %v1224 = vadd.f32 %v1124, %v1223
      %v1225 = vpop.f32.mrb[0].mxu0
      %v1226 = vadd.f32 %v1124, %v1225
      %1227 = vdwg.mxu0
      %1228 = vmatprep.subr.mxu0 0.0
      %1229 = vmatpush1.msra.mxu0 %v1076
      %1230 = vmatprep.subr.mxu0 0.0
      %1231 = vmatpush1.msra.mxu0 %v1061
      %1232 = vmatprep.subr.mxu0 0.0
      %1233 = vmatpush1.msra.mxu0 %v1064
      %1234 = vmatprep.subr.mxu0 0.0
      %1235 = vmatpush1.msra.mxu0 %v1097
      %1236 = vmatprep.subr.mxu0 0.0
      %1237 = vmatpush1.msra.mxu0 0.0
      %1238 = vmatprep.subr.mxu0 0.0
      %1239 = vmatpush1.msra.mxu0 0.0
      %1240 = vmatprep.subr.mxu0 0.0
      %1241 = vmatpush1.msra.mxu0 0.0
      %1242 = vmatprep.subr.mxu0 0.0
      %1243 = vmatpush1.msra.mxu0 0.0
      %1244 = vmatprep.subr.mxu0 0.0
      %1245 = vmatpush1.msra.mxu0 0.0
      %1246 = vmatprep.subr.mxu0 0.0
      %1247 = vmatpush1.msra.mxu0 0.0
      %1248 = vmatprep.subr.mxu0 0.0
      %1249 = vmatpush1.msra.mxu0 0.0
      %1250 = vmatprep.subr.mxu0 0.0
      %1251 = vmatpush1.msra.mxu0 0.0
      %1252 = vmatprep.subr.mxu0 0.0
      %1253 = vmatpush1.msra.mxu0 0.0
      %1254 = vmatprep.subr.mxu0 0.0
      %1255 = vmatpush1.msra.mxu0 0.0
      %1256 = vmatprep.subr.mxu0 0.0
      %1257 = vmatpush1.msra.mxu0 0.0
      %1258 = vmatprep.subr.mxu0 0.0
      %1259 = vmatpush1.msra.mxu0 0.0
      %1260 = vmatprep.subr.mxu0 0.0
      %1261 = vmatpush1.msra.mxu0 0.0
      %1262 = vmatprep.subr.mxu0 0.0
      %1263 = vmatpush1.msra.mxu0 0.0
      %1264 = vmatprep.subr.mxu0 0.0
      %1265 = vmatpush1.msra.mxu0 0.0
      %1266 = vmatprep.subr.mxu0 0.0
      %1267 = vmatpush1.msra.mxu0 0.0
      %1268 = vmatprep.subr.mxu0 0.0
      %1269 = vmatpush1.msra.mxu0 0.0
      %1270 = vmatprep.subr.mxu0 0.0
      %1271 = vmatpush1.msra.mxu0 0.0
      %1272 = vmatprep.subr.mxu0 0.0
      %1273 = vmatpush1.msra.mxu0 0.0
      %1274 = vmatprep.subr.mxu0 0.0
      %1275 = vmatpush1.msra.mxu0 0.0
      %1276 = vmatprep.subr.mxu0 0.0
      %1277 = vmatpush1.msra.mxu0 0.0
      %1278 = vmatprep.subr.mxu0 0.0
      %1279 = vmatpush1.msra.mxu0 0.0
      %1280 = vmatprep.subr.mxu0 0.0
      %1281 = vmatpush1.msra.mxu0 0.0
      %1282 = vmatprep.subr.mxu0 0.0
      %1283 = vmatpush1.msra.mxu0 0.0
      %1284 = vmatprep.subr.mxu0 0.0
      %1285 = vmatpush1.msra.mxu0 0.0
      %1286 = vmatprep.subr.mxu0 0.0
      %1287 = vmatpush1.msra.mxu0 0.0
      %1288 = vmatprep.subr.mxu0 0.0
      %1289 = vmatpush1.msra.mxu0 0.0
      %1290 = vmatprep.subr.mxu0 0.0
      %1291 = vmatpush1.msra.mxu0 0.0
      %1292 = vmatprep.mubr.f32.mxu0 0.0
      %1293 = vmatmul.mubr.f32.gmra.mrb[0].mxu0 %v1128
      %v1294 = vpop.f32.mrb[0].mxu0
      %v1295 = vadd.f32 %v1109, %v1294
      %v1296 = vpop.f32.mrb[0].mxu0
      %1297 = vmatprep.mubr.f32.mxu0 0.0
      %1298 = vmatmul.mubr.f32.gmra.mrb[0].mxu0 %v1131
      %v1299 = vpop.f32.mrb[0].mxu0
      %v1300 = vadd.f32 %v1114, %v1299
      %v1301 = vpop.f32.mrb[0].mxu0
      %1302 = vmatprep.mubr.f32.mxu0 0.0
      %1303 = vmatmul.mubr.f32.gmra.mrb[0].mxu0 %v1134
      %v1304 = vpop.f32.mrb[0].mxu0
      %v1305 = vadd.f32 %v1119, %v1304
      %v1306 = vpop.f32.mrb[0].mxu0
      %1307 = vmatprep.mubr.f32.mxu0 0.0
      %1308 = vmatmul.mubr.f32.gmra.mrb[0].mxu0 %v1137
      %v1309 = vpop.f32.mrb[0].mxu0
      %v1310 = vadd.f32 %v1124, %v1309
      %v1311 = vpop.f32.mrb[0].mxu0
      %1312 = vdwg.mxu0
      %v1313 = vmax.f32 %v1206, 0.0
      %v1314 = vmax.f32 %v1208, 0.0
      %v1315 = vmax.f32 %v1295, 0.0
      %v1316 = vmax.f32 %v1212, 0.0
      %v1317 = vmax.f32 %v1214, 0.0
      %v1318 = vmax.f32 %v1300, 0.0
      %v1319 = vmax.f32 %v1218, 0.0
      %v1320 = vmax.f32 %v1220, 0.0
      %v1321 = vmax.f32 %v1305, 0.0
      %v1322 = vmax.f32 %v1224, 0.0
      %v1323 = vmax.f32 %v1226, 0.0
      %v1324 = vmax.f32 %v1310, 0.0
      %v1325 = vmax.f32 %v1313, %v1319
      %v1326 = vmax.f32 %v1314, %v1320
      %v1327 = vmax.f32 %v1315, %v1321
      %v1328 = vmax.f32 %v1316, %v1322
      %v1329 = vmax.f32 %v1317, %v1323
      %v1330 = vmax.f32 %v1318, %v1324
      %v1331 = vld [vmem:[%s5] sm:$0xff]
      %v1332 = vld [vmem:[%s5 + $0x8] sm:$0xff]
      %v1333 = vld [vmem:[%s5 + $0x10] sm:$0xff]
      %v1334 = vld [vmem:[%s5 + $0x18] sm:$0xff]
      %v1335 = vld [vmem:[%s5 + $0x20] sm:$0xff]
      %v1336 = vld [vmem:[%s5 + $0x28] sm:$0xff]
      %v1337 = vld [vmem:[%s5 + $0x30] sm:$0xff]
      %v1338 = vld [vmem:[%s5 + $0x38] sm:$0xff]
      %v1339 = vld [vmem:[%s5 + $0x40] sm:$0xff]
      %v1340 = vld [vmem:[%s5 + $0x48] sm:$0xff]
      %v1341 = vld [vmem:[%s5 + $0x50] sm:$0xff]
      %v1342 = vld [vmem:[%s5 + $0x58] sm:$0xff]
      %v1343 = vld [vmem:[%s5 + $0x60] sm:$0xff]
      %v1344 = vld [vmem:[%s5 + $0x68] sm:$0xff]
      %v1345 = vld [vmem:[%s5 + $0x70] sm:$0xff]
      %v1346 = vld [vmem:[%s5 + $0x78] sm:$0xff]
      %v1347 = vld [vmem:[%s5 + $0x80] sm:$0xff]
      %v1348 = vld [vmem:[%s5 + $0x88] sm:$0xff]
      %v1349 = vld [vmem:[%s5 + $0x90] sm:$0xff]
      %v1350 = vld [vmem:[%s5 + $0x98] sm:$0xff]
      %v1351 = vld [vmem:[%s5 + $0xa0] sm:$0xff]
      %v1352 = vld [vmem:[%s5 + $0xa8] sm:$0xff]
      %v1353 = vld [vmem:[%s5 + $0xb0] sm:$0xff]
      %v1354 = vld [vmem:[%s5 + $0xb8] sm:$0xff]
      %v1355 = vld [vmem:[%s5 + $0xc0] sm:$0xff]
      %v1356 = vld [vmem:[%s5 + $0xc8] sm:$0xff]
      %v1357 = vld [vmem:[%s5 + $0xd0] sm:$0xff]
      %v1358 = vld [vmem:[%s5 + $0xd8] sm:$0xff]
      %v1359 = vld [vmem:[%s5 + $0xe0] sm:$0xff]
      %v1360 = vld [vmem:[%s5 + $0xe8] sm:$0xff]
      %v1361 = vld [vmem:[%s5 + $0xf0] sm:$0xff]
      %v1362 = vld [vmem:[%s5 + $0xf8] sm:$0xff]
      %v1363 = vld [vmem:[%s5 + $0x100] sm:$0xff]
      %v1364 = vld [vmem:[%s5 + $0x108] sm:$0xff]
      %v1365 = vld [vmem:[%s5 + $0x110] sm:$0xff]
      %v1366 = vld [vmem:[%s5 + $0x118] sm:$0xff]
      %v1367 = vld [vmem:[%s5 + $0x120] sm:$0xff]
      %v1368 = vld [vmem:[%s5 + $0x128] sm:$0xff]
      %v1369 = vld [vmem:[%s5 + $0x130] sm:$0xff]
      %v1370 = vld [vmem:[%s5 + $0x138] sm:$0xff]
      %v1371 = vld [vmem:[%s5 + $0x140] sm:$0xff]
      %v1372 = vld [vmem:[%s5 + $0x148] sm:$0xff]
      %v1373 = vld [vmem:[%s5 + $0x150] sm:$0xff]
      %v1374 = vld [vmem:[%s5 + $0x158] sm:$0x3f]
      %vm1375 = vcmask 769024
      %v1377 = vsel %vm1375, %v1327, 0
      %v1380 = vsel %vm1375, %v1330, 0
      %vm1382 = vcmask 1045504
      %v1384 = vsel %vm1382, %v1374, 0
      %1386 = vmatprep.subr.mxu0 0.0
      %1387 = vmatpush1.msra.mxu0 %v1331
      %1388 = vmatprep.subr.mxu0 0.0
      %1389 = vmatpush1.msra.mxu0 %v1332
      %1390 = vmatprep.subr.mxu0 0.0
      %1391 = vmatpush1.msra.mxu0 %v1333
      %1392 = vmatprep.subr.mxu0 0.0
      %1393 = vmatpush1.msra.mxu0 %v1334
      %1394 = vmatprep.subr.mxu0 0.0
      %1395 = vmatpush1.msra.mxu0 %v1335
      %1396 = vmatprep.subr.mxu0 0.0
      %1397 = vmatpush1.msra.mxu0 %v1336
      %1398 = vmatprep.subr.mxu0 0.0
      %1399 = vmatpush1.msra.mxu0 %v1337
      %1400 = vmatprep.subr.mxu0 0.0
      %1401 = vmatpush1.msra.mxu0 %v1338
      %1402 = vmatprep.subr.mxu0 0.0
      %1403 = vmatpush1.msra.mxu0 %v1339
      %1404 = vmatprep.subr.mxu0 0.0
      %1405 = vmatpush1.msra.mxu0 %v1340
      %1406 = vmatprep.subr.mxu0 0.0
      %1407 = vmatpush1.msra.mxu0 %v1341
      %1408 = vmatprep.subr.mxu0 0.0
      %1409 = vmatpush1.msra.mxu0 %v1342
      %1410 = vmatprep.subr.mxu0 0.0
      %1411 = vmatpush1.msra.mxu0 %v1343
      %1412 = vmatprep.subr.mxu0 0.0
      %1413 = vmatpush1.msra.mxu0 %v1344
      %1414 = vmatprep.subr.mxu0 0.0
      %1415 = vmatpush1.msra.mxu0 %v1345
      %1416 = vmatprep.subr.mxu0 0.0
      %1417 = vmatpush1.msra.mxu0 %v1346
      %1418 = vmatprep.subr.mxu0 0.0
      %1419 = vmatpush1.msra.mxu0 %v1347
      %1420 = vmatprep.subr.mxu0 0.0
      %1421 = vmatpush1.msra.mxu0 %v1348
      %1422 = vmatprep.subr.mxu0 0.0
      %1423 = vmatpush1.msra.mxu0 %v1349
      %1424 = vmatprep.subr.mxu0 0.0
      %1425 = vmatpush1.msra.mxu0 %v1350
      %1426 = vmatprep.subr.mxu0 0.0
      %1427 = vmatpush1.msra.mxu0 %v1351
      %1428 = vmatprep.subr.mxu0 0.0
      %1429 = vmatpush1.msra.mxu0 %v1352
      %1430 = vmatprep.subr.mxu0 0.0
      %1431 = vmatpush1.msra.mxu0 %v1353
      %1432 = vmatprep.subr.mxu0 0.0
      %1433 = vmatpush1.msra.mxu0 %v1354
      %1434 = vmatprep.subr.mxu0 0.0
      %1435 = vmatpush1.msra.mxu0 %v1355
      %1436 = vmatprep.subr.mxu0 0.0
      %1437 = vmatpush1.msra.mxu0 %v1356
      %1438 = vmatprep.subr.mxu0 0.0
      %1439 = vmatpush1.msra.mxu0 %v1357
      %1440 = vmatprep.subr.mxu0 0.0
      %1441 = vmatpush1.msra.mxu0 %v1358
      %1442 = vmatprep.subr.mxu0 0.0
      %1443 = vmatpush1.msra.mxu0 %v1359
      %1444 = vmatprep.subr.mxu0 0.0
      %1445 = vmatpush1.msra.mxu0 %v1360
      %1446 = vmatprep.subr.mxu0 0.0
      %1447 = vmatpush1.msra.mxu0 %v1361
      %1448 = vmatprep.subr.mxu0 0.0
      %1449 = vmatpush1.msra.mxu0 %v1362
      %1450 = vmatprep.mubr.f32.mxu0 %v1326
      %1451 = vmatmul.mubr.f32.gmra.mrb[0].mxu0 %v1325
      %v1452 = vpop.f32.mrb[0].mxu0
      %v1453 = vadd.f32 0.0, %v1452
      %v1454 = vpop.f32.mrb[0].mxu0
      %1455 = vmatprep.mubr.f32.mxu0 %v1329
      %1456 = vmatmul.mubr.f32.gmra.mrb[0].mxu0 %v1328
      %v1457 = vpop.f32.mrb[0].mxu0
      %v1458 = vadd.f32 0.0, %v1457
      %v1459 = vpop.f32.mrb[0].mxu0
      %1460 = vdwg.mxu0
      %1461 = vmatprep.subr.mxu0 0.0
      %1462 = vmatpush1.msra.mxu0 %v1363
      %1463 = vmatprep.subr.mxu0 0.0
      %1464 = vmatpush1.msra.mxu0 %v1364
      %1465 = vmatprep.subr.mxu0 0.0
      %1466 = vmatpush1.msra.mxu0 %v1365
      %1467 = vmatprep.subr.mxu0 0.0
      %1468 = vmatpush1.msra.mxu0 %v1366
      %1469 = vmatprep.subr.mxu0 0.0
      %1470 = vmatpush1.msra.mxu0 %v1367
      %1471 = vmatprep.subr.mxu0 0.0
      %1472 = vmatpush1.msra.mxu0 %v1368
      %1473 = vmatprep.subr.mxu0 0.0
      %1474 = vmatpush1.msra.mxu0 %v1369
      %1475 = vmatprep.subr.mxu0 0.0
      %1476 = vmatpush1.msra.mxu0 %v1370
      %1477 = vmatprep.subr.mxu0 0.0
      %1478 = vmatpush1.msra.mxu0 %v1371
      %1479 = vmatprep.subr.mxu0 0.0
      %1480 = vmatpush1.msra.mxu0 %v1372
      %1481 = vmatprep.subr.mxu0 0.0
      %1482 = vmatpush1.msra.mxu0 %v1373
      %1483 = vmatprep.subr.mxu0 0.0
      %1484 = vmatpush1.msra.mxu0 %v1384
      %1485 = vmatprep.subr.mxu0 0.0
      %1486 = vmatpush1.msra.mxu0 0.0
      %1487 = vmatprep.subr.mxu0 0.0
      %1488 = vmatpush1.msra.mxu0 0.0
      %1489 = vmatprep.subr.mxu0 0.0
      %1490 = vmatpush1.msra.mxu0 0.0
      %1491 = vmatprep.subr.mxu0 0.0
      %1492 = vmatpush1.msra.mxu0 0.0
      %1493 = vmatprep.subr.mxu0 0.0
      %1494 = vmatpush1.msra.mxu0 0.0
      %1495 = vmatprep.subr.mxu0 0.0
      %1496 = vmatpush1.msra.mxu0 0.0
      %1497 = vmatprep.subr.mxu0 0.0
      %1498 = vmatpush1.msra.mxu0 0.0
      %1499 = vmatprep.subr.mxu0 0.0
      %1500 = vmatpush1.msra.mxu0 0.0
      %1501 = vmatprep.subr.mxu0 0.0
      %1502 = vmatpush1.msra.mxu0 0.0
      %1503 = vmatprep.subr.mxu0 0.0
      %1504 = vmatpush1.msra.mxu0 0.0
      %1505 = vmatprep.subr.mxu0 0.0
      %1506 = vmatpush1.msra.mxu0 0.0
      %1507 = vmatprep.subr.mxu0 0.0
      %1508 = vmatpush1.msra.mxu0 0.0
      %1509 = vmatprep.subr.mxu0 0.0
      %1510 = vmatpush1.msra.mxu0 0.0
      %1511 = vmatprep.subr.mxu0 0.0
      %1512 = vmatpush1.msra.mxu0 0.0
      %1513 = vmatprep.subr.mxu0 0.0
      %1514 = vmatpush1.msra.mxu0 0.0
      %1515 = vmatprep.subr.mxu0 0.0
      %1516 = vmatpush1.msra.mxu0 0.0
      %1517 = vmatprep.subr.mxu0 0.0
      %1518 = vmatpush1.msra.mxu0 0.0
      %1519 = vmatprep.subr.mxu0 0.0
      %1520 = vmatpush1.msra.mxu0 0.0
      %1521 = vmatprep.subr.mxu0 0.0
      %1522 = vmatpush1.msra.mxu0 0.0
      %1523 = vmatprep.subr.mxu0 0.0
      %1524 = vmatpush1.msra.mxu0 0.0
      %1525 = vmatprep.mubr.f32.mxu0 0.0
      %1526 = vmatmul.mubr.f32.gmra.mrb[0].mxu0 %v1377
      %v1527 = vpop.f32.mrb[0].mxu0
      %v1528 = vadd.f32 %v1453, %v1527
      %v1529 = vpop.f32.mrb[0].mxu0
      %1530 = vmatprep.mubr.f32.mxu0 0.0
      %1531 = vmatmul.mubr.f32.gmra.mrb[0].mxu0 %v1380
      %v1532 = vpop.f32.mrb[0].mxu0
      %v1533 = vadd.f32 %v1458, %v1532
      %v1534 = vpop.f32.mrb[0].mxu0
      %1535 = vdwg.mxu0
      %1536 = vst.msk [vmem:[%s251] sm:$0xff] %vm512, %v1528
      %1537 = vst.msk [vmem:[%s251 + $0x8] sm:$0xff] %vm512, %v1533
      %p1538 = scmp.lt.s32.totalorder %s17, 1
      %s1539 = scalar_select %p1538, %s17, 1
      %s1540 = smul.addr %s1539, 2
      %s1541 = smul.addr %s1540, 8
      %s1542 = scalar_lea.vmem %s6, %s1541
      // Predicated region
      $region45: #{_rnn1_forward_impl.2} parent=43 // pred_check
        %p1543 = pneg %p166
      $region46: #{_rnn1_forward_impl.2} parent=43 // pred_check_branch
        %1545 = sbr.rel (%p1543) target = $region48
      $region47: #{_rnn1_forward_impl.2} parent=43 // pred_region
        _
      $region48: #{_rnn1_forward_impl.2} parent=43 // pred_fallthru
        _
    $region44: #{_rnn1_forward_impl.2} parent=5 // pred_fallthru
      _
    %p1546 = scmp.le.s32.totalorder 2, %s12
    // Predicated region
    $region49: #{_rnn1_forward_impl.2} parent=5 // pred_check
      %p1547 = pneg %p1546
    $region50: #{_rnn1_forward_impl.2} parent=5 // pred_check_branch
      %1549 = sbr.rel (%p1547) target = $region52
    $region51: #{_rnn1_forward_impl.2} parent=5 // pred_region
      %s1550 = ssub.s32 %s12, 2
      // Predicated region
      $region53: #{_rnn1_forward_impl.2} parent=51 // pred_check
        %p1551 = pneg %p172
      $region54: #{_rnn1_forward_impl.2} parent=51 // pred_check_branch
        %1553 = sbr.rel (%p1551) target = $region56
      $region55: #{_rnn1_forward_impl.2} parent=51 // pred_region
        %p1554 = scmp.lt.s32.totalorder %s18, 1
        %s1555 = scalar_select %p1554, %s18, 1
        %s1556 = smul.addr %s1555, 2
        %s1557 = smul.addr %s1556, 8
        %s1558 = scalar_lea.vmem %s6, %s1557
      $region56: #{_rnn1_forward_impl.2} parent=51 // pred_fallthru
        _
    $region52: #{_rnn1_forward_impl.2} parent=5 // pred_fallthru
      _
  $region6: #{_rnn1_forward_impl.2} parent=0 // loop_footer
    %s16 = sadd.s32 1, %s12
  $region7: #{_rnn1_forward_impl.2} parent=0 // loop_footer_branch
    %11 = sbr.rel target = $region3
  $region8: #{_rnn1_forward_impl.2} parent=0 // loop_exit
    _

</llo_original>
